<compile_context>
chip_gen: v5e
topology: v5e:2x2
jax: 0.10.0
libtpu: 0.0.40
codegen_flags: <defaults>
</compile_context>

<pallas_src>
import functools

import jax
import jax.numpy as jnp
from jax.experimental import pallas as pl
from jax.experimental.pallas import tpu as pltpu

LANE = 128


def _round_up(x, m):
    return (x + m - 1) // m * m


def _vmem_limit_bytes():
    """Generation-aware VMEM limit (leave headroom for Mosaic scratch)."""
    cap = 64 * 1024 * 1024                      # conservative default (v7x)
    try:
        info = pltpu.get_tpu_info()
        cap = int(getattr(info, "vmem_capacity_bytes", cap))
    except Exception:
        pass
    return min(cap * 3 // 4, 100 * 1024 * 1024)


def _row_tile(ho, wo, n, cp, kc, cin, vmem_limit):
    """Pick the row tile th (a divisor of ho).

    Prefers: grid >= 2 (megacore), th*wo a multiple of 8 (view reshape), and
    the largest tile under a generation-dependent M target / VMEM budget.
    """
    target = 2048 if vmem_limit >= 72 * 1024 * 1024 else 1024
    # rough per-M-row VMEM bytes (double-buffered activations + f32 out + window)
    per_row_k1 = 2 * (2 * kc + 2 * cin + 2 * cp + 2 * cp)
    per_row_k2 = 2 * (2 * cp + 2 * cp + 4 * cp) + 2 * cp
    per_row = max(per_row_k1, per_row_k2, 1)
    budget_rows = max(8, (vmem_limit // 2) // per_row)
    target = max(8, min(target, budget_rows))

    cands = [t for t in range(1, ho + 1) if ho % t == 0 and t * wo <= target]
    if not cands:
        return 1
    # TODO(synk): relax the divisor requirement with a masked last row block.
    def score(t):
        nb = ho // t
        return (n * nb >= 2, (t * wo) % 8 == 0, t)
    return max(cands, key=score)


# ------------------------- in-kernel helper functions ----------------------- #

def _gdn(y, gt_ref, beta):
    """y_i * rsqrt(beta_i + sum_j gamma[i, j] * y_j^2); gt_ref holds gamma^T."""
    norm = jnp.dot((y * y).astype(jnp.bfloat16), gt_ref[...],
                   preferred_element_type=jnp.float32) + beta
    return y * jax.lax.rsqrt(norm)


# --------------------------------- kernels ---------------------------------- #

def _conv1_kernel(p_ref, xc_ref, w1_ref, ws_ref, g1t_ref, gst_ref,
                  sc1_ref, scs_ref, y_ref, z_ref, *, th, wo):
    """conv1(3x3, stride s) as one K-packed dot + GDN1 + PReLU1,
    fused with the shortcut conv1x1(stride s) + GDN."""
    m = th * wo
    cp = y_ref.shape[-1]

    # main branch: single (m, 9*cin) @ (9*cin, cp) MXU dot -> GDN -> PReLU
    b1, beta1, a1 = sc1_ref[0:1, :], sc1_ref[1:2, :], sc1_ref[2:3, :]
    px = p_ref[...].reshape(m, p_ref.shape[-1])
    y = jnp.dot(px, w1_ref[...], preferred_element_type=jnp.float32) + b1
    y = _gdn(y, g1t_ref, beta1)
    y = jnp.where(y >= 0, y, a1 * y)                       # PReLU1
    y_ref[...] = y.reshape(1, th, wo, cp).astype(y_ref.dtype)

    # shortcut branch: 1x1 strided conv -> GDN (stored bf16)
    bs, betas = scs_ref[0:1, :], scs_ref[1:2, :]
    xc = xc_ref[...].reshape(m, xc_ref.shape[-1])
    z = jnp.dot(xc, ws_ref[...], preferred_element_type=jnp.float32) + bs
    z = _gdn(z, gst_ref, betas)
    z_ref[...] = z.reshape(1, th, wo, cp).astype(z_ref.dtype)


def _conv2_kernel(yc_ref, yt_ref, yb_ref, z_ref, w2_ref, g2t_ref, sc2_ref,
                  o_ref, win_ref, *, th, wo):
    """conv2(3x3, stride 1) over a row-windowed halo + GDN2 + residual + PReLU."""
    j = pl.program_id(1)
    nb = pl.num_programs(1)
    m = th * wo
    cp = o_ref.shape[-1]

    # Assemble the (th+2, wo+2, cp) halo window in VMEM scratch.  Halo rows
    # outside the image and the two W-border columns are zero (conv padding).
    zcol = jnp.zeros((th + 2, 1, cp), dtype=jnp.bfloat16)
    win_ref[:, pl.ds(0, 1), :] = zcol
    win_ref[:, pl.ds(wo + 1, 1), :] = zcol
    top = yt_ref[0] * (j > 0).astype(jnp.bfloat16)
    bot = yb_ref[0] * (j < nb - 1).astype(jnp.bfloat16)
    win_ref[pl.ds(0, 1), pl.ds(1, wo), :] = top
    win_ref[pl.ds(th + 1, 1), pl.ds(1, wo), :] = bot
    win_ref[pl.ds(1, th), pl.ds(1, wo), :] = yc_ref[0]

    # 3x3 conv as nine shifted (m, cp) @ (cp, cp) bf16 dots (f32 accumulation).
    # TODO(synk): pair taps along K (K = 2*cp) to fill the 256-deep MXU on v6e/v7x.
    acc = None
    t = 0
    for di in range(3):
        for dj in range(3):
            xt = win_ref[pl.ds(di, th), pl.ds(dj, wo), :].reshape(m, cp)
            part = jnp.dot(xt, w2_ref[t], preferred_element_type=jnp.float32)
            acc = part if acc is None else acc + part
            t += 1

    b2, beta2, afn = sc2_ref[0:1, :], sc2_ref[1:2, :], sc2_ref[2:3, :]
    y = acc + b2
    y = _gdn(y, g2t_ref, beta2)
    s = y + z_ref[...].reshape(m, cp).astype(jnp.float32)   # residual add
    s = jnp.where(s >= 0, s, afn * s)                        # final PReLU
    o_ref[...] = s.reshape(1, th, wo, cp).astype(o_ref.dtype)


# ------------------------------ pallas_call wrappers ------------------------ #

def _conv1_call(patches, xc, w1, ws, g1t, gst, sc1, scs, *,
                ho, wo, cp, th, vmem_limit):
    n = patches.shape[0]
    grid = (n, ho // th)
    const2 = lambda i, j: (0, 0)
    row_blk = lambda c: pl.BlockSpec((1, th, wo, c), lambda i, j: (i, j, 0, 0))
    out_spec = pl.BlockSpec((1, th, wo, cp), lambda i, j: (i, j, 0, 0))
    kernel = functools.partial(_conv1_kernel, th=th, wo=wo)
    return pl.pallas_call(
        kernel,
        out_shape=(jax.ShapeDtypeStruct((n, ho, wo, cp), jnp.bfloat16),   # y
                   jax.ShapeDtypeStruct((n, ho, wo, cp), jnp.bfloat16)),  # z
        grid=grid,
        in_specs=[
            row_blk(patches.shape[-1]),
            row_blk(xc.shape[-1]),
            pl.BlockSpec(w1.shape, const2),
            pl.BlockSpec(ws.shape, const2),
            pl.BlockSpec(g1t.shape, const2),
            pl.BlockSpec(gst.shape, const2),
            pl.BlockSpec(sc1.shape, const2),
            pl.BlockSpec(scs.shape, const2),
        ],
        out_specs=(out_spec, out_spec),
        compiler_params=pltpu.CompilerParams(
            dimension_semantics=("parallel", "parallel"),
            vmem_limit_bytes=vmem_limit),
    )(patches, xc, w1, ws, g1t, gst, sc1, scs)


def _conv2_call(y, z, w2, g2t, sc2, *, ho, wo, cp, th, vmem_limit):
    n = y.shape[0]
    grid = (n, ho // th)
    const2 = lambda i, j: (0, 0)
    const3 = lambda i, j: (0, 0, 0)
    main = pl.BlockSpec((1, th, wo, cp), lambda i, j: (i, j, 0, 0))
    # 1-row halo operands of the SAME y array; block size 1 in H so the index
    # map value is the element row (clamped in-bounds; masked inside kernel).
    top = pl.BlockSpec((1, 1, wo, cp),
                       lambda i, j: (i, jnp.maximum(j * th - 1, 0), 0, 0))
    bot = pl.BlockSpec((1, 1, wo, cp),
                       lambda i, j: (i, jnp.minimum((j + 1) * th, ho - 1), 0, 0))
    kernel = functools.partial(_conv2_kernel, th=th, wo=wo)
    return pl.pallas_call(
        kernel,
        out_shape=jax.ShapeDtypeStruct((n, ho, wo, cp), jnp.float32),
        grid=grid,
        in_specs=[
            main, top, bot,                     # y (center, top halo, bottom halo)
            main,                               # z (residual, bf16)
            pl.BlockSpec(w2.shape, const3),
            pl.BlockSpec(g2t.shape, const2),
            pl.BlockSpec(sc2.shape, const2),
        ],
        out_specs=pl.BlockSpec((1, th, wo, cp), lambda i, j: (i, j, 0, 0)),
        scratch_shapes=[pltpu.VMEM((th + 2, wo + 2, cp), jnp.bfloat16)],
        compiler_params=pltpu.CompilerParams(
            dimension_semantics=("parallel", "parallel"),
            vmem_limit_bytes=vmem_limit),
    )(y, y, y, z, w2, g2t, sc2)


# --------------------------------- forward ---------------------------------- #

def rcb_forward(x_nchw, p, stride=2):
    # cast to bf16 BEFORE the transpose / pad / patch chain (half the HBM traffic)
    x = jnp.transpose(x_nchw.astype(jnp.bfloat16), (0, 2, 3, 1))   # NCHW -> NHWC
    n, h, w, cin = x.shape
    cout = p["b1"].shape[0]
    cp = _round_up(cout, LANE)

    if stride == 1 and cin == cout:
        # TODO(synk): identity-shortcut variant (nn.Sequential()) not implemented.
        raise NotImplementedError("identity shortcut path not implemented")
    if stride not in (1, 2):
        raise NotImplementedError("stride must be 1 or 2")
    if stride == 2:
        assert h % 2 == 0 and w % 2 == 0, "stride-2 path assumes even H, W"
        ho, wo = h // 2, w // 2
    else:
        ho, wo = h, w

    # conv1 input as K-packed patches (channels = 9*cin); cin is the block's
    # small input-channel count, so this HBM tensor stays cheap.
    xp = jnp.pad(x, ((0, 0), (1, 1), (1, 1), (0, 0)))
    s = stride
    taps = [xp[:, ki:ki + s * (ho - 1) + 1:s, kj:kj + s * (wo - 1) + 1:s, :]
            for ki in range(3) for kj in range(3)]
    patches = jnp.concatenate(taps, axis=-1)        # (n, ho, wo, 9*cin)
    xc = x[:, ::s, ::s, :]                          # shortcut 1x1-conv input

    pad_ch = cp - cout

    def pad_out(v, value=0.0):
        widths = [(0, 0)] * (v.ndim - 1) + [(0, pad_ch)]
        return jnp.pad(v, widths, constant_values=value)

    def pack_scalars(bias, beta, alpha=None):
        # row0=bias, row1=GDN beta (1.0 on padded lanes!), row2=PReLU alpha
        rows = [pad_out(bias), pad_out(beta, value=1.0)]
        rows.append(pad_out(alpha) if alpha is not None
                    else jnp.zeros((cp,), jnp.float32))
        rows += [jnp.zeros((cp,), jnp.float32)] * (8 - len(rows))
        return jnp.stack(rows).astype(jnp.float32)

    def pad_gamma_t(g):
        return jnp.pad(g.T, ((0, pad_ch), (0, pad_ch))).astype(jnp.bfloat16)

    w1 = pad_out(p["w1"].reshape(9 * cin, cout)).astype(jnp.bfloat16)   # (9*cin, cp)
    ws = pad_out(p["ws"].reshape(cin, cout)).astype(jnp.bfloat16)       # (cin, cp)
    w2 = jnp.pad(p["w2"].reshape(9, cout, cout),
                 ((0, 0), (0, pad_ch), (0, pad_ch))).astype(jnp.bfloat16)
    g1t = pad_gamma_t(p["gdn1_gamma"])
    g2t = pad_gamma_t(p["gdn2_gamma"])
    gst = pad_gamma_t(p["gdns_gamma"])
    sc1 = pack_scalars(p["b1"], p["gdn1_beta"], p["prelu1"])
    scs = pack_scalars(p["bs"], p["gdns_beta"])
    sc2 = pack_scalars(p["b2"], p["gdn2_beta"], p["prelu_fn"])

    vmem_limit = _vmem_limit_bytes()
    th = _row_tile(ho, wo, n, cp, 9 * cin, cin, vmem_limit)

    # kernel 1: conv1 + GDN1 + PReLU1, fused with shortcut conv1x1 + GDN
    y, z = _conv1_call(patches, xc, w1, ws, g1t, gst, sc1, scs,
                       ho=ho, wo=wo, cp=cp, th=th, vmem_limit=vmem_limit)

    # kernel 2: conv2 + GDN2 + residual add + final PReLU (halo handled in-kernel;
    # no jnp.pad round trip over y)
    out = _conv2_call(y, z, w2, g2t, sc2,
                      ho=ho, wo=wo, cp=cp, th=th, vmem_limit=vmem_limit)

    out = out[:, :, :, :cout]                       # drop channel padding
    return jnp.transpose(out, (0, 3, 1, 2))         # NHWC -> NCHW


# -------------------------------- parameters -------------------------------- #

def init_params(key, cin, cout):
    ks = jax.random.split(key, 3)

    def xavier(k, shape):                           # HWIO conv weight
        fan_in = shape[0] * shape[1] * shape[2]
        fan_out = shape[0] * shape[1] * shape[3]
        lim = (6.0 / (fan_in + fan_out)) ** 0.5
        return jax.random.uniform(k, shape, jnp.float32, -lim, lim)

    eye = jnp.eye(cout, dtype=jnp.float32)
    return dict(
        # proc: conv1 (3x3, stride s) -> GDN1 -> PReLU1 -> conv2 (3x3) -> GDN2
        w1=xavier(ks[0], (3, 3, cin, cout)), b1=jnp.zeros((cout,), jnp.float32),
        w2=xavier(ks[1], (3, 3, cout, cout)), b2=jnp.zeros((cout,), jnp.float32),
        gdn1_gamma=0.1 * eye + 0.005, gdn1_beta=jnp.ones((cout,), jnp.float32),
        gdn2_gamma=0.1 * eye + 0.005, gdn2_beta=jnp.ones((cout,), jnp.float32),
        prelu1=jnp.full((cout,), 0.25, jnp.float32),
        # shortcut: conv (1x1, stride s) -> GDN
        ws=xavier(ks[2], (1, 1, cin, cout)), bs=jnp.zeros((cout,), jnp.float32),
        gdns_gamma=0.1 * eye + 0.005, gdns_beta=jnp.ones((cout,), jnp.float32),
        # final PReLU
        prelu_fn=jnp.full((cout,), 0.25, jnp.float32),
    )


# ------------------------- pure-JAX reference check ------------------------- #

def _conv_ref(x, w, b, stride, pad):
    y = jax.lax.conv_general_dilated(
        x, w, (stride, stride), [(pad, pad), (pad, pad)],
        dimension_numbers=("NHWC", "HWIO", "NHWC"),
        precision=jax.lax.Precision.HIGHEST)
    return y + b


def _gdn_ref(x, gamma, beta):
    norm = jnp.einsum("nhwj,ij->nhwi", x * x, gamma,
                      precision=jax.lax.Precision.HIGHEST) + beta
    return x * jax.lax.rsqrt(norm)


def _prelu_ref(x, a):
    return jnp.where(x >= 0, x, a * x)


def rcb_ref(x_nchw, p, stride=2):
    x = jnp.transpose(x_nchw, (0, 2, 3, 1))
    y = _conv_ref(x, p["w1"], p["b1"], stride, 1)
    y = _prelu_ref(_gdn_ref(y, p["gdn1_gamma"], p["gdn1_beta"]), p["prelu1"])
    y = _conv_ref(y, p["w2"], p["b2"], 1, 1)
    y = _gdn_ref(y, p["gdn2_gamma"], p["gdn2_beta"])
    z = _conv_ref(x, p["ws"], p["bs"], stride, 0)
    z = _gdn_ref(z, p["gdns_gamma"], p["gdns_beta"])
    out = _prelu_ref(y + z, p["prelu_fn"])
    return jnp.transpose(out, (0, 3, 1, 2))


# ----------------------------------- main ----------------------------------- #

if __name__ == "__main__":
    key = jax.random.PRNGKey(0)
    kx, kp = jax.random.split(key)

    N, Cin, H, W = 2, 4, 16, 16
    Cout, stride = 8, 2

    x = jax.random.normal(kx, (N, Cin, H, W), jnp.float32)   # NCHW like PyTorch
    params = init_params(kp, Cin, Cout)

    fwd = jax.jit(rcb_forward, static_argnames=("stride",))
    out = jax.block_until_ready(fwd(x, params, stride=stride))

    assert out.shape == (N, Cout, H // stride, W // stride), out.shape

    ref = rcb_ref(x, params, stride)
    max_err = float(jnp.max(jnp.abs(out - ref)))
    # bf16 MXU inputs / bf16 intermediates (f32 accumulation) vs f32 HIGHEST ref
    if not jnp.allclose(out, ref, atol=5e-2, rtol=5e-2):
        raise AssertionError(
            f"Pallas RCB output mismatches JAX reference (max abs err {max_err})")

    print("KERNEL_OK")
</pallas_src>

<mosaic_0001>
module attributes {stable_mosaic.version = 11 : i64} {
  func.func @_conv1_kernel(%arg0: i32, %arg1: i32, %arg2: memref<1x8x8x36xbf16, #tpu.memory_space<vmem>>, %arg3: memref<1x8x8x4xbf16, #tpu.memory_space<vmem>>, %arg4: memref<36x128xbf16, #tpu.memory_space<vmem>>, %arg5: memref<4x128xbf16, #tpu.memory_space<vmem>>, %arg6: memref<128x128xbf16, #tpu.memory_space<vmem>>, %arg7: memref<128x128xbf16, #tpu.memory_space<vmem>>, %arg8: memref<8x128xf32, #tpu.memory_space<vmem>>, %arg9: memref<8x128xf32, #tpu.memory_space<vmem>>, %arg10: memref<1x8x8x128xbf16, #tpu.memory_space<vmem>>, %arg11: memref<1x8x8x128xbf16, #tpu.memory_space<vmem>>) attributes {dimension_semantics = [#tpu.dimension_semantics<parallel>, #tpu.dimension_semantics<parallel>], iteration_bounds = array<i64: 2, 1>, scalar_prefetch = 0 : i64, scratch_operands = 0 : i64, tpu.core_type = #tpu.core_type<tc>, window_params = [{transform_indices = @transform_0, window_bounds = array<i64: 1, 8, 8, 36>}, {transform_indices = @transform_1, window_bounds = array<i64: 1, 8, 8, 4>}, {pipeline_mode = #tpu.pipeline_mode<synchronous>, transform_indices = @transform_2, window_bounds = array<i64: 36, 128>}, {pipeline_mode = #tpu.pipeline_mode<synchronous>, transform_indices = @transform_3, window_bounds = array<i64: 4, 128>}, {pipeline_mode = #tpu.pipeline_mode<synchronous>, transform_indices = @transform_4, window_bounds = array<i64: 128, 128>}, {pipeline_mode = #tpu.pipeline_mode<synchronous>, transform_indices = @transform_5, window_bounds = array<i64: 128, 128>}, {pipeline_mode = #tpu.pipeline_mode<synchronous>, transform_indices = @transform_6, window_bounds = array<i64: 8, 128>}, {pipeline_mode = #tpu.pipeline_mode<synchronous>, transform_indices = @transform_7, window_bounds = array<i64: 8, 128>}, {transform_indices = @transform_8, window_bounds = array<i64: 1, 8, 8, 128>}, {transform_indices = @transform_9, window_bounds = array<i64: 1, 8, 8, 128>}]} {
    %c0 = arith.constant 0 : index
    %c0_0 = arith.constant 0 : index
    %0 = vector.load %arg8[%c0, %c0_0] : memref<8x128xf32, #tpu.memory_space<vmem>>, vector<1x128xf32>
    %c1 = arith.constant 1 : index
    %c0_1 = arith.constant 0 : index
    %1 = vector.load %arg8[%c1, %c0_1] : memref<8x128xf32, #tpu.memory_space<vmem>>, vector<1x128xf32>
    %c2 = arith.constant 2 : index
    %c0_2 = arith.constant 0 : index
    %2 = vector.load %arg8[%c2, %c0_2] : memref<8x128xf32, #tpu.memory_space<vmem>>, vector<1x128xf32>
    %c0_3 = arith.constant 0 : index
    %c0_4 = arith.constant 0 : index
    %c0_5 = arith.constant 0 : index
    %c0_6 = arith.constant 0 : index
    %3 = vector.load %arg2[%c0_3, %c0_4, %c0_5, %c0_6] : memref<1x8x8x36xbf16, #tpu.memory_space<vmem>>, vector<1x8x8x36xbf16>
    %4 = vector.shape_cast %3 : vector<1x8x8x36xbf16> to vector<64x36xbf16>
    %c0_7 = arith.constant 0 : index
    %c0_8 = arith.constant 0 : index
    %5 = vector.load %arg4[%c0_7, %c0_8] : memref<36x128xbf16, #tpu.memory_space<vmem>>, vector<36x128xbf16>
    %cst = arith.constant dense<0.000000e+00> : vector<64x128xf32>
    %6 = tpu.matmul %4, %5, %cst {dimension_numbers = #tpu.dot_dimension_numbers<[1], [0], [0], [1], [0, 0, 1, 1], [], []>} : vector<64x36xbf16>, vector<36x128xbf16>, vector<64x128xf32> -> vector<64x128xf32>
    %7 = vector.broadcast %0 : vector<1x128xf32> to vector<64x128xf32>
    %8 = arith.addf %6, %7 : vector<64x128xf32>
    %9 = arith.mulf %8, %8 : vector<64x128xf32>
    %10 = arith.truncf %9 : vector<64x128xf32> to vector<64x128xbf16>
    %c0_9 = arith.constant 0 : index
    %c0_10 = arith.constant 0 : index
    %11 = vector.load %arg6[%c0_9, %c0_10] : memref<128x128xbf16, #tpu.memory_space<vmem>>, vector<128x128xbf16>
    %cst_11 = arith.constant dense<0.000000e+00> : vector<64x128xf32>
    %12 = tpu.matmul %10, %11, %cst_11 {dimension_numbers = #tpu.dot_dimension_numbers<[1], [0], [0], [1], [0, 0, 1, 1], [], []>} : vector<64x128xbf16>, vector<128x128xbf16>, vector<64x128xf32> -> vector<64x128xf32>
    %13 = vector.broadcast %1 : vector<1x128xf32> to vector<64x128xf32>
    %14 = arith.addf %12, %13 : vector<64x128xf32>
    %15 = math.rsqrt %14 : vector<64x128xf32>
    %16 = arith.mulf %8, %15 : vector<64x128xf32>
    %cst_12 = arith.constant 0.000000e+00 : f32
    %17 = vector.broadcast %cst_12 : f32 to vector<64x128xf32>
    %18 = arith.cmpf oge, %16, %17 : vector<64x128xf32>
    %19 = vector.broadcast %2 : vector<1x128xf32> to vector<64x128xf32>
    %20 = arith.mulf %19, %16 : vector<64x128xf32>
    %21 = arith.select %18, %16, %20 : vector<64x128xi1>, vector<64x128xf32>
    %22 = vector.shape_cast %21 : vector<64x128xf32> to vector<1x8x8x128xf32>
    %23 = arith.truncf %22 : vector<1x8x8x128xf32> to vector<1x8x8x128xbf16>
    %c0_13 = arith.constant 0 : index
    %c0_14 = arith.constant 0 : index
    %c0_15 = arith.constant 0 : index
    %c0_16 = arith.constant 0 : index
    %24 = vector.load %arg10[%c0_13, %c0_14, %c0_15, %c0_16] : memref<1x8x8x128xbf16, #tpu.memory_space<vmem>>, vector<1x8x8x128xbf16>
    tpu.vector_store %arg10[%c0_13, %c0_14, %c0_15, %c0_16], %23 {strides = array<i32>} : memref<1x8x8x128xbf16, #tpu.memory_space<vmem>>, vector<1x8x8x128xbf16>,
    %c0_17 = arith.constant 0 : index
    %c0_18 = arith.constant 0 : index
    %25 = vector.load %arg9[%c0_17, %c0_18] : memref<8x128xf32, #tpu.memory_space<vmem>>, vector<1x128xf32>
    %c1_19 = arith.constant 1 : index
    %c0_20 = arith.constant 0 : index
    %26 = vector.load %arg9[%c1_19, %c0_20] : memref<8x128xf32, #tpu.memory_space<vmem>>, vector<1x128xf32>
    %c0_21 = arith.constant 0 : index
    %c0_22 = arith.constant 0 : index
    %c0_23 = arith.constant 0 : index
    %c0_24 = arith.constant 0 : index
    %27 = vector.load %arg3[%c0_21, %c0_22, %c0_23, %c0_24] : memref<1x8x8x4xbf16, #tpu.memory_space<vmem>>, vector<1x8x8x4xbf16>
    %28 = vector.shape_cast %27 : vector<1x8x8x4xbf16> to vector<64x4xbf16>
    %c0_25 = arith.constant 0 : index
    %c0_26 = arith.constant 0 : index
    %29 = vector.load %arg5[%c0_25, %c0_26] : memref<4x128xbf16, #tpu.memory_space<vmem>>, vector<4x128xbf16>
    %cst_27 = arith.constant dense<0.000000e+00> : vector<64x128xf32>
    %30 = tpu.matmul %28, %29, %cst_27 {dimension_numbers = #tpu.dot_dimension_numbers<[1], [0], [0], [1], [0, 0, 1, 1], [], []>} : vector<64x4xbf16>, vector<4x128xbf16>, vector<64x128xf32> -> vector<64x128xf32>
    %31 = vector.broadcast %25 : vector<1x128xf32> to vector<64x128xf32>
    %32 = arith.addf %30, %31 : vector<64x128xf32>
    %33 = arith.mulf %32, %32 : vector<64x128xf32>
    %34 = arith.truncf %33 : vector<64x128xf32> to vector<64x128xbf16>
    %c0_28 = arith.constant 0 : index
    %c0_29 = arith.constant 0 : index
    %35 = vector.load %arg7[%c0_28, %c0_29] : memref<128x128xbf16, #tpu.memory_space<vmem>>, vector<128x128xbf16>
    %cst_30 = arith.constant dense<0.000000e+00> : vector<64x128xf32>
    %36 = tpu.matmul %34, %35, %cst_30 {dimension_numbers = #tpu.dot_dimension_numbers<[1], [0], [0], [1], [0, 0, 1, 1], [], []>} : vector<64x128xbf16>, vector<128x128xbf16>, vector<64x128xf32> -> vector<64x128xf32>
    %37 = vector.broadcast %26 : vector<1x128xf32> to vector<64x128xf32>
    %38 = arith.addf %36, %37 : vector<64x128xf32>
    %39 = math.rsqrt %38 : vector<64x128xf32>
    %40 = arith.mulf %32, %39 : vector<64x128xf32>
    %41 = vector.shape_cast %40 : vector<64x128xf32> to vector<1x8x8x128xf32>
    %42 = arith.truncf %41 : vector<1x8x8x128xf32> to vector<1x8x8x128xbf16>
    %c0_31 = arith.constant 0 : index
    %c0_32 = arith.constant 0 : index
    %c0_33 = arith.constant 0 : index
    %c0_34 = arith.constant 0 : index
    %43 = vector.load %arg11[%c0_31, %c0_32, %c0_33, %c0_34] : memref<1x8x8x128xbf16, #tpu.memory_space<vmem>>, vector<1x8x8x128xbf16>
    tpu.vector_store %arg11[%c0_31, %c0_32, %c0_33, %c0_34], %42 {strides = array<i32>} : memref<1x8x8x128xbf16, #tpu.memory_space<vmem>>, vector<1x8x8x128xbf16>,
    return
  }
  func.func @transform_0(%arg0: i32, %arg1: i32) -> (i32, i32, i32, i32) {
    %c0_i32 = arith.constant 0 : i32
    %c0_i32_0 = arith.constant 0 : i32
    %c0_i32_1 = arith.constant 0 : i32
    return %arg0, %arg1, %c0_i32, %c0_i32_0 : i32, i32, i32, i32
  }
  func.func @transform_1(%arg0: i32, %arg1: i32) -> (i32, i32, i32, i32) {
    %c0_i32 = arith.constant 0 : i32
    %c0_i32_0 = arith.constant 0 : i32
    %c0_i32_1 = arith.constant 0 : i32
    return %arg0, %arg1, %c0_i32, %c0_i32_0 : i32, i32, i32, i32
  }
  func.func @transform_2(%arg0: i32, %arg1: i32) -> (i32, i32) {
    %c0_i32 = arith.constant 0 : i32
    %c0_i32_0 = arith.constant 0 : i32
    %c0_i32_1 = arith.constant 0 : i32
    return %c0_i32, %c0_i32_0 : i32, i32
  }
  func.func @transform_3(%arg0: i32, %arg1: i32) -> (i32, i32) {
    %c0_i32 = arith.constant 0 : i32
    %c0_i32_0 = arith.constant 0 : i32
    %c0_i32_1 = arith.constant 0 : i32
    return %c0_i32, %c0_i32_0 : i32, i32
  }
  func.func @transform_4(%arg0: i32, %arg1: i32) -> (i32, i32) {
    %c0_i32 = arith.constant 0 : i32
    %c0_i32_0 = arith.constant 0 : i32
    %c0_i32_1 = arith.constant 0 : i32
    return %c0_i32, %c0_i32_0 : i32, i32
  }
  func.func @transform_5(%arg0: i32, %arg1: i32) -> (i32, i32) {
    %c0_i32 = arith.constant 0 : i32
    %c0_i32_0 = arith.constant 0 : i32
    %c0_i32_1 = arith.constant 0 : i32
    return %c0_i32, %c0_i32_0 : i32, i32
  }
  func.func @transform_6(%arg0: i32, %arg1: i32) -> (i32, i32) {
    %c0_i32 = arith.constant 0 : i32
    %c0_i32_0 = arith.constant 0 : i32
    %c0_i32_1 = arith.constant 0 : i32
    return %c0_i32, %c0_i32_0 : i32, i32
  }
  func.func @transform_7(%arg0: i32, %arg1: i32) -> (i32, i32) {
    %c0_i32 = arith.constant 0 : i32
    %c0_i32_0 = arith.constant 0 : i32
    %c0_i32_1 = arith.constant 0 : i32
    return %c0_i32, %c0_i32_0 : i32, i32
  }
  func.func @transform_8(%arg0: i32, %arg1: i32) -> (i32, i32, i32, i32) {
    %c0_i32 = arith.constant 0 : i32
    %c0_i32_0 = arith.constant 0 : i32
    %c0_i32_1 = arith.constant 0 : i32
    return %arg0, %arg1, %c0_i32, %c0_i32_0 : i32, i32, i32, i32
  }
  func.func @transform_9(%arg0: i32, %arg1: i32) -> (i32, i32, i32, i32) {
    %c0_i32 = arith.constant 0 : i32
    %c0_i32_0 = arith.constant 0 : i32
    %c0_i32_1 = arith.constant 0 : i32
    return %arg0, %arg1, %c0_i32, %c0_i32_0 : i32, i32, i32, i32
  }
}

module attributes {stable_mosaic.version = 11 : i64} {
  func.func @_conv2_kernel(%arg0: i32, %arg1: i32, %arg2: memref<1x8x8x128xbf16, #tpu.memory_space<vmem>>, %arg3: memref<1x1x8x128xbf16, #tpu.memory_space<vmem>>, %arg4: memref<1x1x8x128xbf16, #tpu.memory_space<vmem>>, %arg5: memref<1x8x8x128xbf16, #tpu.memory_space<vmem>>, %arg6: memref<9x128x128xbf16, #tpu.memory_space<vmem>>, %arg7: memref<128x128xbf16, #tpu.memory_space<vmem>>, %arg8: memref<8x128xf32, #tpu.memory_space<vmem>>, %arg9: memref<1x8x8x128xf32, #tpu.memory_space<vmem>>, %arg10: memref<10x10x128xbf16, #tpu.memory_space<vmem>>) attributes {dimension_semantics = [#tpu.dimension_semantics<parallel>, #tpu.dimension_semantics<parallel>], iteration_bounds = array<i64: 2, 1>, scalar_prefetch = 0 : i64, scratch_operands = 1 : i64, tpu.core_type = #tpu.core_type<tc>, window_params = [{transform_indices = @transform_0, window_bounds = array<i64: 1, 8, 8, 128>}, {transform_indices = @transform_1, window_bounds = array<i64: 1, 1, 8, 128>}, {transform_indices = @transform_2, window_bounds = array<i64: 1, 1, 8, 128>}, {transform_indices = @transform_3, window_bounds = array<i64: 1, 8, 8, 128>}, {pipeline_mode = #tpu.pipeline_mode<synchronous>, transform_indices = @transform_4, window_bounds = array<i64: 9, 128, 128>}, {pipeline_mode = #tpu.pipeline_mode<synchronous>, transform_indices = @transform_5, window_bounds = array<i64: 128, 128>}, {pipeline_mode = #tpu.pipeline_mode<synchronous>, transform_indices = @transform_6, window_bounds = array<i64: 8, 128>}, {transform_indices = @transform_7, window_bounds = array<i64: 1, 8, 8, 128>}]} {
    %cst = arith.constant 0.000000e+00 : bf16
    %0 = vector.broadcast %cst : bf16 to vector<10x1x128xbf16>
    %c0 = arith.constant 0 : index
    %c0_0 = arith.constant 0 : index
    %c0_1 = arith.constant 0 : index
    %1 = vector.load %arg10[%c0, %c0_0, %c0_1] : memref<10x10x128xbf16, #tpu.memory_space<vmem>>, vector<10x1x128xbf16>
    tpu.vector_store %arg10[%c0, %c0_0, %c0_1], %0 {strides = array<i32>} : memref<10x10x128xbf16, #tpu.memory_space<vmem>>, vector<10x1x128xbf16>,
    %c0_2 = arith.constant 0 : index
    %c9 = arith.constant 9 : index
    %c0_3 = arith.constant 0 : index
    %2 = vector.load %arg10[%c0_2, %c9, %c0_3] : memref<10x10x128xbf16, #tpu.memory_space<vmem>>, vector<10x1x128xbf16>
    tpu.vector_store %arg10[%c0_2, %c9, %c0_3], %0 {strides = array<i32>} : memref<10x10x128xbf16, #tpu.memory_space<vmem>>, vector<10x1x128xbf16>,
    %c0_4 = arith.constant 0 : index
    %c0_5 = arith.constant 0 : index
    %c0_6 = arith.constant 0 : index
    %c0_7 = arith.constant 0 : index
    %3 = vector.load %arg3[%c0_4, %c0_5, %c0_6, %c0_7] : memref<1x1x8x128xbf16, #tpu.memory_space<vmem>>, vector<1x1x8x128xbf16>
    %4 = vector.shape_cast %3 : vector<1x1x8x128xbf16> to vector<1x8x128xbf16>
    %c0_i32 = arith.constant 0 : i32
    %5 = arith.cmpi sgt, %arg1, %c0_i32 : i32
    %6 = arith.extui %5 : i1 to i32
    %7 = arith.sitofp %6 : i32 to f32
    %8 = arith.truncf %7 : f32 to bf16
    %9 = vector.broadcast %8 : bf16 to vector<1x8x128xbf16>
    %10 = arith.mulf %4, %9 : vector<1x8x128xbf16>
    %c0_8 = arith.constant 0 : index
    %c0_9 = arith.constant 0 : index
    %c0_10 = arith.constant 0 : index
    %c0_11 = arith.constant 0 : index
    %11 = vector.load %arg4[%c0_8, %c0_9, %c0_10, %c0_11] : memref<1x1x8x128xbf16, #tpu.memory_space<vmem>>, vector<1x1x8x128xbf16>
    %12 = vector.shape_cast %11 : vector<1x1x8x128xbf16> to vector<1x8x128xbf16>
    %c0_i32_12 = arith.constant 0 : i32
    %13 = arith.cmpi slt, %arg1, %c0_i32_12 : i32
    %14 = arith.extui %13 : i1 to i32
    %15 = arith.sitofp %14 : i32 to f32
    %16 = arith.truncf %15 : f32 to bf16
    %17 = vector.broadcast %16 : bf16 to vector<1x8x128xbf16>
    %18 = arith.mulf %12, %17 : vector<1x8x128xbf16>
    %c0_13 = arith.constant 0 : index
    %c1 = arith.constant 1 : index
    %c0_14 = arith.constant 0 : index
    %19 = vector.load %arg10[%c0_13, %c1, %c0_14] : memref<10x10x128xbf16, #tpu.memory_space<vmem>>, vector<1x8x128xbf16>
    tpu.vector_store %arg10[%c0_13, %c1, %c0_14], %10 {strides = array<i32>} : memref<10x10x128xbf16, #tpu.memory_space<vmem>>, vector<1x8x128xbf16>,
    %c9_15 = arith.constant 9 : index
    %c1_16 = arith.constant 1 : index
    %c0_17 = arith.constant 0 : index
    %20 = vector.load %arg10[%c9_15, %c1_16, %c0_17] : memref<10x10x128xbf16, #tpu.memory_space<vmem>>, vector<1x8x128xbf16>
    tpu.vector_store %arg10[%c9_15, %c1_16, %c0_17], %18 {strides = array<i32>} : memref<10x10x128xbf16, #tpu.memory_space<vmem>>, vector<1x8x128xbf16>,
    %c0_18 = arith.constant 0 : index
    %c0_19 = arith.constant 0 : index
    %c0_20 = arith.constant 0 : index
    %c0_21 = arith.constant 0 : index
    %21 = vector.load %arg2[%c0_18, %c0_19, %c0_20, %c0_21] : memref<1x8x8x128xbf16, #tpu.memory_space<vmem>>, vector<1x8x8x128xbf16>
    %22 = vector.shape_cast %21 : vector<1x8x8x128xbf16> to vector<8x8x128xbf16>
    %c1_22 = arith.constant 1 : index
    %c1_23 = arith.constant 1 : index
    %c0_24 = arith.constant 0 : index
    %23 = vector.load %arg10[%c1_22, %c1_23, %c0_24] : memref<10x10x128xbf16, #tpu.memory_space<vmem>>, vector<8x8x128xbf16>
    tpu.vector_store %arg10[%c1_22, %c1_23, %c0_24], %22 {strides = array<i32>} : memref<10x10x128xbf16, #tpu.memory_space<vmem>>, vector<8x8x128xbf16>,
    %c0_25 = arith.constant 0 : index
    %c0_26 = arith.constant 0 : index
    %c0_27 = arith.constant 0 : index
    %24 = vector.load %arg10[%c0_25, %c0_26, %c0_27] : memref<10x10x128xbf16, #tpu.memory_space<vmem>>, vector<8x8x128xbf16>
    %25 = vector.shape_cast %24 : vector<8x8x128xbf16> to vector<64x128xbf16>
    %c0_28 = arith.constant 0 : index
    %c0_29 = arith.constant 0 : index
    %c0_30 = arith.constant 0 : index
    %26 = vector.load %arg6[%c0_28, %c0_29, %c0_30] : memref<9x128x128xbf16, #tpu.memory_space<vmem>>, vector<1x128x128xbf16>
    %27 = vector.shape_cast %26 : vector<1x128x128xbf16> to vector<128x128xbf16>
    %cst_31 = arith.constant dense<0.000000e+00> : vector<64x128xf32>
    %28 = tpu.matmul %25, %27, %cst_31 {dimension_numbers = #tpu.dot_dimension_numbers<[1], [0], [0], [1], [0, 0, 1, 1], [], []>} : vector<64x128xbf16>, vector<128x128xbf16>, vector<64x128xf32> -> vector<64x128xf32>
    %c0_32 = arith.constant 0 : index
    %c1_33 = arith.constant 1 : index
    %c0_34 = arith.constant 0 : index
    %29 = vector.load %arg10[%c0_32, %c1_33, %c0_34] : memref<10x10x128xbf16, #tpu.memory_space<vmem>>, vector<8x8x128xbf16>
    %30 = vector.shape_cast %29 : vector<8x8x128xbf16> to vector<64x128xbf16>
    %c1_35 = arith.constant 1 : index
    %c0_36 = arith.constant 0 : index
    %c0_37 = arith.constant 0 : index
    %31 = vector.load %arg6[%c1_35, %c0_36, %c0_37] : memref<9x128x128xbf16, #tpu.memory_space<vmem>>, vector<1x128x128xbf16>
    %32 = vector.shape_cast %31 : vector<1x128x128xbf16> to vector<128x128xbf16>
    %cst_38 = arith.constant dense<0.000000e+00> : vector<64x128xf32>
    %33 = tpu.matmul %30, %32, %cst_38 {dimension_numbers = #tpu.dot_dimension_numbers<[1], [0], [0], [1], [0, 0, 1, 1], [], []>} : vector<64x128xbf16>, vector<128x128xbf16>, vector<64x128xf32> -> vector<64x128xf32>
    %34 = arith.addf %28, %33 : vector<64x128xf32>
    %c0_39 = arith.constant 0 : index
    %c2 = arith.constant 2 : index
    %c0_40 = arith.constant 0 : index
    %35 = vector.load %arg10[%c0_39, %c2, %c0_40] : memref<10x10x128xbf16, #tpu.memory_space<vmem>>, vector<8x8x128xbf16>
    %36 = vector.shape_cast %35 : vector<8x8x128xbf16> to vector<64x128xbf16>
    %c2_41 = arith.constant 2 : index
    %c0_42 = arith.constant 0 : index
    %c0_43 = arith.constant 0 : index
    %37 = vector.load %arg6[%c2_41, %c0_42, %c0_43] : memref<9x128x128xbf16, #tpu.memory_space<vmem>>, vector<1x128x128xbf16>
    %38 = vector.shape_cast %37 : vector<1x128x128xbf16> to vector<128x128xbf16>
    %cst_44 = arith.constant dense<0.000000e+00> : vector<64x128xf32>
    %39 = tpu.matmul %36, %38, %cst_44 {dimension_numbers = #tpu.dot_dimension_numbers<[1], [0], [0], [1], [0, 0, 1, 1], [], []>} : vector<64x128xbf16>, vector<128x128xbf16>, vector<64x128xf32> -> vector<64x128xf32>
    %40 = arith.addf %34, %39 : vector<64x128xf32>
    %c1_45 = arith.constant 1 : index
    %c0_46 = arith.constant 0 : index
    %c0_47 = arith.constant 0 : index
    %41 = vector.load %arg10[%c1_45, %c0_46, %c0_47] : memref<10x10x128xbf16, #tpu.memory_space<vmem>>, vector<8x8x128xbf16>
    %42 = vector.shape_cast %41 : vector<8x8x128xbf16> to vector<64x128xbf16>
    %c3 = arith.constant 3 : index
    %c0_48 = arith.constant 0 : index
    %c0_49 = arith.constant 0 : index
    %43 = vector.load %arg6[%c3, %c0_48, %c0_49] : memref<9x128x128xbf16, #tpu.memory_space<vmem>>, vector<1x128x128xbf16>
    %44 = vector.shape_cast %43 : vector<1x128x128xbf16> to vector<128x128xbf16>
    %cst_50 = arith.constant dense<0.000000e+00> : vector<64x128xf32>
    %45 = tpu.matmul %42, %44, %cst_50 {dimension_numbers = #tpu.dot_dimension_numbers<[1], [0], [0], [1], [0, 0, 1, 1], [], []>} : vector<64x128xbf16>, vector<128x128xbf16>, vector<64x128xf32> -> vector<64x128xf32>
    %46 = arith.addf %40, %45 : vector<64x128xf32>
    %c1_51 = arith.constant 1 : index
    %c1_52 = arith.constant 1 : index
    %c0_53 = arith.constant 0 : index
    %47 = vector.load %arg10[%c1_51, %c1_52, %c0_53] : memref<10x10x128xbf16, #tpu.memory_space<vmem>>, vector<8x8x128xbf16>
    %48 = vector.shape_cast %47 : vector<8x8x128xbf16> to vector<64x128xbf16>
    %c4 = arith.constant 4 : index
    %c0_54 = arith.constant 0 : index
    %c0_55 = arith.constant 0 : index
    %49 = vector.load %arg6[%c4, %c0_54, %c0_55] : memref<9x128x128xbf16, #tpu.memory_space<vmem>>, vector<1x128x128xbf16>
    %50 = vector.shape_cast %49 : vector<1x128x128xbf16> to vector<128x128xbf16>
    %cst_56 = arith.constant dense<0.000000e+00> : vector<64x128xf32>
    %51 = tpu.matmul %48, %50, %cst_56 {dimension_numbers = #tpu.dot_dimension_numbers<[1], [0], [0], [1], [0, 0, 1, 1], [], []>} : vector<64x128xbf16>, vector<128x128xbf16>, vector<64x128xf32> -> vector<64x128xf32>
    %52 = arith.addf %46, %51 : vector<64x128xf32>
    %c1_57 = arith.constant 1 : index
    %c2_58 = arith.constant 2 : index
    %c0_59 = arith.constant 0 : index
    %53 = vector.load %arg10[%c1_57, %c2_58, %c0_59] : memref<10x10x128xbf16, #tpu.memory_space<vmem>>, vector<8x8x128xbf16>
    %54 = vector.shape_cast %53 : vector<8x8x128xbf16> to vector<64x128xbf16>
    %c5 = arith.constant 5 : index
    %c0_60 = arith.constant 0 : index
    %c0_61 = arith.constant 0 : index
    %55 = vector.load %arg6[%c5, %c0_60, %c0_61] : memref<9x128x128xbf16, #tpu.memory_space<vmem>>, vector<1x128x128xbf16>
    %56 = vector.shape_cast %55 : vector<1x128x128xbf16> to vector<128x128xbf16>
    %cst_62 = arith.constant dense<0.000000e+00> : vector<64x128xf32>
    %57 = tpu.matmul %54, %56, %cst_62 {dimension_numbers = #tpu.dot_dimension_numbers<[1], [0], [0], [1], [0, 0, 1, 1], [], []>} : vector<64x128xbf16>, vector<128x128xbf16>, vector<64x128xf32> -> vector<64x128xf32>
    %58 = arith.addf %52, %57 : vector<64x128xf32>
    %c2_63 = arith.constant 2 : index
    %c0_64 = arith.constant 0 : index
    %c0_65 = arith.constant 0 : index
    %59 = vector.load %arg10[%c2_63, %c0_64, %c0_65] : memref<10x10x128xbf16, #tpu.memory_space<vmem>>, vector<8x8x128xbf16>
    %60 = vector.shape_cast %59 : vector<8x8x128xbf16> to vector<64x128xbf16>
    %c6 = arith.constant 6 : index
    %c0_66 = arith.constant 0 : index
    %c0_67 = arith.constant 0 : index
    %61 = vector.load %arg6[%c6, %c0_66, %c0_67] : memref<9x128x128xbf16, #tpu.memory_space<vmem>>, vector<1x128x128xbf16>
    %62 = vector.shape_cast %61 : vector<1x128x128xbf16> to vector<128x128xbf16>
    %cst_68 = arith.constant dense<0.000000e+00> : vector<64x128xf32>
    %63 = tpu.matmul %60, %62, %cst_68 {dimension_numbers = #tpu.dot_dimension_numbers<[1], [0], [0], [1], [0, 0, 1, 1], [], []>} : vector<64x128xbf16>, vector<128x128xbf16>, vector<64x128xf32> -> vector<64x128xf32>
    %64 = arith.addf %58, %63 : vector<64x128xf32>
    %c2_69 = arith.constant 2 : index
    %c1_70 = arith.constant 1 : index
    %c0_71 = arith.constant 0 : index
    %65 = vector.load %arg10[%c2_69, %c1_70, %c0_71] : memref<10x10x128xbf16, #tpu.memory_space<vmem>>, vector<8x8x128xbf16>
    %66 = vector.shape_cast %65 : vector<8x8x128xbf16> to vector<64x128xbf16>
    %c7 = arith.constant 7 : index
    %c0_72 = arith.constant 0 : index
    %c0_73 = arith.constant 0 : index
    %67 = vector.load %arg6[%c7, %c0_72, %c0_73] : memref<9x128x128xbf16, #tpu.memory_space<vmem>>, vector<1x128x128xbf16>
    %68 = vector.shape_cast %67 : vector<1x128x128xbf16> to vector<128x128xbf16>
    %cst_74 = arith.constant dense<0.000000e+00> : vector<64x128xf32>
    %69 = tpu.matmul %66, %68, %cst_74 {dimension_numbers = #tpu.dot_dimension_numbers<[1], [0], [0], [1], [0, 0, 1, 1], [], []>} : vector<64x128xbf16>, vector<128x128xbf16>, vector<64x128xf32> -> vector<64x128xf32>
    %70 = arith.addf %64, %69 : vector<64x128xf32>
    %c2_75 = arith.constant 2 : index
    %c2_76 = arith.constant 2 : index
    %c0_77 = arith.constant 0 : index
    %71 = vector.load %arg10[%c2_75, %c2_76, %c0_77] : memref<10x10x128xbf16, #tpu.memory_space<vmem>>, vector<8x8x128xbf16>
    %72 = vector.shape_cast %71 : vector<8x8x128xbf16> to vector<64x128xbf16>
    %c8 = arith.constant 8 : index
    %c0_78 = arith.constant 0 : index
    %c0_79 = arith.constant 0 : index
    %73 = vector.load %arg6[%c8, %c0_78, %c0_79] : memref<9x128x128xbf16, #tpu.memory_space<vmem>>, vector<1x128x128xbf16>
    %74 = vector.shape_cast %73 : vector<1x128x128xbf16> to vector<128x128xbf16>
    %cst_80 = arith.constant dense<0.000000e+00> : vector<64x128xf32>
    %75 = tpu.matmul %72, %74, %cst_80 {dimension_numbers = #tpu.dot_dimension_numbers<[1], [0], [0], [1], [0, 0, 1, 1], [], []>} : vector<64x128xbf16>, vector<128x128xbf16>, vector<64x128xf32> -> vector<64x128xf32>
    %76 = arith.addf %70, %75 : vector<64x128xf32>
    %c0_81 = arith.constant 0 : index
    %c0_82 = arith.constant 0 : index
    %77 = vector.load %arg8[%c0_81, %c0_82] : memref<8x128xf32, #tpu.memory_space<vmem>>, vector<1x128xf32>
    %c1_83 = arith.constant 1 : index
    %c0_84 = arith.constant 0 : index
    %78 = vector.load %arg8[%c1_83, %c0_84] : memref<8x128xf32, #tpu.memory_space<vmem>>, vector<1x128xf32>
    %c2_85 = arith.constant 2 : index
    %c0_86 = arith.constant 0 : index
    %79 = vector.load %arg8[%c2_85, %c0_86] : memref<8x128xf32, #tpu.memory_space<vmem>>, vector<1x128xf32>
    %80 = vector.broadcast %77 : vector<1x128xf32> to vector<64x128xf32>
    %81 = arith.addf %76, %80 : vector<64x128xf32>
    %82 = arith.mulf %81, %81 : vector<64x128xf32>
    %83 = arith.truncf %82 : vector<64x128xf32> to vector<64x128xbf16>
    %c0_87 = arith.constant 0 : index
    %c0_88 = arith.constant 0 : index
    %84 = vector.load %arg7[%c0_87, %c0_88] : memref<128x128xbf16, #tpu.memory_space<vmem>>, vector<128x128xbf16>
    %cst_89 = arith.constant dense<0.000000e+00> : vector<64x128xf32>
    %85 = tpu.matmul %83, %84, %cst_89 {dimension_numbers = #tpu.dot_dimension_numbers<[1], [0], [0], [1], [0, 0, 1, 1], [], []>} : vector<64x128xbf16>, vector<128x128xbf16>, vector<64x128xf32> -> vector<64x128xf32>
    %86 = vector.broadcast %78 : vector<1x128xf32> to vector<64x128xf32>
    %87 = arith.addf %85, %86 : vector<64x128xf32>
    %88 = math.rsqrt %87 : vector<64x128xf32>
    %89 = arith.mulf %81, %88 : vector<64x128xf32>
    %c0_90 = arith.constant 0 : index
    %c0_91 = arith.constant 0 : index
    %c0_92 = arith.constant 0 : index
    %c0_93 = arith.constant 0 : index
    %90 = vector.load %arg5[%c0_90, %c0_91, %c0_92, %c0_93] : memref<1x8x8x128xbf16, #tpu.memory_space<vmem>>, vector<1x8x8x128xbf16>
    %91 = vector.shape_cast %90 : vector<1x8x8x128xbf16> to vector<64x128xbf16>
    %92 = arith.extf %91 : vector<64x128xbf16> to vector<64x128xf32>
    %93 = arith.addf %89, %92 : vector<64x128xf32>
    %cst_94 = arith.constant 0.000000e+00 : f32
    %94 = vector.broadcast %cst_94 : f32 to vector<64x128xf32>
    %95 = arith.cmpf oge, %93, %94 : vector<64x128xf32>
    %96 = vector.broadcast %79 : vector<1x128xf32> to vector<64x128xf32>
    %97 = arith.mulf %96, %93 : vector<64x128xf32>
    %98 = arith.select %95, %93, %97 : vector<64x128xi1>, vector<64x128xf32>
    %99 = vector.shape_cast %98 : vector<64x128xf32> to vector<1x8x8x128xf32>
    %c0_95 = arith.constant 0 : index
    %c0_96 = arith.constant 0 : index
    %c0_97 = arith.constant 0 : index
    %c0_98 = arith.constant 0 : index
    %100 = vector.load %arg9[%c0_95, %c0_96, %c0_97, %c0_98] : memref<1x8x8x128xf32, #tpu.memory_space<vmem>>, vector<1x8x8x128xf32>
    tpu.vector_store %arg9[%c0_95, %c0_96, %c0_97, %c0_98], %99 {strides = array<i32>} : memref<1x8x8x128xf32, #tpu.memory_space<vmem>>, vector<1x8x8x128xf32>,
    return
  }
  func.func @transform_0(%arg0: i32, %arg1: i32) -> (i32, i32, i32, i32) {
    %c0_i32 = arith.constant 0 : i32
    %c0_i32_0 = arith.constant 0 : i32
    %c0_i32_1 = arith.constant 0 : i32
    return %arg0, %arg1, %c0_i32, %c0_i32_0 : i32, i32, i32, i32
  }
  func.func @transform_1(%arg0: i32, %arg1: i32) -> (i32, i32, i32, i32) {
    %c8_i32 = arith.constant 8 : i32
    %0 = arith.muli %arg1, %c8_i32 : i32
    %c1_i32 = arith.constant 1 : i32
    %1 = arith.subi %0, %c1_i32 : i32
    %c0_i32 = arith.constant 0 : i32
    %2 = arith.maxsi %1, %c0_i32 : i32
    %c0_i32_0 = arith.constant 0 : i32
    %c0_i32_1 = arith.constant 0 : i32
    %c0_i32_2 = arith.constant 0 : i32
    return %arg0, %2, %c0_i32_0, %c0_i32_1 : i32, i32, i32, i32
  }
  func.func @transform_2(%arg0: i32, %arg1: i32) -> (i32, i32, i32, i32) {
    %c1_i32 = arith.constant 1 : i32
    %0 = arith.addi %arg1, %c1_i32 : i32
    %c8_i32 = arith.constant 8 : i32
    %1 = arith.muli %0, %c8_i32 : i32
    %c7_i32 = arith.constant 7 : i32
    %2 = arith.minsi %1, %c7_i32 : i32
    %c0_i32 = arith.constant 0 : i32
    %c0_i32_0 = arith.constant 0 : i32
    %c0_i32_1 = arith.constant 0 : i32
    return %arg0, %2, %c0_i32, %c0_i32_0 : i32, i32, i32, i32
  }
  func.func @transform_3(%arg0: i32, %arg1: i32) -> (i32, i32, i32, i32) {
    %c0_i32 = arith.constant 0 : i32
    %c0_i32_0 = arith.constant 0 : i32
    %c0_i32_1 = arith.constant 0 : i32
    return %arg0, %arg1, %c0_i32, %c0_i32_0 : i32, i32, i32, i32
  }
  func.func @transform_4(%arg0: i32, %arg1: i32) -> (i32, i32, i32) {
    %c0_i32 = arith.constant 0 : i32
    %c0_i32_0 = arith.constant 0 : i32
    %c0_i32_1 = arith.constant 0 : i32
    %c0_i32_2 = arith.constant 0 : i32
    return %c0_i32, %c0_i32_0, %c0_i32_1 : i32, i32, i32
  }
  func.func @transform_5(%arg0: i32, %arg1: i32) -> (i32, i32) {
    %c0_i32 = arith.constant 0 : i32
    %c0_i32_0 = arith.constant 0 : i32
    %c0_i32_1 = arith.constant 0 : i32
    return %c0_i32, %c0_i32_0 : i32, i32
  }
  func.func @transform_6(%arg0: i32, %arg1: i32) -> (i32, i32) {
    %c0_i32 = arith.constant 0 : i32
    %c0_i32_0 = arith.constant 0 : i32
    %c0_i32_1 = arith.constant 0 : i32
    return %c0_i32, %c0_i32_0 : i32, i32
  }
  func.func @transform_7(%arg0: i32, %arg1: i32) -> (i32, i32, i32, i32) {
    %c0_i32 = arith.constant 0 : i32
    %c0_i32_0 = arith.constant 0 : i32
    %c0_i32_1 = arith.constant 0 : i32
    return %arg0, %arg1, %c0_i32, %c0_i32_0 : i32, i32, i32, i32
  }
}

</mosaic_0001>

<llo_original>
// kernel: rcb_forward.2
$region0: #{rcb_forward.2}
  #allocation0 [shape = 'u32[]', space=smem, size = 0x4, offset = 0x4, fixed_abs, tag = 'smem constant byte address 0x4 - core index']
  #allocation1 [shape = 'u32[72,128]{1,0:T(1,128)}', space=vmem, size = 0x9000, scoped, tag = 'internal scratch']
  %s0 = inlined_call_operand.vmem [shape: bf16[2,8,8,36], index: 0, kind: input, shape index: {}]
  %s1 = inlined_call_operand.vmem [shape: bf16[2,8,8,4], index: 1, kind: input, shape index: {}]
  %s2 = inlined_call_operand.vmem [shape: bf16[36,128], index: 2, kind: input, shape index: {}]
  %s3 = inlined_call_operand.vmem [shape: bf16[4,128], index: 3, kind: input, shape index: {}]
  %s4 = inlined_call_operand.vmem [shape: bf16[128,128], index: 4, kind: input, shape index: {}]
  %s5 = inlined_call_operand.vmem [shape: bf16[128,128], index: 5, kind: input, shape index: {}]
  %s6 = inlined_call_operand.vmem [shape: f32[8,128], index: 6, kind: input, shape index: {}]
  %s7 = inlined_call_operand.vmem [shape: f32[8,128], index: 7, kind: input, shape index: {}]
  %s8 = inlined_call_operand.vmem [shape: bf16[2,8,8,128], index: 8, kind: output, shape index: {0}]
  %s9 = inlined_call_operand.vmem [shape: bf16[2,8,8,128], index: 9, kind: output, shape index: {1}]
  %10 = xla_tuple %s8, %s9
  %s11 = sld [smem:[#allocation0]]
  $region73: #{rcb_forward.2} parent=0
    _
  %s13 = ssub.s32 1, %s11
  %s14 = scalar_select 0, %s13, %s11
  loop: start=0, step=1, limit=4
  $region2: #{rcb_forward.2} parent=0 // loop_pre_header
    _
  $region3: #{rcb_forward.2} parent=0 // loop_header
    %s16 = sphi 0, %s20
    %p17 = scmp.ge.s32.totalorder %s16, 4
    %s23 = sphi 0, %s35
    %s24 = sphi 0, %s31
    %s25 = sphi 0, %s23
    %s26 = sphi 0, %s24
    %s27 = sphi 0, %s25
    %s28 = sphi 0, %s26
    %s40 = sphi 0, %s42
    %s43 = sphi 0, %s40
    %s44 = sphi 0, %s43
    %s60 = sphi 0, %s44
    %s68 = sphi 0, %s70
    %s71 = sphi 0, %s68
    %s72 = sphi 0, %s71
    %s88 = sphi 0, %s72
    %s92 = sphi 0, %s92
    %s94 = sphi 0, %s92
    %s95 = sphi 0, %s94
    %s109 = sphi 0, %s95
    %s113 = sphi 0, %s113
    %s115 = sphi 0, %s113
    %s116 = sphi 0, %s115
    %s130 = sphi 0, %s116
    %s134 = sphi 0, %s134
    %s136 = sphi 0, %s134
    %s137 = sphi 0, %s136
    %s151 = sphi 0, %s137
    %s155 = sphi 0, %s155
    %s157 = sphi 0, %s155
    %s158 = sphi 0, %s157
    %s172 = sphi 0, %s158
    %s176 = sphi 0, %s176
    %s178 = sphi 0, %s176
    %s179 = sphi 0, %s178
    %s193 = sphi 0, %s179
    %s197 = sphi 0, %s197
    %s199 = sphi 0, %s197
    %s200 = sphi 0, %s199
    %s214 = sphi 0, %s200
    %s222 = sphi 0, %s224
    %s225 = sphi 0, %s222
    %s226 = sphi 0, %s225
    %s242 = sphi 0, %s226
    %s250 = sphi 0, %s252
    %s253 = sphi 0, %s250
    %s254 = sphi 0, %s253
    %s270 = sphi 0, %s254
  $region4: #{rcb_forward.2} parent=0 // loop_header_branch
    %19 = sbr.rel (%p17) target = $region8
  $region5: #{rcb_forward.2} parent=0 // loop_body
    %s21 = ssub.s32 %s16, 1
    %s22 = ssub.s32 %s16, 2
    %s29 = sadd.s32 1, %s24
    %p30 = scmp.ge.s32.totalorder %s29, 1
    %s31 = scalar_select %p30, 0, %s29
    %s32 = sadd.s32 1, %s23
    %s33 = scalar_select %p30, %s32, %s23
    %p34 = scmp.ge.s32.totalorder %s33, 2
    %s35 = scalar_select %p34, 0, %s33
    %s36 = ssub.s32 %s23, %s35
    %s37 = ssub.s32 %s24, %s31
    %s38 = sor.u32 %s36, %s37
    %p39 = scmp.eq.s32.totalorder %s38, 0
    %s41 = sadd.s32 %s40, 1
    %s42 = scalar_select %p39, %s40, %s41
    %p45 = pneg %p39
    %p46 = scmp.eq.s32.totalorder %s16, 1
    %p47 = por %p45, %p46
    %p48 = scmp.ne.s32.totalorder %s40, %s43
    %p49 = scmp.eq.s32.totalorder %s16, 0
    %p50 = por %p48, %p49
    %p51 = scmp.ne.s32.totalorder %s40, %s43
    %p52 = scmp.eq.s32.totalorder %s21, 1
    %p53 = por %p51, %p52
    %p54 = scmp.ne.s32.totalorder %s43, %s44
    %p55 = scmp.eq.s32.totalorder %s21, 0
    %p56 = por %p54, %p55
    %p57 = scmp.ne.s32.totalorder %s43, %s44
    %p58 = scmp.eq.s32.totalorder %s22, 1
    %p59 = por %p57, %p58
    %p61 = scmp.ne.s32.totalorder %s44, %s60
    %p62 = scmp.eq.s32.totalorder %s22, 0
    %p63 = por %p61, %p62
    %s64 = ssub.s32 %s23, %s35
    %s65 = ssub.s32 %s24, %s31
    %s66 = sor.u32 %s64, %s65
    %p67 = scmp.eq.s32.totalorder %s66, 0
    %s69 = sadd.s32 %s68, 1
    %s70 = scalar_select %p67, %s68, %s69
    %p73 = pneg %p67
    %p74 = scmp.eq.s32.totalorder %s16, 1
    %p75 = por %p73, %p74
    %p76 = scmp.ne.s32.totalorder %s68, %s71
    %p77 = scmp.eq.s32.totalorder %s16, 0
    %p78 = por %p76, %p77
    %p79 = scmp.ne.s32.totalorder %s68, %s71
    %p80 = scmp.eq.s32.totalorder %s21, 1
    %p81 = por %p79, %p80
    %p82 = scmp.ne.s32.totalorder %s71, %s72
    %p83 = scmp.eq.s32.totalorder %s21, 0
    %p84 = por %p82, %p83
    %p85 = scmp.ne.s32.totalorder %s71, %s72
    %p86 = scmp.eq.s32.totalorder %s22, 1
    %p87 = por %p85, %p86
    %p89 = scmp.ne.s32.totalorder %s72, %s88
    %p90 = scmp.eq.s32.totalorder %s22, 0
    %p91 = por %p89, %p90
    %s93 = sadd.s32 %s92, 1
    %p96 = scmp.eq.s32.totalorder %s16, 1
    %p97 = scmp.ne.s32.totalorder %s92, %s94
    %p98 = scmp.eq.s32.totalorder %s16, 0
    %p99 = por %p97, %p98
    %p100 = scmp.ne.s32.totalorder %s92, %s94
    %p101 = scmp.eq.s32.totalorder %s21, 1
    %p102 = por %p100, %p101
    %p103 = scmp.ne.s32.totalorder %s94, %s95
    %p104 = scmp.eq.s32.totalorder %s21, 0
    %p105 = por %p103, %p104
    %p106 = scmp.ne.s32.totalorder %s94, %s95
    %p107 = scmp.eq.s32.totalorder %s22, 1
    %p108 = por %p106, %p107
    %p110 = scmp.ne.s32.totalorder %s95, %s109
    %p111 = scmp.eq.s32.totalorder %s22, 0
    %p112 = por %p110, %p111
    %s114 = sadd.s32 %s113, 1
    %p117 = scmp.eq.s32.totalorder %s16, 1
    %p118 = scmp.ne.s32.totalorder %s113, %s115
    %p119 = scmp.eq.s32.totalorder %s16, 0
    %p120 = por %p118, %p119
    %p121 = scmp.ne.s32.totalorder %s113, %s115
    %p122 = scmp.eq.s32.totalorder %s21, 1
    %p123 = por %p121, %p122
    %p124 = scmp.ne.s32.totalorder %s115, %s116
    %p125 = scmp.eq.s32.totalorder %s21, 0
    %p126 = por %p124, %p125
    %p127 = scmp.ne.s32.totalorder %s115, %s116
    %p128 = scmp.eq.s32.totalorder %s22, 1
    %p129 = por %p127, %p128
    %p131 = scmp.ne.s32.totalorder %s116, %s130
    %p132 = scmp.eq.s32.totalorder %s22, 0
    %p133 = por %p131, %p132
    %s135 = sadd.s32 %s134, 1
    %p138 = scmp.eq.s32.totalorder %s16, 1
    %p139 = scmp.ne.s32.totalorder %s134, %s136
    %p140 = scmp.eq.s32.totalorder %s16, 0
    %p141 = por %p139, %p140
    %p142 = scmp.ne.s32.totalorder %s134, %s136
    %p143 = scmp.eq.s32.totalorder %s21, 1
    %p144 = por %p142, %p143
    %p145 = scmp.ne.s32.totalorder %s136, %s137
    %p146 = scmp.eq.s32.totalorder %s21, 0
    %p147 = por %p145, %p146
    %p148 = scmp.ne.s32.totalorder %s136, %s137
    %p149 = scmp.eq.s32.totalorder %s22, 1
    %p150 = por %p148, %p149
    %p152 = scmp.ne.s32.totalorder %s137, %s151
    %p153 = scmp.eq.s32.totalorder %s22, 0
    %p154 = por %p152, %p153
    %s156 = sadd.s32 %s155, 1
    %p159 = scmp.eq.s32.totalorder %s16, 1
    %p160 = scmp.ne.s32.totalorder %s155, %s157
    %p161 = scmp.eq.s32.totalorder %s16, 0
    %p162 = por %p160, %p161
    %p163 = scmp.ne.s32.totalorder %s155, %s157
    %p164 = scmp.eq.s32.totalorder %s21, 1
    %p165 = por %p163, %p164
    %p166 = scmp.ne.s32.totalorder %s157, %s158
    %p167 = scmp.eq.s32.totalorder %s21, 0
    %p168 = por %p166, %p167
    %p169 = scmp.ne.s32.totalorder %s157, %s158
    %p170 = scmp.eq.s32.totalorder %s22, 1
    %p171 = por %p169, %p170
    %p173 = scmp.ne.s32.totalorder %s158, %s172
    %p174 = scmp.eq.s32.totalorder %s22, 0
    %p175 = por %p173, %p174
    %s177 = sadd.s32 %s176, 1
    %p180 = scmp.eq.s32.totalorder %s16, 1
    %p181 = scmp.ne.s32.totalorder %s176, %s178
    %p182 = scmp.eq.s32.totalorder %s16, 0
    %p183 = por %p181, %p182
    %p184 = scmp.ne.s32.totalorder %s176, %s178
    %p185 = scmp.eq.s32.totalorder %s21, 1
    %p186 = por %p184, %p185
    %p187 = scmp.ne.s32.totalorder %s178, %s179
    %p188 = scmp.eq.s32.totalorder %s21, 0
    %p189 = por %p187, %p188
    %p190 = scmp.ne.s32.totalorder %s178, %s179
    %p191 = scmp.eq.s32.totalorder %s22, 1
    %p192 = por %p190, %p191
    %p194 = scmp.ne.s32.totalorder %s179, %s193
    %p195 = scmp.eq.s32.totalorder %s22, 0
    %p196 = por %p194, %p195
    %s198 = sadd.s32 %s197, 1
    %p201 = scmp.eq.s32.totalorder %s16, 1
    %p202 = scmp.ne.s32.totalorder %s197, %s199
    %p203 = scmp.eq.s32.totalorder %s16, 0
    %p204 = por %p202, %p203
    %p205 = scmp.ne.s32.totalorder %s197, %s199
    %p206 = scmp.eq.s32.totalorder %s21, 1
    %p207 = por %p205, %p206
    %p208 = scmp.ne.s32.totalorder %s199, %s200
    %p209 = scmp.eq.s32.totalorder %s21, 0
    %p210 = por %p208, %p209
    %p211 = scmp.ne.s32.totalorder %s199, %s200
    %p212 = scmp.eq.s32.totalorder %s22, 1
    %p213 = por %p211, %p212
    %p215 = scmp.ne.s32.totalorder %s200, %s214
    %p216 = scmp.eq.s32.totalorder %s22, 0
    %p217 = por %p215, %p216
    %s218 = ssub.s32 %s23, %s35
    %s219 = ssub.s32 %s24, %s31
    %s220 = sor.u32 %s218, %s219
    %p221 = scmp.eq.s32.totalorder %s220, 0
    %s223 = sadd.s32 %s222, 1
    %s224 = scalar_select %p221, %s222, %s223
    %p227 = pneg %p221
    %p228 = scmp.eq.s32.totalorder %s16, 1
    %p229 = por %p227, %p228
    %p230 = scmp.ne.s32.totalorder %s222, %s225
    %p231 = scmp.eq.s32.totalorder %s16, 0
    %p232 = por %p230, %p231
    %p233 = scmp.ne.s32.totalorder %s222, %s225
    %p234 = scmp.eq.s32.totalorder %s21, 1
    %p235 = por %p233, %p234
    %p236 = scmp.ne.s32.totalorder %s225, %s226
    %p237 = scmp.eq.s32.totalorder %s21, 0
    %p238 = por %p236, %p237
    %p239 = scmp.ne.s32.totalorder %s225, %s226
    %p240 = scmp.eq.s32.totalorder %s22, 1
    %p241 = por %p239, %p240
    %p243 = scmp.ne.s32.totalorder %s226, %s242
    %p244 = scmp.eq.s32.totalorder %s22, 0
    %p245 = por %p243, %p244
    %s246 = ssub.s32 %s23, %s35
    %s247 = ssub.s32 %s24, %s31
    %s248 = sor.u32 %s246, %s247
    %p249 = scmp.eq.s32.totalorder %s248, 0
    %s251 = sadd.s32 %s250, 1
    %s252 = scalar_select %p249, %s250, %s251
    %p255 = pneg %p249
    %p256 = scmp.eq.s32.totalorder %s16, 1
    %p257 = por %p255, %p256
    %p258 = scmp.ne.s32.totalorder %s250, %s253
    %p259 = scmp.eq.s32.totalorder %s16, 0
    %p260 = por %p258, %p259
    %p261 = scmp.ne.s32.totalorder %s250, %s253
    %p262 = scmp.eq.s32.totalorder %s21, 1
    %p263 = por %p261, %p262
    %p264 = scmp.ne.s32.totalorder %s253, %s254
    %p265 = scmp.eq.s32.totalorder %s21, 0
    %p266 = por %p264, %p265
    %p267 = scmp.ne.s32.totalorder %s253, %s254
    %p268 = scmp.eq.s32.totalorder %s22, 1
    %p269 = por %p267, %p268
    %p271 = scmp.ne.s32.totalorder %s254, %s270
    %p272 = scmp.eq.s32.totalorder %s22, 0
    %p273 = por %p271, %p272
    %p274 = scmp.le.s32.totalorder 1, %s16
    %p275 = scmp.lt.s32.totalorder %s16, 3
    %p276 = pnand %p274, %p275
    %p277 = pneg %p276
    // Predicated region
    $region9: #{rcb_forward.2} parent=5 // pred_check
      _
    $region10: #{rcb_forward.2} parent=5 // pred_check_branch
      %279 = sbr.rel (%p276) target = $region12
    $region11: #{rcb_forward.2} parent=5 // pred_region
      %s280 = ssub.s32 %s16, 1
      // Predicated region
      $region13: #{rcb_forward.2} parent=11 // pred_check
        %p281 = pneg %p105
      $region14: #{rcb_forward.2} parent=11 // pred_check_branch
        %283 = sbr.rel (%p281) target = $region16
      $region15: #{rcb_forward.2} parent=11 // pred_region
        _
      $region16: #{rcb_forward.2} parent=11 // pred_fallthru
        _
      // Predicated region
      $region17: #{rcb_forward.2} parent=11 // pred_check
        %p284 = pneg %p126
      $region18: #{rcb_forward.2} parent=11 // pred_check_branch
        %286 = sbr.rel (%p284) target = $region20
      $region19: #{rcb_forward.2} parent=11 // pred_region
        _
      $region20: #{rcb_forward.2} parent=11 // pred_fallthru
        _
      // Predicated region
      $region21: #{rcb_forward.2} parent=11 // pred_check
        %p287 = pneg %p147
      $region22: #{rcb_forward.2} parent=11 // pred_check_branch
        %289 = sbr.rel (%p287) target = $region24
      $region23: #{rcb_forward.2} parent=11 // pred_region
        _
      $region24: #{rcb_forward.2} parent=11 // pred_fallthru
        _
      // Predicated region
      $region25: #{rcb_forward.2} parent=11 // pred_check
        %p290 = pneg %p168
      $region26: #{rcb_forward.2} parent=11 // pred_check_branch
        %292 = sbr.rel (%p290) target = $region28
      $region27: #{rcb_forward.2} parent=11 // pred_region
        _
      $region28: #{rcb_forward.2} parent=11 // pred_fallthru
        _
      // Predicated region
      $region29: #{rcb_forward.2} parent=11 // pred_check
        %p293 = pneg %p189
      $region30: #{rcb_forward.2} parent=11 // pred_check_branch
        %295 = sbr.rel (%p293) target = $region32
      $region31: #{rcb_forward.2} parent=11 // pred_region
        _
      $region32: #{rcb_forward.2} parent=11 // pred_fallthru
        _
      // Predicated region
      $region33: #{rcb_forward.2} parent=11 // pred_check
        %p296 = pneg %p210
      $region34: #{rcb_forward.2} parent=11 // pred_check_branch
        %298 = sbr.rel (%p296) target = $region36
      $region35: #{rcb_forward.2} parent=11 // pred_region
        _
      $region36: #{rcb_forward.2} parent=11 // pred_fallthru
        _
    $region12: #{rcb_forward.2} parent=5 // pred_fallthru
      _
    %p299 = scmp.lt.s32.totalorder %s16, 2
    // Predicated region
    $region37: #{rcb_forward.2} parent=5 // pred_check
      %p300 = pneg %p299
    $region38: #{rcb_forward.2} parent=5 // pred_check_branch
      %302 = sbr.rel (%p300) target = $region40
    $region39: #{rcb_forward.2} parent=5 // pred_region
      // Predicated region
      $region41: #{rcb_forward.2} parent=39 // pred_check
        %p303 = pneg %p50
      $region42: #{rcb_forward.2} parent=39 // pred_check_branch
        %305 = sbr.rel (%p303) target = $region44
      $region43: #{rcb_forward.2} parent=39 // pred_region
        %s306 = smul.u32 8, %s24
        %p307 = scmp.lt.s32.totalorder %s23, 1
        %s308 = scalar_select %p307, %s23, 1
        %p309 = scmp.lt.s32.totalorder %s306, 7
        %s310 = scalar_select %p309, %s306, 7
        %s311 = smul.addr %s308, 8
        %s312 = sadd.s32 %s310, %s311
        %s313 = smul.addr %s312, 4
        %s314 = scalar_lea.vmem %s0, %s313
        %s315 = smul.u32 8, %s24
      $region44: #{rcb_forward.2} parent=39 // pred_fallthru
        _
      // Predicated region
      $region45: #{rcb_forward.2} parent=39 // pred_check
        %p316 = pneg %p78
      $region46: #{rcb_forward.2} parent=39 // pred_check_branch
        %318 = sbr.rel (%p316) target = $region48
      $region47: #{rcb_forward.2} parent=39 // pred_region
        %s319 = smul.u32 8, %s24
        %p320 = scmp.lt.s32.totalorder %s23, 1
        %s321 = scalar_select %p320, %s23, 1
        %p322 = scmp.lt.s32.totalorder %s319, 7
        %s323 = scalar_select %p322, %s319, 7
        %s324 = smul.addr %s321, 8
        %s325 = sadd.s32 %s323, %s324
        %s326 = smul.addr %s325, 4
        %s327 = scalar_lea.vmem %s1, %s326
        %s328 = smul.u32 8, %s24
      $region48: #{rcb_forward.2} parent=39 // pred_fallthru
        _
    $region40: #{rcb_forward.2} parent=5 // pred_fallthru
      _
    %p329 = scmp.le.s32.totalorder 1, %s16
    %p330 = scmp.lt.s32.totalorder %s16, 3
    %p331 = pnand %p329, %p330
    %p332 = pneg %p331
    // Predicated region
    $region49: #{rcb_forward.2} parent=5 // pred_check
      _
    $region50: #{rcb_forward.2} parent=5 // pred_check_branch
      %334 = sbr.rel (%p331) target = $region52
    $region51: #{rcb_forward.2} parent=5 // pred_region
      %s335 = ssub.s32 %s16, 1
      %s336 = smul.u32 8, %s26
      %p337 = scmp.lt.s32.totalorder %s25, 1
      %s338 = scalar_select %p337, %s25, 1
      %p339 = scmp.lt.s32.totalorder %s336, 7
      %s340 = scalar_select %p339, %s336, 7
      %s341 = smul.addr %s338, 8
      %s342 = sadd.s32 %s340, %s341
      %s343 = smul.addr %s342, 4
      %s344 = scalar_lea.vmem %s0, %s343
      %p345 = pneg %p56
      %p346 = pneg %p53
      %s347 = smul.u32 8, %s26
      %p348 = scmp.lt.s32.totalorder %s25, 1
      %s349 = scalar_select %p348, %s25, 1
      %p350 = scmp.lt.s32.totalorder %s347, 7
      %s351 = scalar_select %p350, %s347, 7
      %s352 = smul.addr %s349, 8
      %s353 = sadd.s32 %s351, %s352
      %s354 = smul.addr %s353, 4
      %s355 = scalar_lea.vmem %s1, %s354
      %p356 = pneg %p84
      %p357 = pneg %p81
      %p358 = pneg %p105
      %p359 = pneg %p102
      %p360 = pneg %p126
      %p361 = pneg %p123
      %p362 = pneg %p147
      %p363 = pneg %p144
      %p364 = pneg %p168
      %p365 = pneg %p165
      %p366 = pneg %p189
      %p367 = pneg %p186
      %p368 = pneg %p210
      %p369 = pneg %p207
      %p370 = pneg %p238
      %p371 = pneg %p235
      %s372 = smul.u32 8, %s26
      %p373 = scmp.lt.s32.totalorder %s25, 1
      %s374 = scalar_select %p373, %s25, 1
      %p375 = scmp.lt.s32.totalorder %s372, 7
      %s376 = scalar_select %p375, %s372, 7
      %s377 = smul.addr %s374, 8
      %s378 = sadd.s32 %s376, %s377
      %s379 = smul.addr %s378, 4
      %s380 = scalar_lea.vmem %s8, %s379
      %p381 = pneg %p266
      %p382 = pneg %p263
      %s383 = smul.u32 8, %s26
      %p384 = scmp.lt.s32.totalorder %s25, 1
      %s385 = scalar_select %p384, %s25, 1
      %p386 = scmp.lt.s32.totalorder %s383, 7
      %s387 = scalar_select %p386, %s383, 7
      %s388 = smul.addr %s385, 8
      %s389 = sadd.s32 %s387, %s388
      %s390 = smul.addr %s389, 4
      %s391 = scalar_lea.vmem %s9, %s390
      %s392 = smul.u32 8, %s26
      %p393 = scmp.lt.s32.totalorder %s25, 1
      %s394 = scalar_select %p393, %s25, 1
      %p395 = scmp.lt.s32.totalorder %s392, 7
      %s396 = scalar_select %p395, %s392, 7
      %s397 = smul.addr %s394, 8
      %s398 = sadd.s32 %s396, %s397
      %s399 = smul.addr %s398, 4
      %s400 = scalar_lea.vmem %s0, %s399
      %s401 = smul.u32 8, %s26
      %s402 = smul.u32 8, %s26
      %p403 = scmp.lt.s32.totalorder %s25, 1
      %s404 = scalar_select %p403, %s25, 1
      %p405 = scmp.lt.s32.totalorder %s402, 7
      %s406 = scalar_select %p405, %s402, 7
      %s407 = smul.addr %s404, 8
      %s408 = sadd.s32 %s406, %s407
      %s409 = smul.addr %s408, 4
      %s410 = scalar_lea.vmem %s1, %s409
      %s411 = smul.u32 8, %s26
      %s412 = smul.u32 8, %s26
      %p413 = scmp.lt.s32.totalorder %s25, 1
      %s414 = scalar_select %p413, %s25, 1
      %p415 = scmp.lt.s32.totalorder %s412, 7
      %s416 = scalar_select %p415, %s412, 7
      %s417 = smul.addr %s414, 8
      %s418 = sadd.s32 %s416, %s417
      %s419 = smul.addr %s418, 4
      %s420 = scalar_lea.vmem %s8, %s419
      %s421 = smul.u32 8, %s26
      %s422 = smul.u32 8, %s26
      %p423 = scmp.lt.s32.totalorder %s25, 1
      %s424 = scalar_select %p423, %s25, 1
      %p425 = scmp.lt.s32.totalorder %s422, 7
      %s426 = scalar_select %p425, %s422, 7
      %s427 = smul.addr %s424, 8
      %s428 = sadd.s32 %s426, %s427
      %s429 = smul.addr %s428, 4
      %s430 = scalar_lea.vmem %s9, %s429
      %s431 = smul.u32 8, %s26
      %v433 = vld [vmem:[%s6] sm:$0x1]
      %v434 = vld [vmem:[%s6 + $0x1] sm:$0x1]
      %v435 = vld [vmem:[%s6 + $0x2] sm:$0x1]
      %v436 = vld [vmem:[%s400] sm:$0xf]
      %v437 = vld [vmem:[%s400 + $0x4] sm:$0xf]
      %v438 = vld [vmem:[%s400 + $0x8] sm:$0xf]
      %v439 = vld [vmem:[%s400 + $0xc] sm:$0xf]
      %v440 = vld [vmem:[%s400 + $0x10] sm:$0xf]
      %v441 = vld [vmem:[%s400 + $0x14] sm:$0xf]
      %v442 = vld [vmem:[%s400 + $0x18] sm:$0xf]
      %v443 = vld [vmem:[%s400 + $0x1c] sm:$0xf]
      %v444 = vld [vmem:[%s2] sm:$0xf]
      %v445 = vld [vmem:[%s2 + $0x4] sm:$0xf]
      %v446 = vld [vmem:[%s2 + $0x8] sm:$0xf]
      %v447 = vld [vmem:[%s2 + $0xc] sm:$0xf]
      %v448 = vld [vmem:[%s2 + $0x10] sm:$0x3]
      %v449 = vperm.slane %v433, 0
      %v458 = vunpack.c.l.b16 %v436
      %v459 = vunpack.c.l.b16 %v437
      %v460 = vunpack.c.l.b16 %v438
      %v461 = vunpack.c.l.b16 %v439
      %v462 = vunpack.c.l.b16 %v440
      %v463 = vunpack.c.l.b16 %v441
      %v464 = vunpack.c.l.b16 %v442
      %v465 = vunpack.c.l.b16 %v443
      %v466 = vpack.c.b16 %v459, %v458
      %v467 = vpack.c.b16 %v461, %v460
      %v468 = vpack.c.b16 %v463, %v462
      %v469 = vpack.c.b16 %v465, %v464
      %v475 = vunpack.c.l.b16 %v444
      %v476 = vunpack.c.l.b16 %v445
      %v477 = vunpack.c.l.b16 %v446
      %v478 = vunpack.c.l.b16 %v447
      %v479 = vunpack.c.l.b16 %v448
      %v480 = vpack.c.b16 %v476, %v475
      %v481 = vpack.c.b16 %v478, %v477
      %v482 = vpack.c.b16 %v479, %v479
      %vm485 = vcmask 293888
      %v487 = vsel %vm485, %v466, 0
      %v490 = vsel %vm485, %v467, 0
      %v493 = vsel %vm485, %v468, 0
      %v496 = vsel %vm485, %v469, 0
      %vm498 = vcmask 1041408
      %v500 = vsel %vm498, %v482, 0
      %502 = vmatpush.bf16.msra.mxu0 0
      %503 = vmatpush.bf16.msra.mxu0 0
      %504 = vmatpush.bf16.msra.mxu0 0
      %505 = vmatpush.bf16.msra.mxu0 0
      %506 = vmatpush.bf16.msra.mxu0 0
      %507 = vmatpush.bf16.msra.mxu0 %v500
      %508 = vmatpush.bf16.msra.mxu0 %v481
      %509 = vmatpush.bf16.msra.mxu0 %v480
      %510 = vmatmul.bf16.gmra.mxu0 %v487
      %v511 = vpop.f32.mrf.mxu0
      %v512 = vadd.f32 %v449, %v511
      %v513 = vpop.f32.mrf.mxu0
      %v514 = vadd.f32 %v449, %v513
      %515 = vmatmul.bf16.gmra.mxu0 %v490
      %v516 = vpop.f32.mrf.mxu0
      %v517 = vadd.f32 %v449, %v516
      %v518 = vpop.f32.mrf.mxu0
      %v519 = vadd.f32 %v449, %v518
      %520 = vmatmul.bf16.gmra.mxu0 %v493
      %v521 = vpop.f32.mrf.mxu0
      %v522 = vadd.f32 %v449, %v521
      %v523 = vpop.f32.mrf.mxu0
      %v524 = vadd.f32 %v449, %v523
      %525 = vmatmul.bf16.gmra.mxu0 %v496
      %v526 = vpop.f32.mrf.mxu0
      %v527 = vadd.f32 %v449, %v526
      %v528 = vpop.f32.mrf.mxu0
      %v529 = vadd.f32 %v449, %v528
      %530 = vdwg.mxu0
      %v531 = vmul.f32 %v512, %v512
      %v532 = vmul.f32 %v514, %v514
      %v533 = vmul.f32 %v517, %v517
      %v534 = vmul.f32 %v519, %v519
      %v535 = vmul.f32 %v522, %v522
      %v536 = vmul.f32 %v524, %v524
      %v537 = vmul.f32 %v527, %v527
      %v538 = vmul.f32 %v529, %v529
      %v539 = vpack.c.bf16 %v532, %v531
      %v540 = vpack.c.bf16 %v534, %v533
      %v541 = vpack.c.bf16 %v536, %v535
      %v542 = vpack.c.bf16 %v538, %v537
      %v543 = vld [vmem:[%s4] sm:$0xf]
      %v544 = vld [vmem:[%s4 + $0x4] sm:$0xf]
      %v545 = vld [vmem:[%s4 + $0x8] sm:$0xf]
      %v546 = vld [vmem:[%s4 + $0xc] sm:$0xf]
      %v547 = vld [vmem:[%s4 + $0x10] sm:$0xf]
      %v548 = vld [vmem:[%s4 + $0x14] sm:$0xf]
      %v549 = vld [vmem:[%s4 + $0x18] sm:$0xf]
      %v550 = vld [vmem:[%s4 + $0x1c] sm:$0xf]
      %v551 = vld [vmem:[%s4 + $0x20] sm:$0xf]
      %v552 = vld [vmem:[%s4 + $0x24] sm:$0xf]
      %v553 = vld [vmem:[%s4 + $0x28] sm:$0xf]
      %v554 = vld [vmem:[%s4 + $0x2c] sm:$0xf]
      %v555 = vld [vmem:[%s4 + $0x30] sm:$0xf]
      %v556 = vld [vmem:[%s4 + $0x34] sm:$0xf]
      %v557 = vld [vmem:[%s4 + $0x38] sm:$0xf]
      %v558 = vld [vmem:[%s4 + $0x3c] sm:$0xf]
      %v559 = vperm.slane %v434, 0
      %v576 = vunpack.c.l.b16 %v543
      %v577 = vunpack.c.l.b16 %v544
      %v578 = vunpack.c.l.b16 %v545
      %v579 = vunpack.c.l.b16 %v546
      %v580 = vunpack.c.l.b16 %v547
      %v581 = vunpack.c.l.b16 %v548
      %v582 = vunpack.c.l.b16 %v549
      %v583 = vunpack.c.l.b16 %v550
      %v584 = vunpack.c.l.b16 %v551
      %v585 = vunpack.c.l.b16 %v552
      %v586 = vunpack.c.l.b16 %v553
      %v587 = vunpack.c.l.b16 %v554
      %v588 = vunpack.c.l.b16 %v555
      %v589 = vunpack.c.l.b16 %v556
      %v590 = vunpack.c.l.b16 %v557
      %v591 = vunpack.c.l.b16 %v558
      %v592 = vpack.c.b16 %v577, %v576
      %v593 = vpack.c.b16 %v579, %v578
      %v594 = vpack.c.b16 %v581, %v580
      %v595 = vpack.c.b16 %v583, %v582
      %v596 = vpack.c.b16 %v585, %v584
      %v597 = vpack.c.b16 %v587, %v586
      %v598 = vpack.c.b16 %v589, %v588
      %v599 = vpack.c.b16 %v591, %v590
      %608 = vmatpush.bf16.msra.mxu0 %v599
      %609 = vmatpush.bf16.msra.mxu0 %v598
      %610 = vmatpush.bf16.msra.mxu0 %v597
      %611 = vmatpush.bf16.msra.mxu0 %v596
      %612 = vmatpush.bf16.msra.mxu0 %v595
      %613 = vmatpush.bf16.msra.mxu0 %v594
      %614 = vmatpush.bf16.msra.mxu0 %v593
      %615 = vmatpush.bf16.msra.mxu0 %v592
      %616 = vmatmul.bf16.gmra.mxu0 %v539
      %v617 = vpop.f32.mrf.mxu0
      %v618 = vadd.f32 %v559, %v617
      %v619 = vpop.f32.mrf.mxu0
      %v620 = vadd.f32 %v559, %v619
      %621 = vmatmul.bf16.gmra.mxu0 %v540
      %v622 = vpop.f32.mrf.mxu0
      %v623 = vadd.f32 %v559, %v622
      %v624 = vpop.f32.mrf.mxu0
      %v625 = vadd.f32 %v559, %v624
      %626 = vmatmul.bf16.gmra.mxu0 %v541
      %v627 = vpop.f32.mrf.mxu0
      %v628 = vadd.f32 %v559, %v627
      %v629 = vpop.f32.mrf.mxu0
      %v630 = vadd.f32 %v559, %v629
      %631 = vmatmul.bf16.gmra.mxu0 %v542
      %v632 = vpop.f32.mrf.mxu0
      %v633 = vadd.f32 %v559, %v632
      %v634 = vpop.f32.mrf.mxu0
      %v635 = vadd.f32 %v559, %v634
      %636 = vdwg.mxu0
      %v637 = vrsqrt.pop %v618
      %v638 = vmul.f32 %v637, %v618
      %v639 = vmul.f32 %v638, %v637
      %v640 = vmul.f32 0.5, %v639
      %v641 = vsub.f32 1.5, %v640
      %v642 = vmul.f32 %v637, %v641
      %vm643 = vweird.f32 %v618
      %vm644 = vweird.f32 %v637
      %vm645 = vmor %vm643, %vm644
      %v646 = vsel %vm645, %v637, %v642
      %v647 = vrsqrt.pop %v620
      %v648 = vmul.f32 %v647, %v620
      %v649 = vmul.f32 %v648, %v647
      %v650 = vmul.f32 0.5, %v649
      %v651 = vsub.f32 1.5, %v650
      %v652 = vmul.f32 %v647, %v651
      %vm653 = vweird.f32 %v620
      %vm654 = vweird.f32 %v647
      %vm655 = vmor %vm653, %vm654
      %v656 = vsel %vm655, %v647, %v652
      %v657 = vrsqrt.pop %v623
      %v658 = vmul.f32 %v657, %v623
      %v659 = vmul.f32 %v658, %v657
      %v660 = vmul.f32 0.5, %v659
      %v661 = vsub.f32 1.5, %v660
      %v662 = vmul.f32 %v657, %v661
      %vm663 = vweird.f32 %v623
      %vm664 = vweird.f32 %v657
      %vm665 = vmor %vm663, %vm664
      %v666 = vsel %vm665, %v657, %v662
      %v667 = vrsqrt.pop %v625
      %v668 = vmul.f32 %v667, %v625
      %v669 = vmul.f32 %v668, %v667
      %v670 = vmul.f32 0.5, %v669
      %v671 = vsub.f32 1.5, %v670
      %v672 = vmul.f32 %v667, %v671
      %vm673 = vweird.f32 %v625
      %vm674 = vweird.f32 %v667
      %vm675 = vmor %vm673, %vm674
      %v676 = vsel %vm675, %v667, %v672
      %v677 = vrsqrt.pop %v628
      %v678 = vmul.f32 %v677, %v628
      %v679 = vmul.f32 %v678, %v677
      %v680 = vmul.f32 0.5, %v679
      %v681 = vsub.f32 1.5, %v680
      %v682 = vmul.f32 %v677, %v681
      %vm683 = vweird.f32 %v628
      %vm684 = vweird.f32 %v677
      %vm685 = vmor %vm683, %vm684
      %v686 = vsel %vm685, %v677, %v682
      %v687 = vrsqrt.pop %v630
      %v688 = vmul.f32 %v687, %v630
      %v689 = vmul.f32 %v688, %v687
      %v690 = vmul.f32 0.5, %v689
      %v691 = vsub.f32 1.5, %v690
      %v692 = vmul.f32 %v687, %v691
      %vm693 = vweird.f32 %v630
      %vm694 = vweird.f32 %v687
      %vm695 = vmor %vm693, %vm694
      %v696 = vsel %vm695, %v687, %v692
      %v697 = vrsqrt.pop %v633
      %v698 = vmul.f32 %v697, %v633
      %v699 = vmul.f32 %v698, %v697
      %v700 = vmul.f32 0.5, %v699
      %v701 = vsub.f32 1.5, %v700
      %v702 = vmul.f32 %v697, %v701
      %vm703 = vweird.f32 %v633
      %vm704 = vweird.f32 %v697
      %vm705 = vmor %vm703, %vm704
      %v706 = vsel %vm705, %v697, %v702
      %v707 = vrsqrt.pop %v635
      %v708 = vmul.f32 %v707, %v635
      %v709 = vmul.f32 %v708, %v707
      %v710 = vmul.f32 0.5, %v709
      %v711 = vsub.f32 1.5, %v710
      %v712 = vmul.f32 %v707, %v711
      %vm713 = vweird.f32 %v635
      %vm714 = vweird.f32 %v707
      %vm715 = vmor %vm713, %vm714
      %v716 = vsel %vm715, %v707, %v712
      %v717 = vmul.f32 %v512, %v646
      %v718 = vmul.f32 %v514, %v656
      %v719 = vmul.f32 %v517, %v666
      %v720 = vmul.f32 %v519, %v676
      %v721 = vmul.f32 %v522, %v686
      %v722 = vmul.f32 %v524, %v696
      %v723 = vmul.f32 %v527, %v706
      %v724 = vmul.f32 %v529, %v716
      %vm725 = vcmp.ge.f32.partialorder %v717, 0.0
      %vm726 = vcmp.ge.f32.partialorder %v718, 0.0
      %vm727 = vcmp.ge.f32.partialorder %v719, 0.0
      %vm728 = vcmp.ge.f32.partialorder %v720, 0.0
      %vm729 = vcmp.ge.f32.partialorder %v721, 0.0
      %vm730 = vcmp.ge.f32.partialorder %v722, 0.0
      %vm731 = vcmp.ge.f32.partialorder %v723, 0.0
      %vm732 = vcmp.ge.f32.partialorder %v724, 0.0
      %v733 = vperm.slane %v435, 0
      %v734 = vmul.f32 %v733, %v717
      %v735 = vmul.f32 %v733, %v718
      %v736 = vmul.f32 %v733, %v719
      %v737 = vmul.f32 %v733, %v720
      %v738 = vmul.f32 %v733, %v721
      %v739 = vmul.f32 %v733, %v722
      %v740 = vmul.f32 %v733, %v723
      %v741 = vmul.f32 %v733, %v724
      %v742 = vsel %vm725, %v717, %v734
      %v743 = vsel %vm726, %v718, %v735
      %v744 = vsel %vm727, %v719, %v736
      %v745 = vsel %vm728, %v720, %v737
      %v746 = vsel %vm729, %v721, %v738
      %v747 = vsel %vm730, %v722, %v739
      %v748 = vsel %vm731, %v723, %v740
      %v749 = vsel %vm732, %v724, %v741
      %v750 = vpack.c.bf16 %v742, %v742
      %v751 = vpack.c.bf16 %v743, %v743
      %v752 = vpack.c.bf16 %v744, %v744
      %v753 = vpack.c.bf16 %v745, %v745
      %v754 = vpack.c.bf16 %v746, %v746
      %v755 = vpack.c.bf16 %v747, %v747
      %v756 = vpack.c.bf16 %v748, %v748
      %v757 = vpack.c.bf16 %v749, %v749
      %758 = vst [vmem:[%s420] sm:$0xf] %v750
      %759 = vst [vmem:[%s420 + $0x4] sm:$0xf] %v751
      %760 = vst [vmem:[%s420 + $0x8] sm:$0xf] %v752
      %761 = vst [vmem:[%s420 + $0xc] sm:$0xf] %v753
      %762 = vst [vmem:[%s420 + $0x10] sm:$0xf] %v754
      %763 = vst [vmem:[%s420 + $0x14] sm:$0xf] %v755
      %764 = vst [vmem:[%s420 + $0x18] sm:$0xf] %v756
      %765 = vst [vmem:[%s420 + $0x1c] sm:$0xf] %v757
      %v766 = vld [vmem:[%s7] sm:$0x1]
      %v767 = vld [vmem:[%s7 + $0x1] sm:$0x1]
      %v768 = vld [vmem:[%s410] sm:$0xf]
      %v769 = vld [vmem:[%s410 + $0x4] sm:$0xf]
      %v770 = vld [vmem:[%s410 + $0x8] sm:$0xf]
      %v771 = vld [vmem:[%s410 + $0xc] sm:$0xf]
      %v772 = vld [vmem:[%s410 + $0x10] sm:$0xf]
      %v773 = vld [vmem:[%s410 + $0x14] sm:$0xf]
      %v774 = vld [vmem:[%s410 + $0x18] sm:$0xf]
      %v775 = vld [vmem:[%s410 + $0x1c] sm:$0xf]
      %v776 = vld [vmem:[%s3] sm:$0x3]
      %v777 = vperm.slane %v766, 0
      %v786 = vunpack.c.l.b16 %v768
      %v787 = vunpack.c.l.b16 %v769
      %v788 = vunpack.c.l.b16 %v770
      %v789 = vunpack.c.l.b16 %v771
      %v790 = vunpack.c.l.b16 %v772
      %v791 = vunpack.c.l.b16 %v773
      %v792 = vunpack.c.l.b16 %v774
      %v793 = vunpack.c.l.b16 %v775
      %v794 = vpack.c.b16 %v787, %v786
      %v795 = vpack.c.b16 %v789, %v788
      %v796 = vpack.c.b16 %v791, %v790
      %v797 = vpack.c.b16 %v793, %v792
      %vm798 = vcmask 31744
      %v800 = vsel %vm798, %v794, 0
      %v803 = vsel %vm798, %v795, 0
      %v806 = vsel %vm798, %v796, 0
      %v809 = vsel %vm798, %v797, 0
      %v812 = vsel %vm498, %v776, 0
      %814 = vmatpush.bf16.msra.mxu0 0
      %815 = vmatpush.bf16.msra.mxu0 0
      %816 = vmatpush.bf16.msra.mxu0 0
      %817 = vmatpush.bf16.msra.mxu0 0
      %818 = vmatpush.bf16.msra.mxu0 0
      %819 = vmatpush.bf16.msra.mxu0 0
      %820 = vmatpush.bf16.msra.mxu0 0
      %821 = vmatpush.bf16.msra.mxu0 %v812
      %822 = vmatmul.bf16.gmra.mxu0 %v800
      %v823 = vpop.f32.mrf.mxu0
      %v824 = vadd.f32 %v777, %v823
      %v825 = vpop.f32.mrf.mxu0
      %v826 = vadd.f32 %v777, %v825
      %827 = vmatmul.bf16.gmra.mxu0 %v803
      %v828 = vpop.f32.mrf.mxu0
      %v829 = vadd.f32 %v777, %v828
      %v830 = vpop.f32.mrf.mxu0
      %v831 = vadd.f32 %v777, %v830
      %832 = vmatmul.bf16.gmra.mxu0 %v806
      %v833 = vpop.f32.mrf.mxu0
      %v834 = vadd.f32 %v777, %v833
      %v835 = vpop.f32.mrf.mxu0
      %v836 = vadd.f32 %v777, %v835
      %837 = vmatmul.bf16.gmra.mxu0 %v809
      %v838 = vpop.f32.mrf.mxu0
      %v839 = vadd.f32 %v777, %v838
      %v840 = vpop.f32.mrf.mxu0
      %v841 = vadd.f32 %v777, %v840
      %842 = vdwg.mxu0
      %v843 = vmul.f32 %v824, %v824
      %v844 = vmul.f32 %v826, %v826
      %v845 = vmul.f32 %v829, %v829
      %v846 = vmul.f32 %v831, %v831
      %v847 = vmul.f32 %v834, %v834
      %v848 = vmul.f32 %v836, %v836
      %v849 = vmul.f32 %v839, %v839
      %v850 = vmul.f32 %v841, %v841
      %v851 = vpack.c.bf16 %v844, %v843
      %v852 = vpack.c.bf16 %v846, %v845
      %v853 = vpack.c.bf16 %v848, %v847
      %v854 = vpack.c.bf16 %v850, %v849
      %v855 = vld [vmem:[%s5] sm:$0xf]
      %v856 = vld [vmem:[%s5 + $0x4] sm:$0xf]
      %v857 = vld [vmem:[%s5 + $0x8] sm:$0xf]
      %v858 = vld [vmem:[%s5 + $0xc] sm:$0xf]
      %v859 = vld [vmem:[%s5 + $0x10] sm:$0xf]
      %v860 = vld [vmem:[%s5 + $0x14] sm:$0xf]
      %v861 = vld [vmem:[%s5 + $0x18] sm:$0xf]
      %v862 = vld [vmem:[%s5 + $0x1c] sm:$0xf]
      %v863 = vld [vmem:[%s5 + $0x20] sm:$0xf]
      %v864 = vld [vmem:[%s5 + $0x24] sm:$0xf]
      %v865 = vld [vmem:[%s5 + $0x28] sm:$0xf]
      %v866 = vld [vmem:[%s5 + $0x2c] sm:$0xf]
      %v867 = vld [vmem:[%s5 + $0x30] sm:$0xf]
      %v868 = vld [vmem:[%s5 + $0x34] sm:$0xf]
      %v869 = vld [vmem:[%s5 + $0x38] sm:$0xf]
      %v870 = vld [vmem:[%s5 + $0x3c] sm:$0xf]
      %v871 = vperm.slane %v767, 0
      %v888 = vunpack.c.l.b16 %v855
      %v889 = vunpack.c.l.b16 %v856
      %v890 = vunpack.c.l.b16 %v857
      %v891 = vunpack.c.l.b16 %v858
      %v892 = vunpack.c.l.b16 %v859
      %v893 = vunpack.c.l.b16 %v860
      %v894 = vunpack.c.l.b16 %v861
      %v895 = vunpack.c.l.b16 %v862
      %v896 = vunpack.c.l.b16 %v863
      %v897 = vunpack.c.l.b16 %v864
      %v898 = vunpack.c.l.b16 %v865
      %v899 = vunpack.c.l.b16 %v866
      %v900 = vunpack.c.l.b16 %v867
      %v901 = vunpack.c.l.b16 %v868
      %v902 = vunpack.c.l.b16 %v869
      %v903 = vunpack.c.l.b16 %v870
      %v904 = vpack.c.b16 %v889, %v888
      %v905 = vpack.c.b16 %v891, %v890
      %v906 = vpack.c.b16 %v893, %v892
      %v907 = vpack.c.b16 %v895, %v894
      %v908 = vpack.c.b16 %v897, %v896
      %v909 = vpack.c.b16 %v899, %v898
      %v910 = vpack.c.b16 %v901, %v900
      %v911 = vpack.c.b16 %v903, %v902
      %920 = vmatpush.bf16.msra.mxu0 %v911
      %921 = vmatpush.bf16.msra.mxu0 %v910
      %922 = vmatpush.bf16.msra.mxu0 %v909
      %923 = vmatpush.bf16.msra.mxu0 %v908
      %924 = vmatpush.bf16.msra.mxu0 %v907
      %925 = vmatpush.bf16.msra.mxu0 %v906
      %926 = vmatpush.bf16.msra.mxu0 %v905
      %927 = vmatpush.bf16.msra.mxu0 %v904
      %928 = vmatmul.bf16.gmra.mxu0 %v851
      %v929 = vpop.f32.mrf.mxu0
      %v930 = vadd.f32 %v871, %v929
      %v931 = vpop.f32.mrf.mxu0
      %v932 = vadd.f32 %v871, %v931
      %933 = vmatmul.bf16.gmra.mxu0 %v852
      %v934 = vpop.f32.mrf.mxu0
      %v935 = vadd.f32 %v871, %v934
      %v936 = vpop.f32.mrf.mxu0
      %v937 = vadd.f32 %v871, %v936
      %938 = vmatmul.bf16.gmra.mxu0 %v853
      %v939 = vpop.f32.mrf.mxu0
      %v940 = vadd.f32 %v871, %v939
      %v941 = vpop.f32.mrf.mxu0
      %v942 = vadd.f32 %v871, %v941
      %943 = vmatmul.bf16.gmra.mxu0 %v854
      %v944 = vpop.f32.mrf.mxu0
      %v945 = vadd.f32 %v871, %v944
      %v946 = vpop.f32.mrf.mxu0
      %v947 = vadd.f32 %v871, %v946
      %948 = vdwg.mxu0
      %v949 = vrsqrt.pop %v930
      %v950 = vmul.f32 %v949, %v930
      %v951 = vmul.f32 %v950, %v949
      %v952 = vmul.f32 0.5, %v951
      %v953 = vsub.f32 1.5, %v952
      %v954 = vmul.f32 %v949, %v953
      %vm955 = vweird.f32 %v930
      %vm956 = vweird.f32 %v949
      %vm957 = vmor %vm955, %vm956
      %v958 = vsel %vm957, %v949, %v954
      %v959 = vrsqrt.pop %v932
      %v960 = vmul.f32 %v959, %v932
      %v961 = vmul.f32 %v960, %v959
      %v962 = vmul.f32 0.5, %v961
      %v963 = vsub.f32 1.5, %v962
      %v964 = vmul.f32 %v959, %v963
      %vm965 = vweird.f32 %v932
      %vm966 = vweird.f32 %v959
      %vm967 = vmor %vm965, %vm966
      %v968 = vsel %vm967, %v959, %v964
      %v969 = vrsqrt.pop %v935
      %v970 = vmul.f32 %v969, %v935
      %v971 = vmul.f32 %v970, %v969
      %v972 = vmul.f32 0.5, %v971
      %v973 = vsub.f32 1.5, %v972
      %v974 = vmul.f32 %v969, %v973
      %vm975 = vweird.f32 %v935
      %vm976 = vweird.f32 %v969
      %vm977 = vmor %vm975, %vm976
      %v978 = vsel %vm977, %v969, %v974
      %v979 = vrsqrt.pop %v937
      %v980 = vmul.f32 %v979, %v937
      %v981 = vmul.f32 %v980, %v979
      %v982 = vmul.f32 0.5, %v981
      %v983 = vsub.f32 1.5, %v982
      %v984 = vmul.f32 %v979, %v983
      %vm985 = vweird.f32 %v937
      %vm986 = vweird.f32 %v979
      %vm987 = vmor %vm985, %vm986
      %v988 = vsel %vm987, %v979, %v984
      %v989 = vrsqrt.pop %v940
      %v990 = vmul.f32 %v989, %v940
      %v991 = vmul.f32 %v990, %v989
      %v992 = vmul.f32 0.5, %v991
      %v993 = vsub.f32 1.5, %v992
      %v994 = vmul.f32 %v989, %v993
      %vm995 = vweird.f32 %v940
      %vm996 = vweird.f32 %v989
      %vm997 = vmor %vm995, %vm996
      %v998 = vsel %vm997, %v989, %v994
      %v999 = vrsqrt.pop %v942
      %v1000 = vmul.f32 %v999, %v942
      %v1001 = vmul.f32 %v1000, %v999
      %v1002 = vmul.f32 0.5, %v1001
      %v1003 = vsub.f32 1.5, %v1002
      %v1004 = vmul.f32 %v999, %v1003
      %vm1005 = vweird.f32 %v942
      %vm1006 = vweird.f32 %v999
      %vm1007 = vmor %vm1005, %vm1006
      %v1008 = vsel %vm1007, %v999, %v1004
      %v1009 = vrsqrt.pop %v945
      %v1010 = vmul.f32 %v1009, %v945
      %v1011 = vmul.f32 %v1010, %v1009
      %v1012 = vmul.f32 0.5, %v1011
      %v1013 = vsub.f32 1.5, %v1012
      %v1014 = vmul.f32 %v1009, %v1013
      %vm1015 = vweird.f32 %v945
      %vm1016 = vweird.f32 %v1009
      %vm1017 = vmor %vm1015, %vm1016
      %v1018 = vsel %vm1017, %v1009, %v1014
      %v1019 = vrsqrt.pop %v947
      %v1020 = vmul.f32 %v1019, %v947
      %v1021 = vmul.f32 %v1020, %v1019
      %v1022 = vmul.f32 0.5, %v1021
      %v1023 = vsub.f32 1.5, %v1022
      %v1024 = vmul.f32 %v1019, %v1023
      %vm1025 = vweird.f32 %v947
      %vm1026 = vweird.f32 %v1019
      %vm1027 = vmor %vm1025, %vm1026
      %v1028 = vsel %vm1027, %v1019, %v1024
      %v1029 = vmul.f32 %v824, %v958
      %v1030 = vmul.f32 %v826, %v968
      %v1031 = vmul.f32 %v829, %v978
      %v1032 = vmul.f32 %v831, %v988
      %v1033 = vmul.f32 %v834, %v998
      %v1034 = vmul.f32 %v836, %v1008
      %v1035 = vmul.f32 %v839, %v1018
      %v1036 = vmul.f32 %v841, %v1028
      %v1037 = vpack.c.bf16 %v1029, %v1029
      %v1038 = vpack.c.bf16 %v1030, %v1030
      %v1039 = vpack.c.bf16 %v1031, %v1031
      %v1040 = vpack.c.bf16 %v1032, %v1032
      %v1041 = vpack.c.bf16 %v1033, %v1033
      %v1042 = vpack.c.bf16 %v1034, %v1034
      %v1043 = vpack.c.bf16 %v1035, %v1035
      %v1044 = vpack.c.bf16 %v1036, %v1036
      %1045 = vst [vmem:[%s430] sm:$0xf] %v1037
      %1046 = vst [vmem:[%s430 + $0x4] sm:$0xf] %v1038
      %1047 = vst [vmem:[%s430 + $0x8] sm:$0xf] %v1039
      %1048 = vst [vmem:[%s430 + $0xc] sm:$0xf] %v1040
      %1049 = vst [vmem:[%s430 + $0x10] sm:$0xf] %v1041
      %1050 = vst [vmem:[%s430 + $0x14] sm:$0xf] %v1042
      %1051 = vst [vmem:[%s430 + $0x18] sm:$0xf] %v1043
      %1052 = vst [vmem:[%s430 + $0x1c] sm:$0xf] %v1044
      %s1053 = smul.u32 8, %s26
      %p1054 = scmp.lt.s32.totalorder %s25, 1
      %s1055 = scalar_select %p1054, %s25, 1
      %p1056 = scmp.lt.s32.totalorder %s1053, 7
      %s1057 = scalar_select %p1056, %s1053, 7
      %s1058 = smul.addr %s1055, 8
      %s1059 = sadd.s32 %s1057, %s1058
      %s1060 = smul.addr %s1059, 4
      %s1061 = scalar_lea.vmem %s8, %s1060
      %s1062 = smul.u32 8, %s26
      %p1063 = scmp.lt.s32.totalorder %s25, 1
      %s1064 = scalar_select %p1063, %s25, 1
      %p1065 = scmp.lt.s32.totalorder %s1062, 7
      %s1066 = scalar_select %p1065, %s1062, 7
      %s1067 = smul.addr %s1064, 8
      %s1068 = sadd.s32 %s1066, %s1067
      %s1069 = smul.addr %s1068, 4
      %s1070 = scalar_lea.vmem %s9, %s1069
      // Predicated region
      $region53: #{rcb_forward.2} parent=51 // pred_check
        %p1071 = pneg %p235
      $region54: #{rcb_forward.2} parent=51 // pred_check_branch
        %1073 = sbr.rel (%p1071) target = $region56
      $region55: #{rcb_forward.2} parent=51 // pred_region
        %s1074 = smul.u32 8, %s26
      $region56: #{rcb_forward.2} parent=51 // pred_fallthru
        _
      // Predicated region
      $region57: #{rcb_forward.2} parent=51 // pred_check
        %p1075 = pneg %p263
      $region58: #{rcb_forward.2} parent=51 // pred_check_branch
        %1077 = sbr.rel (%p1075) target = $region60
      $region59: #{rcb_forward.2} parent=51 // pred_region
        %s1078 = smul.u32 8, %s26
      $region60: #{rcb_forward.2} parent=51 // pred_fallthru
        _
    $region52: #{rcb_forward.2} parent=5 // pred_fallthru
      _
    %p1079 = scmp.le.s32.totalorder 2, %s16
    // Predicated region
    $region61: #{rcb_forward.2} parent=5 // pred_check
      %p1080 = pneg %p1079
    $region62: #{rcb_forward.2} parent=5 // pred_check_branch
      %1082 = sbr.rel (%p1080) target = $region64
    $region63: #{rcb_forward.2} parent=5 // pred_region
      %s1083 = ssub.s32 %s16, 2
      // Predicated region
      $region65: #{rcb_forward.2} parent=63 // pred_check
        %p1084 = pneg %p241
      $region66: #{rcb_forward.2} parent=63 // pred_check_branch
        %1086 = sbr.rel (%p1084) target = $region68
      $region67: #{rcb_forward.2} parent=63 // pred_region
        %s1087 = smul.u32 8, %s28
        %p1088 = scmp.lt.s32.totalorder %s27, 1
        %s1089 = scalar_select %p1088, %s27, 1
        %p1090 = scmp.lt.s32.totalorder %s1087, 7
        %s1091 = scalar_select %p1090, %s1087, 7
        %s1092 = smul.addr %s1089, 8
        %s1093 = sadd.s32 %s1091, %s1092
        %s1094 = smul.addr %s1093, 4
        %s1095 = scalar_lea.vmem %s8, %s1094
      $region68: #{rcb_forward.2} parent=63 // pred_fallthru
        _
      // Predicated region
      $region69: #{rcb_forward.2} parent=63 // pred_check
        %p1096 = pneg %p269
      $region70: #{rcb_forward.2} parent=63 // pred_check_branch
        %1098 = sbr.rel (%p1096) target = $region72
      $region71: #{rcb_forward.2} parent=63 // pred_region
        %s1099 = smul.u32 8, %s28
        %p1100 = scmp.lt.s32.totalorder %s27, 1
        %s1101 = scalar_select %p1100, %s27, 1
        %p1102 = scmp.lt.s32.totalorder %s1099, 7
        %s1103 = scalar_select %p1102, %s1099, 7
        %s1104 = smul.addr %s1101, 8
        %s1105 = sadd.s32 %s1103, %s1104
        %s1106 = smul.addr %s1105, 4
        %s1107 = scalar_lea.vmem %s9, %s1106
      $region72: #{rcb_forward.2} parent=63 // pred_fallthru
        _
    $region64: #{rcb_forward.2} parent=5 // pred_fallthru
      _
  $region6: #{rcb_forward.2} parent=0 // loop_footer
    %s20 = sadd.s32 1, %s16
  $region7: #{rcb_forward.2} parent=0 // loop_footer_branch
    %15 = sbr.rel target = $region3
  $region8: #{rcb_forward.2} parent=0 // loop_exit
    _

// kernel: rcb_forward.3
$region0: #{rcb_forward.3}
  #allocation0 [shape = 'u32[]', space=smem, size = 0x4, offset = 0x4, fixed_abs, tag = 'smem constant byte address 0x4 - core index']
  #allocation1 [shape = 'u32[72,128]{1,0:T(1,128)}', space=vmem, size = 0x9000, scoped, tag = 'internal scratch']
  #allocation2 [shape = 'bf16[10,10,128]{2,1,0:T(8,128)(2,1)}', space=vmem, size = 0xa000, scoped, tag = 'scratch operand']
  %s0 = inlined_call_operand.vmem [shape: bf16[2,8,8,128], index: 0, kind: input, shape index: {}, may-alias: {0,1,2}]
  %s1 = inlined_call_operand.vmem [shape: bf16[2,8,8,128], index: 1, kind: input, shape index: {}, may-alias: {0,1,2}]
  %s2 = inlined_call_operand.vmem [shape: bf16[2,8,8,128], index: 2, kind: input, shape index: {}, may-alias: {0,1,2}]
  %s3 = inlined_call_operand.vmem [shape: bf16[2,8,8,128], index: 3, kind: input, shape index: {}]
  %s4 = inlined_call_operand.vmem [shape: bf16[9,128,128], index: 4, kind: input, shape index: {}]
  %s5 = inlined_call_operand.vmem [shape: bf16[128,128], index: 5, kind: input, shape index: {}]
  %s6 = inlined_call_operand.vmem [shape: f32[8,128], index: 6, kind: input, shape index: {}]
  %s7 = inlined_call_operand.vmem [shape: f32[2,8,8,128], index: 7, kind: output, shape index: {}]
  %s8 = sld [smem:[#allocation0]]
  $region61: #{rcb_forward.3} parent=0
    _
  %s10 = ssub.s32 1, %s8
  %s11 = scalar_select 0, %s10, %s8
  loop: start=0, step=1, limit=4
  $region2: #{rcb_forward.3} parent=0 // loop_pre_header
    _
  $region3: #{rcb_forward.3} parent=0 // loop_header
    %s13 = sphi 0, %s17
    %p14 = scmp.ge.s32.totalorder %s13, 4
    %s20 = sphi 0, %s32
    %s21 = sphi 0, %s28
    %s22 = sphi 0, %s20
    %s23 = sphi 0, %s21
    %s24 = sphi 0, %s22
    %s25 = sphi 0, %s23
    %s37 = sphi 0, %s39
    %s40 = sphi 0, %s37
    %s41 = sphi 0, %s40
    %s57 = sphi 0, %s41
    %s73 = sphi 0, %s75
    %s76 = sphi 0, %s73
    %s77 = sphi 0, %s76
    %s93 = sphi 0, %s77
    %s109 = sphi 0, %s111
    %s112 = sphi 0, %s109
    %s113 = sphi 0, %s112
    %s129 = sphi 0, %s113
    %s137 = sphi 0, %s139
    %s140 = sphi 0, %s137
    %s141 = sphi 0, %s140
    %s157 = sphi 0, %s141
    %s161 = sphi 0, %s161
    %s163 = sphi 0, %s161
    %s164 = sphi 0, %s163
    %s178 = sphi 0, %s164
    %s182 = sphi 0, %s182
    %s184 = sphi 0, %s182
    %s185 = sphi 0, %s184
    %s199 = sphi 0, %s185
    %s203 = sphi 0, %s203
    %s205 = sphi 0, %s203
    %s206 = sphi 0, %s205
    %s220 = sphi 0, %s206
    %s228 = sphi 0, %s230
    %s231 = sphi 0, %s228
    %s232 = sphi 0, %s231
    %s248 = sphi 0, %s232
  $region4: #{rcb_forward.3} parent=0 // loop_header_branch
    %16 = sbr.rel (%p14) target = $region8
  $region5: #{rcb_forward.3} parent=0 // loop_body
    %s18 = ssub.s32 %s13, 1
    %s19 = ssub.s32 %s13, 2
    %s26 = sadd.s32 1, %s21
    %p27 = scmp.ge.s32.totalorder %s26, 1
    %s28 = scalar_select %p27, 0, %s26
    %s29 = sadd.s32 1, %s20
    %s30 = scalar_select %p27, %s29, %s20
    %p31 = scmp.ge.s32.totalorder %s30, 2
    %s32 = scalar_select %p31, 0, %s30
    %s33 = ssub.s32 %s20, %s32
    %s34 = ssub.s32 %s21, %s28
    %s35 = sor.u32 %s33, %s34
    %p36 = scmp.eq.s32.totalorder %s35, 0
    %s38 = sadd.s32 %s37, 1
    %s39 = scalar_select %p36, %s37, %s38
    %p42 = pneg %p36
    %p43 = scmp.eq.s32.totalorder %s13, 1
    %p44 = por %p42, %p43
    %p45 = scmp.ne.s32.totalorder %s37, %s40
    %p46 = scmp.eq.s32.totalorder %s13, 0
    %p47 = por %p45, %p46
    %p48 = scmp.ne.s32.totalorder %s37, %s40
    %p49 = scmp.eq.s32.totalorder %s18, 1
    %p50 = por %p48, %p49
    %p51 = scmp.ne.s32.totalorder %s40, %s41
    %p52 = scmp.eq.s32.totalorder %s18, 0
    %p53 = por %p51, %p52
    %p54 = scmp.ne.s32.totalorder %s40, %s41
    %p55 = scmp.eq.s32.totalorder %s19, 1
    %p56 = por %p54, %p55
    %p58 = scmp.ne.s32.totalorder %s41, %s57
    %p59 = scmp.eq.s32.totalorder %s19, 0
    %p60 = por %p58, %p59
    %s61 = smul.u32 %s21, 8
    %s62 = ssub.s32 %s61, 1
    %p63 = scmp.gt.s32.totalorder %s62, 0
    %s64 = scalar_select %p63, %s62, 0
    %s65 = smul.u32 %s28, 8
    %s66 = ssub.s32 %s65, 1
    %p67 = scmp.gt.s32.totalorder %s66, 0
    %s68 = scalar_select %p67, %s66, 0
    %s69 = ssub.s32 %s20, %s32
    %s70 = ssub.s32 %s64, %s68
    %s71 = sor.u32 %s69, %s70
    %p72 = scmp.eq.s32.totalorder %s71, 0
    %s74 = sadd.s32 %s73, 1
    %s75 = scalar_select %p72, %s73, %s74
    %p78 = pneg %p72
    %p79 = scmp.eq.s32.totalorder %s13, 1
    %p80 = por %p78, %p79
    %p81 = scmp.ne.s32.totalorder %s73, %s76
    %p82 = scmp.eq.s32.totalorder %s13, 0
    %p83 = por %p81, %p82
    %p84 = scmp.ne.s32.totalorder %s73, %s76
    %p85 = scmp.eq.s32.totalorder %s18, 1
    %p86 = por %p84, %p85
    %p87 = scmp.ne.s32.totalorder %s76, %s77
    %p88 = scmp.eq.s32.totalorder %s18, 0
    %p89 = por %p87, %p88
    %p90 = scmp.ne.s32.totalorder %s76, %s77
    %p91 = scmp.eq.s32.totalorder %s19, 1
    %p92 = por %p90, %p91
    %p94 = scmp.ne.s32.totalorder %s77, %s93
    %p95 = scmp.eq.s32.totalorder %s19, 0
    %p96 = por %p94, %p95
    %s97 = sadd.s32 %s21, 1
    %s98 = smul.u32 %s97, 8
    %p99 = scmp.lt.s32.totalorder %s98, 7
    %s100 = scalar_select %p99, %s98, 7
    %s101 = sadd.s32 %s28, 1
    %s102 = smul.u32 %s101, 8
    %p103 = scmp.lt.s32.totalorder %s102, 7
    %s104 = scalar_select %p103, %s102, 7
    %s105 = ssub.s32 %s20, %s32
    %s106 = ssub.s32 %s100, %s104
    %s107 = sor.u32 %s105, %s106
    %p108 = scmp.eq.s32.totalorder %s107, 0
    %s110 = sadd.s32 %s109, 1
    %s111 = scalar_select %p108, %s109, %s110
    %p114 = pneg %p108
    %p115 = scmp.eq.s32.totalorder %s13, 1
    %p116 = por %p114, %p115
    %p117 = scmp.ne.s32.totalorder %s109, %s112
    %p118 = scmp.eq.s32.totalorder %s13, 0
    %p119 = por %p117, %p118
    %p120 = scmp.ne.s32.totalorder %s109, %s112
    %p121 = scmp.eq.s32.totalorder %s18, 1
    %p122 = por %p120, %p121
    %p123 = scmp.ne.s32.totalorder %s112, %s113
    %p124 = scmp.eq.s32.totalorder %s18, 0
    %p125 = por %p123, %p124
    %p126 = scmp.ne.s32.totalorder %s112, %s113
    %p127 = scmp.eq.s32.totalorder %s19, 1
    %p128 = por %p126, %p127
    %p130 = scmp.ne.s32.totalorder %s113, %s129
    %p131 = scmp.eq.s32.totalorder %s19, 0
    %p132 = por %p130, %p131
    %s133 = ssub.s32 %s20, %s32
    %s134 = ssub.s32 %s21, %s28
    %s135 = sor.u32 %s133, %s134
    %p136 = scmp.eq.s32.totalorder %s135, 0
    %s138 = sadd.s32 %s137, 1
    %s139 = scalar_select %p136, %s137, %s138
    %p142 = pneg %p136
    %p143 = scmp.eq.s32.totalorder %s13, 1
    %p144 = por %p142, %p143
    %p145 = scmp.ne.s32.totalorder %s137, %s140
    %p146 = scmp.eq.s32.totalorder %s13, 0
    %p147 = por %p145, %p146
    %p148 = scmp.ne.s32.totalorder %s137, %s140
    %p149 = scmp.eq.s32.totalorder %s18, 1
    %p150 = por %p148, %p149
    %p151 = scmp.ne.s32.totalorder %s140, %s141
    %p152 = scmp.eq.s32.totalorder %s18, 0
    %p153 = por %p151, %p152
    %p154 = scmp.ne.s32.totalorder %s140, %s141
    %p155 = scmp.eq.s32.totalorder %s19, 1
    %p156 = por %p154, %p155
    %p158 = scmp.ne.s32.totalorder %s141, %s157
    %p159 = scmp.eq.s32.totalorder %s19, 0
    %p160 = por %p158, %p159
    %s162 = sadd.s32 %s161, 1
    %p165 = scmp.eq.s32.totalorder %s13, 1
    %p166 = scmp.ne.s32.totalorder %s161, %s163
    %p167 = scmp.eq.s32.totalorder %s13, 0
    %p168 = por %p166, %p167
    %p169 = scmp.ne.s32.totalorder %s161, %s163
    %p170 = scmp.eq.s32.totalorder %s18, 1
    %p171 = por %p169, %p170
    %p172 = scmp.ne.s32.totalorder %s163, %s164
    %p173 = scmp.eq.s32.totalorder %s18, 0
    %p174 = por %p172, %p173
    %p175 = scmp.ne.s32.totalorder %s163, %s164
    %p176 = scmp.eq.s32.totalorder %s19, 1
    %p177 = por %p175, %p176
    %p179 = scmp.ne.s32.totalorder %s164, %s178
    %p180 = scmp.eq.s32.totalorder %s19, 0
    %p181 = por %p179, %p180
    %s183 = sadd.s32 %s182, 1
    %p186 = scmp.eq.s32.totalorder %s13, 1
    %p187 = scmp.ne.s32.totalorder %s182, %s184
    %p188 = scmp.eq.s32.totalorder %s13, 0
    %p189 = por %p187, %p188
    %p190 = scmp.ne.s32.totalorder %s182, %s184
    %p191 = scmp.eq.s32.totalorder %s18, 1
    %p192 = por %p190, %p191
    %p193 = scmp.ne.s32.totalorder %s184, %s185
    %p194 = scmp.eq.s32.totalorder %s18, 0
    %p195 = por %p193, %p194
    %p196 = scmp.ne.s32.totalorder %s184, %s185
    %p197 = scmp.eq.s32.totalorder %s19, 1
    %p198 = por %p196, %p197
    %p200 = scmp.ne.s32.totalorder %s185, %s199
    %p201 = scmp.eq.s32.totalorder %s19, 0
    %p202 = por %p200, %p201
    %s204 = sadd.s32 %s203, 1
    %p207 = scmp.eq.s32.totalorder %s13, 1
    %p208 = scmp.ne.s32.totalorder %s203, %s205
    %p209 = scmp.eq.s32.totalorder %s13, 0
    %p210 = por %p208, %p209
    %p211 = scmp.ne.s32.totalorder %s203, %s205
    %p212 = scmp.eq.s32.totalorder %s18, 1
    %p213 = por %p211, %p212
    %p214 = scmp.ne.s32.totalorder %s205, %s206
    %p215 = scmp.eq.s32.totalorder %s18, 0
    %p216 = por %p214, %p215
    %p217 = scmp.ne.s32.totalorder %s205, %s206
    %p218 = scmp.eq.s32.totalorder %s19, 1
    %p219 = por %p217, %p218
    %p221 = scmp.ne.s32.totalorder %s206, %s220
    %p222 = scmp.eq.s32.totalorder %s19, 0
    %p223 = por %p221, %p222
    %s224 = ssub.s32 %s20, %s32
    %s225 = ssub.s32 %s21, %s28
    %s226 = sor.u32 %s224, %s225
    %p227 = scmp.eq.s32.totalorder %s226, 0
    %s229 = sadd.s32 %s228, 1
    %s230 = scalar_select %p227, %s228, %s229
    %p233 = pneg %p227
    %p234 = scmp.eq.s32.totalorder %s13, 1
    %p235 = por %p233, %p234
    %p236 = scmp.ne.s32.totalorder %s228, %s231
    %p237 = scmp.eq.s32.totalorder %s13, 0
    %p238 = por %p236, %p237
    %p239 = scmp.ne.s32.totalorder %s228, %s231
    %p240 = scmp.eq.s32.totalorder %s18, 1
    %p241 = por %p239, %p240
    %p242 = scmp.ne.s32.totalorder %s231, %s232
    %p243 = scmp.eq.s32.totalorder %s18, 0
    %p244 = por %p242, %p243
    %p245 = scmp.ne.s32.totalorder %s231, %s232
    %p246 = scmp.eq.s32.totalorder %s19, 1
    %p247 = por %p245, %p246
    %p249 = scmp.ne.s32.totalorder %s232, %s248
    %p250 = scmp.eq.s32.totalorder %s19, 0
    %p251 = por %p249, %p250
    %p252 = scmp.le.s32.totalorder 1, %s13
    %p253 = scmp.lt.s32.totalorder %s13, 3
    %p254 = pnand %p252, %p253
    %p255 = pneg %p254
    // Predicated region
    $region9: #{rcb_forward.3} parent=5 // pred_check
      _
    $region10: #{rcb_forward.3} parent=5 // pred_check_branch
      %257 = sbr.rel (%p254) target = $region12
    $region11: #{rcb_forward.3} parent=5 // pred_region
      %s258 = ssub.s32 %s13, 1
      // Predicated region
      $region13: #{rcb_forward.3} parent=11 // pred_check
        %p259 = pneg %p174
      $region14: #{rcb_forward.3} parent=11 // pred_check_branch
        %261 = sbr.rel (%p259) target = $region16
      $region15: #{rcb_forward.3} parent=11 // pred_region
        _
      $region16: #{rcb_forward.3} parent=11 // pred_fallthru
        _
      // Predicated region
      $region17: #{rcb_forward.3} parent=11 // pred_check
        %p262 = pneg %p195
      $region18: #{rcb_forward.3} parent=11 // pred_check_branch
        %264 = sbr.rel (%p262) target = $region20
      $region19: #{rcb_forward.3} parent=11 // pred_region
        _
      $region20: #{rcb_forward.3} parent=11 // pred_fallthru
        _
      // Predicated region
      $region21: #{rcb_forward.3} parent=11 // pred_check
        %p265 = pneg %p216
      $region22: #{rcb_forward.3} parent=11 // pred_check_branch
        %267 = sbr.rel (%p265) target = $region24
      $region23: #{rcb_forward.3} parent=11 // pred_region
        _
      $region24: #{rcb_forward.3} parent=11 // pred_fallthru
        _
    $region12: #{rcb_forward.3} parent=5 // pred_fallthru
      _
    %p268 = scmp.lt.s32.totalorder %s13, 2
    // Predicated region
    $region25: #{rcb_forward.3} parent=5 // pred_check
      %p269 = pneg %p268
    $region26: #{rcb_forward.3} parent=5 // pred_check_branch
      %271 = sbr.rel (%p269) target = $region28
    $region27: #{rcb_forward.3} parent=5 // pred_region
      // Predicated region
      $region29: #{rcb_forward.3} parent=27 // pred_check
        %p272 = pneg %p47
      $region30: #{rcb_forward.3} parent=27 // pred_check_branch
        %274 = sbr.rel (%p272) target = $region32
      $region31: #{rcb_forward.3} parent=27 // pred_region
        %s275 = smul.u32 8, %s21
        %p276 = scmp.lt.s32.totalorder %s20, 1
        %s277 = scalar_select %p276, %s20, 1
        %p278 = scmp.lt.s32.totalorder %s275, 7
        %s279 = scalar_select %p278, %s275, 7
        %s280 = smul.addr %s277, 8
        %s281 = sadd.s32 %s279, %s280
        %s282 = smul.addr %s281, 4
        %s283 = scalar_lea.vmem %s0, %s282
        %s284 = smul.u32 8, %s21
      $region32: #{rcb_forward.3} parent=27 // pred_fallthru
        _
      // Predicated region
      $region33: #{rcb_forward.3} parent=27 // pred_check
        %p285 = pneg %p83
      $region34: #{rcb_forward.3} parent=27 // pred_check_branch
        %287 = sbr.rel (%p285) target = $region36
      $region35: #{rcb_forward.3} parent=27 // pred_region
        %s288 = smul.u32 %s21, 8
        %s289 = ssub.s32 %s288, 1
        %p290 = scmp.gt.s32.totalorder %s289, 0
        %s291 = scalar_select %p290, %s289, 0
        %p292 = scmp.lt.s32.totalorder %s20, 1
        %s293 = scalar_select %p292, %s20, 1
        %p294 = scmp.lt.s32.totalorder %s291, 7
        %s295 = scalar_select %p294, %s291, 7
        %s296 = smul.addr %s293, 8
        %s297 = sadd.s32 %s295, %s296
        %s298 = smul.addr %s297, 4
        %s299 = scalar_lea.vmem %s1, %s298
        %s300 = smul.u32 %s21, 8
        %s301 = ssub.s32 %s300, 1
        %p302 = scmp.gt.s32.totalorder %s301, 0
        %s303 = scalar_select %p302, %s301, 0
      $region36: #{rcb_forward.3} parent=27 // pred_fallthru
        _
      // Predicated region
      $region37: #{rcb_forward.3} parent=27 // pred_check
        %p304 = pneg %p119
      $region38: #{rcb_forward.3} parent=27 // pred_check_branch
        %306 = sbr.rel (%p304) target = $region40
      $region39: #{rcb_forward.3} parent=27 // pred_region
        %s307 = sadd.s32 %s21, 1
        %s308 = smul.u32 %s307, 8
        %p309 = scmp.lt.s32.totalorder %s308, 7
        %s310 = scalar_select %p309, %s308, 7
        %p311 = scmp.lt.s32.totalorder %s20, 1
        %s312 = scalar_select %p311, %s20, 1
        %p313 = scmp.lt.s32.totalorder %s310, 7
        %s314 = scalar_select %p313, %s310, 7
        %s315 = smul.addr %s312, 8
        %s316 = sadd.s32 %s314, %s315
        %s317 = smul.addr %s316, 4
        %s318 = scalar_lea.vmem %s2, %s317
        %s319 = sadd.s32 %s21, 1
        %s320 = smul.u32 %s319, 8
        %p321 = scmp.lt.s32.totalorder %s320, 7
        %s322 = scalar_select %p321, %s320, 7
      $region40: #{rcb_forward.3} parent=27 // pred_fallthru
        _
      // Predicated region
      $region41: #{rcb_forward.3} parent=27 // pred_check
        %p323 = pneg %p147
      $region42: #{rcb_forward.3} parent=27 // pred_check_branch
        %325 = sbr.rel (%p323) target = $region44
      $region43: #{rcb_forward.3} parent=27 // pred_region
        %s326 = smul.u32 8, %s21
        %p327 = scmp.lt.s32.totalorder %s20, 1
        %s328 = scalar_select %p327, %s20, 1
        %p329 = scmp.lt.s32.totalorder %s326, 7
        %s330 = scalar_select %p329, %s326, 7
        %s331 = smul.addr %s328, 8
        %s332 = sadd.s32 %s330, %s331
        %s333 = smul.addr %s332, 4
        %s334 = scalar_lea.vmem %s3, %s333
        %s335 = smul.u32 8, %s21
      $region44: #{rcb_forward.3} parent=27 // pred_fallthru
        _
    $region28: #{rcb_forward.3} parent=5 // pred_fallthru
      _
    %p336 = scmp.le.s32.totalorder 1, %s13
    %p337 = scmp.lt.s32.totalorder %s13, 3
    %p338 = pnand %p336, %p337
    %p339 = pneg %p338
    // Predicated region
    $region45: #{rcb_forward.3} parent=5 // pred_check
      _
    $region46: #{rcb_forward.3} parent=5 // pred_check_branch
      %341 = sbr.rel (%p338) target = $region48
    $region47: #{rcb_forward.3} parent=5 // pred_region
      %s342 = ssub.s32 %s13, 1
      %s343 = smul.u32 8, %s23
      %p344 = scmp.lt.s32.totalorder %s22, 1
      %s345 = scalar_select %p344, %s22, 1
      %p346 = scmp.lt.s32.totalorder %s343, 7
      %s347 = scalar_select %p346, %s343, 7
      %s348 = smul.addr %s345, 8
      %s349 = sadd.s32 %s347, %s348
      %s350 = smul.addr %s349, 4
      %s351 = scalar_lea.vmem %s0, %s350
      %p352 = pneg %p53
      %p353 = pneg %p50
      %s354 = smul.u32 %s23, 8
      %s355 = ssub.s32 %s354, 1
      %p356 = scmp.gt.s32.totalorder %s355, 0
      %s357 = scalar_select %p356, %s355, 0
      %p358 = scmp.lt.s32.totalorder %s22, 1
      %s359 = scalar_select %p358, %s22, 1
      %p360 = scmp.lt.s32.totalorder %s357, 7
      %s361 = scalar_select %p360, %s357, 7
      %s362 = smul.addr %s359, 8
      %s363 = sadd.s32 %s361, %s362
      %s364 = smul.addr %s363, 4
      %s365 = scalar_lea.vmem %s1, %s364
      %p366 = pneg %p89
      %p367 = pneg %p86
      %s368 = sadd.s32 %s23, 1
      %s369 = smul.u32 %s368, 8
      %p370 = scmp.lt.s32.totalorder %s369, 7
      %s371 = scalar_select %p370, %s369, 7
      %p372 = scmp.lt.s32.totalorder %s22, 1
      %s373 = scalar_select %p372, %s22, 1
      %p374 = scmp.lt.s32.totalorder %s371, 7
      %s375 = scalar_select %p374, %s371, 7
      %s376 = smul.addr %s373, 8
      %s377 = sadd.s32 %s375, %s376
      %s378 = smul.addr %s377, 4
      %s379 = scalar_lea.vmem %s2, %s378
      %p380 = pneg %p125
      %p381 = pneg %p122
      %s382 = smul.u32 8, %s23
      %p383 = scmp.lt.s32.totalorder %s22, 1
      %s384 = scalar_select %p383, %s22, 1
      %p385 = scmp.lt.s32.totalorder %s382, 7
      %s386 = scalar_select %p385, %s382, 7
      %s387 = smul.addr %s384, 8
      %s388 = sadd.s32 %s386, %s387
      %s389 = smul.addr %s388, 4
      %s390 = scalar_lea.vmem %s3, %s389
      %p391 = pneg %p153
      %p392 = pneg %p150
      %p393 = pneg %p174
      %p394 = pneg %p171
      %p395 = pneg %p195
      %p396 = pneg %p192
      %p397 = pneg %p216
      %p398 = pneg %p213
      %p399 = pneg %p244
      %p400 = pneg %p241
      %s401 = smul.u32 8, %s23
      %p402 = scmp.lt.s32.totalorder %s22, 1
      %s403 = scalar_select %p402, %s22, 1
      %p404 = scmp.lt.s32.totalorder %s401, 7
      %s405 = scalar_select %p404, %s401, 7
      %s406 = smul.addr %s403, 8
      %s407 = sadd.s32 %s405, %s406
      %s408 = smul.addr %s407, 8
      %s409 = scalar_lea.vmem %s7, %s408
      %s410 = smul.u32 8, %s23
      %p411 = scmp.lt.s32.totalorder %s22, 1
      %s412 = scalar_select %p411, %s22, 1
      %p413 = scmp.lt.s32.totalorder %s410, 7
      %s414 = scalar_select %p413, %s410, 7
      %s415 = smul.addr %s412, 8
      %s416 = sadd.s32 %s414, %s415
      %s417 = smul.addr %s416, 4
      %s418 = scalar_lea.vmem %s0, %s417
      %s419 = smul.u32 8, %s23
      %s420 = smul.u32 %s23, 8
      %s421 = ssub.s32 %s420, 1
      %p422 = scmp.gt.s32.totalorder %s421, 0
      %s423 = scalar_select %p422, %s421, 0
      %p424 = scmp.lt.s32.totalorder %s22, 1
      %s425 = scalar_select %p424, %s22, 1
      %p426 = scmp.lt.s32.totalorder %s423, 7
      %s427 = scalar_select %p426, %s423, 7
      %s428 = smul.addr %s425, 8
      %s429 = sadd.s32 %s427, %s428
      %s430 = smul.addr %s429, 4
      %s431 = scalar_lea.vmem %s1, %s430
      %s432 = smul.u32 %s23, 8
      %s433 = ssub.s32 %s432, 1
      %p434 = scmp.gt.s32.totalorder %s433, 0
      %s435 = scalar_select %p434, %s433, 0
      %s436 = sadd.s32 %s23, 1
      %s437 = smul.u32 %s436, 8
      %p438 = scmp.lt.s32.totalorder %s437, 7
      %s439 = scalar_select %p438, %s437, 7
      %p440 = scmp.lt.s32.totalorder %s22, 1
      %s441 = scalar_select %p440, %s22, 1
      %p442 = scmp.lt.s32.totalorder %s439, 7
      %s443 = scalar_select %p442, %s439, 7
      %s444 = smul.addr %s441, 8
      %s445 = sadd.s32 %s443, %s444
      %s446 = smul.addr %s445, 4
      %s447 = scalar_lea.vmem %s2, %s446
      %s448 = sadd.s32 %s23, 1
      %s449 = smul.u32 %s448, 8
      %p450 = scmp.lt.s32.totalorder %s449, 7
      %s451 = scalar_select %p450, %s449, 7
      %s452 = smul.u32 8, %s23
      %p453 = scmp.lt.s32.totalorder %s22, 1
      %s454 = scalar_select %p453, %s22, 1
      %p455 = scmp.lt.s32.totalorder %s452, 7
      %s456 = scalar_select %p455, %s452, 7
      %s457 = smul.addr %s454, 8
      %s458 = sadd.s32 %s456, %s457
      %s459 = smul.addr %s458, 4
      %s460 = scalar_lea.vmem %s3, %s459
      %s461 = smul.u32 8, %s23
      %s462 = smul.u32 8, %s23
      %p463 = scmp.lt.s32.totalorder %s22, 1
      %s464 = scalar_select %p463, %s22, 1
      %p465 = scmp.lt.s32.totalorder %s462, 7
      %s466 = scalar_select %p465, %s462, 7
      %s467 = smul.addr %s464, 8
      %s468 = sadd.s32 %s466, %s467
      %s469 = smul.addr %s468, 8
      %s470 = scalar_lea.vmem %s7, %s469
      %s471 = smul.u32 8, %s23
      %vm473 = vcmask 1040384
      %vm474 = vsmask.f32 256
      %vm475 = vmand %vm473, %vm474
      %v476 = vld [vmem:[#allocation2] sm:$0x1]
      %v477 = vsel %vm475, 0, %v476
      %478 = vst [vmem:[#allocation2] sm:$0x1] %v477
      %v479 = vld [vmem:[#allocation2 + $0x8] sm:$0x1]
      %v480 = vsel %vm475, 0, %v479
      %481 = vst [vmem:[#allocation2 + $0x8] sm:$0x1] %v480
      %v482 = vld [vmem:[#allocation2 + $0x10] sm:$0x1]
      %v483 = vsel %vm475, 0, %v482
      %484 = vst [vmem:[#allocation2 + $0x10] sm:$0x1] %v483
      %v485 = vld [vmem:[#allocation2 + $0x18] sm:$0x1]
      %v486 = vsel %vm475, 0, %v485
      %487 = vst [vmem:[#allocation2 + $0x18] sm:$0x1] %v486
      %v488 = vld [vmem:[#allocation2 + $0x20] sm:$0x1]
      %v489 = vsel %vm475, 0, %v488
      %490 = vst [vmem:[#allocation2 + $0x20] sm:$0x1] %v489
      %v491 = vld [vmem:[#allocation2 + $0x28] sm:$0x1]
      %v492 = vsel %vm475, 0, %v491
      %493 = vst [vmem:[#allocation2 + $0x28] sm:$0x1] %v492
      %v494 = vld [vmem:[#allocation2 + $0x30] sm:$0x1]
      %v495 = vsel %vm475, 0, %v494
      %496 = vst [vmem:[#allocation2 + $0x30] sm:$0x1] %v495
      %v497 = vld [vmem:[#allocation2 + $0x38] sm:$0x1]
      %v498 = vsel %vm475, 0, %v497
      %499 = vst [vmem:[#allocation2 + $0x38] sm:$0x1] %v498
      %v500 = vld [vmem:[#allocation2 + $0x40] sm:$0x1]
      %v501 = vsel %vm475, 0, %v500
      %502 = vst [vmem:[#allocation2 + $0x40] sm:$0x1] %v501
      %v503 = vld [vmem:[#allocation2 + $0x48] sm:$0x1]
      %v504 = vsel %vm475, 0, %v503
      %505 = vst [vmem:[#allocation2 + $0x48] sm:$0x1] %v504
      %vm506 = vsmask.f32 7938
      %vm507 = vmand %vm473, %vm506
      %v508 = vld [vmem:[#allocation2 + $0x4] sm:$0x1]
      %v509 = vsel %vm507, 0, %v508
      %510 = vst [vmem:[#allocation2 + $0x4] sm:$0x1] %v509
      %v511 = vld [vmem:[#allocation2 + $0xc] sm:$0x1]
      %v512 = vsel %vm507, 0, %v511
      %513 = vst [vmem:[#allocation2 + $0xc] sm:$0x1] %v512
      %v514 = vld [vmem:[#allocation2 + $0x14] sm:$0x1]
      %v515 = vsel %vm507, 0, %v514
      %516 = vst [vmem:[#allocation2 + $0x14] sm:$0x1] %v515
      %v517 = vld [vmem:[#allocation2 + $0x1c] sm:$0x1]
      %v518 = vsel %vm507, 0, %v517
      %519 = vst [vmem:[#allocation2 + $0x1c] sm:$0x1] %v518
      %v520 = vld [vmem:[#allocation2 + $0x24] sm:$0x1]
      %v521 = vsel %vm507, 0, %v520
      %522 = vst [vmem:[#allocation2 + $0x24] sm:$0x1] %v521
      %v523 = vld [vmem:[#allocation2 + $0x2c] sm:$0x1]
      %v524 = vsel %vm507, 0, %v523
      %525 = vst [vmem:[#allocation2 + $0x2c] sm:$0x1] %v524
      %v526 = vld [vmem:[#allocation2 + $0x34] sm:$0x1]
      %v527 = vsel %vm507, 0, %v526
      %528 = vst [vmem:[#allocation2 + $0x34] sm:$0x1] %v527
      %v529 = vld [vmem:[#allocation2 + $0x3c] sm:$0x1]
      %v530 = vsel %vm507, 0, %v529
      %531 = vst [vmem:[#allocation2 + $0x3c] sm:$0x1] %v530
      %v532 = vld [vmem:[#allocation2 + $0x44] sm:$0x1]
      %v533 = vsel %vm507, 0, %v532
      %534 = vst [vmem:[#allocation2 + $0x44] sm:$0x1] %v533
      %v535 = vld [vmem:[#allocation2 + $0x4c] sm:$0x1]
      %v536 = vsel %vm507, 0, %v535
      %537 = vst [vmem:[#allocation2 + $0x4c] sm:$0x1] %v536
      %v538 = vld [vmem:[%s431] sm:$0xf]
      %p539 = scmp.gt.s32.totalorder %s23, 0
      %s540 = scalar_select %p539, 1, 0
      %s541 = scvt.s32.f32 %s540
      %p543 = scmp.ne.f32.partialorder %s541, %s541
      %s544 = sshrl.u32 %s541, 16
      %s545 = sand.u32 %s544, 1
      %s546 = sadd.s32 32767, %s545
      %s547 = sadd.s32 %s541, %s546
      %s548 = sand.u32 %s547, 4294901760
      %s549 = scalar_select %p543, 2143289344, %s548
      %s551 = sshrl.u32 %s549, 16
      %s552 = sshll.u32 %s551, 16
      %s553 = sor.u32 %s551, %s552
      %v554 = vstv %s553
      %v556 = vunpack.c.l.bf16 %v538
      %v557 = vunpack.c.l.bf16 %v554
      %v558 = vmul.f32 %v556, %v557
      %v559 = vpack.c.bf16 %v558, %v558
      %v560 = vld [vmem:[%s447] sm:$0xf]
      %p561 = scmp.lt.s32.totalorder %s23, 0
      %s562 = scalar_select %p561, 1, 0
      %s563 = scvt.s32.f32 %s562
      %p565 = scmp.ne.f32.partialorder %s563, %s563
      %s566 = sshrl.u32 %s563, 16
      %s567 = sand.u32 %s566, 1
      %s568 = sadd.s32 32767, %s567
      %s569 = sadd.s32 %s563, %s568
      %s570 = sand.u32 %s569, 4294901760
      %s571 = scalar_select %p565, 2143289344, %s570
      %s573 = sshrl.u32 %s571, 16
      %s574 = sshll.u32 %s573, 16
      %s575 = sor.u32 %s573, %s574
      %v576 = vstv %s575
      %v578 = vunpack.c.l.bf16 %v560
      %v579 = vunpack.c.l.bf16 %v576
      %v580 = vmul.f32 %v578, %v579
      %v581 = vpack.c.bf16 %v580, %v580
      %v583 = vshrl.u32 %v559, 16
      %v585 = vrot.slane %v583, 7
      %v586 = vshll.u32 %v559, 16
      %v588 = vor.u32 %v585, %v586
      %v589 = vrot.slane %v585, 4
      %vm592 = vcmask 1043456
      %vm593 = vmand %vm592, %vm506
      %v594 = vld [vmem:[#allocation2] sm:$0xf]
      %v595 = vsel %vm593, %v588, %v594
      %596 = vst [vmem:[#allocation2] sm:$0xf] %v595
      %v597 = vld [vmem:[#allocation2 + $0x4] sm:$0x1]
      %v598 = vsel %vm475, %v589, %v597
      %599 = vst [vmem:[#allocation2 + $0x4] sm:$0x1] %v598
      %v601 = vshrl.u32 %v581, 16
      %v603 = vrot.slane %v601, 7
      %v604 = vshll.u32 %v581, 16
      %v606 = vor.u32 %v603, %v604
      %v607 = vrot.slane %v603, 4
      %s610 = scalar_lea.vmem [#allocation2], 72
      %v611 = vld [vmem:[%s610] sm:$0xf]
      %v612 = vsel %vm593, %v606, %v611
      %613 = vst [vmem:[%s610] sm:$0xf] %v612
      %v614 = vld [vmem:[%s610 + $0x4] sm:$0x1]
      %v615 = vsel %vm475, %v607, %v614
      %616 = vst [vmem:[%s610 + $0x4] sm:$0x1] %v615
      %v617 = vld [vmem:[%s418] sm:$0xf]
      %v618 = vld [vmem:[%s418 + $0x4] sm:$0xf]
      %v619 = vld [vmem:[%s418 + $0x8] sm:$0xf]
      %v620 = vld [vmem:[%s418 + $0xc] sm:$0xf]
      %v621 = vld [vmem:[%s418 + $0x10] sm:$0xf]
      %v622 = vld [vmem:[%s418 + $0x14] sm:$0xf]
      %v623 = vld [vmem:[%s418 + $0x18] sm:$0xf]
      %v624 = vld [vmem:[%s418 + $0x1c] sm:$0xf]
      %v626 = vshrl.u32 %v617, 16
      %v628 = vrot.slane %v626, 7
      %v629 = vshll.u32 %v617, 16
      %v631 = vor.u32 %v628, %v629
      %v632 = vrot.slane %v628, 4
      %v634 = vshrl.u32 %v618, 16
      %v636 = vrot.slane %v634, 7
      %v637 = vshll.u32 %v618, 16
      %v639 = vor.u32 %v636, %v637
      %v640 = vrot.slane %v636, 4
      %v642 = vshrl.u32 %v619, 16
      %v644 = vrot.slane %v642, 7
      %v645 = vshll.u32 %v619, 16
      %v647 = vor.u32 %v644, %v645
      %v648 = vrot.slane %v644, 4
      %v650 = vshrl.u32 %v620, 16
      %v652 = vrot.slane %v650, 7
      %v653 = vshll.u32 %v620, 16
      %v655 = vor.u32 %v652, %v653
      %v656 = vrot.slane %v652, 4
      %v658 = vshrl.u32 %v621, 16
      %v660 = vrot.slane %v658, 7
      %v661 = vshll.u32 %v621, 16
      %v663 = vor.u32 %v660, %v661
      %v664 = vrot.slane %v660, 4
      %v666 = vshrl.u32 %v622, 16
      %v668 = vrot.slane %v666, 7
      %v669 = vshll.u32 %v622, 16
      %v671 = vor.u32 %v668, %v669
      %v672 = vrot.slane %v668, 4
      %v674 = vshrl.u32 %v623, 16
      %v676 = vrot.slane %v674, 7
      %v677 = vshll.u32 %v623, 16
      %v679 = vor.u32 %v676, %v677
      %v680 = vrot.slane %v676, 4
      %v682 = vshrl.u32 %v624, 16
      %v684 = vrot.slane %v682, 7
      %v685 = vshll.u32 %v624, 16
      %v687 = vor.u32 %v684, %v685
      %v688 = vrot.slane %v684, 4
      %s705 = scalar_lea.vmem [#allocation2], 8
      %v706 = vld [vmem:[%s705] sm:$0xf]
      %v707 = vsel %vm593, %v631, %v706
      %708 = vst [vmem:[%s705] sm:$0xf] %v707
      %v709 = vld [vmem:[%s705 + $0x4] sm:$0x1]
      %v710 = vsel %vm475, %v632, %v709
      %711 = vst [vmem:[%s705 + $0x4] sm:$0x1] %v710
      %v712 = vld [vmem:[%s705 + $0x8] sm:$0xf]
      %v713 = vsel %vm593, %v639, %v712
      %714 = vst [vmem:[%s705 + $0x8] sm:$0xf] %v713
      %v715 = vld [vmem:[%s705 + $0xc] sm:$0x1]
      %v716 = vsel %vm475, %v640, %v715
      %717 = vst [vmem:[%s705 + $0xc] sm:$0x1] %v716
      %v718 = vld [vmem:[%s705 + $0x10] sm:$0xf]
      %v719 = vsel %vm593, %v647, %v718
      %720 = vst [vmem:[%s705 + $0x10] sm:$0xf] %v719
      %v721 = vld [vmem:[%s705 + $0x14] sm:$0x1]
      %v722 = vsel %vm475, %v648, %v721
      %723 = vst [vmem:[%s705 + $0x14] sm:$0x1] %v722
      %v724 = vld [vmem:[%s705 + $0x18] sm:$0xf]
      %v725 = vsel %vm593, %v655, %v724
      %726 = vst [vmem:[%s705 + $0x18] sm:$0xf] %v725
      %v727 = vld [vmem:[%s705 + $0x1c] sm:$0x1]
      %v728 = vsel %vm475, %v656, %v727
      %729 = vst [vmem:[%s705 + $0x1c] sm:$0x1] %v728
      %v730 = vld [vmem:[%s705 + $0x20] sm:$0xf]
      %v731 = vsel %vm593, %v663, %v730
      %732 = vst [vmem:[%s705 + $0x20] sm:$0xf] %v731
      %v733 = vld [vmem:[%s705 + $0x24] sm:$0x1]
      %v734 = vsel %vm475, %v664, %v733
      %735 = vst [vmem:[%s705 + $0x24] sm:$0x1] %v734
      %v736 = vld [vmem:[%s705 + $0x28] sm:$0xf]
      %v737 = vsel %vm593, %v671, %v736
      %738 = vst [vmem:[%s705 + $0x28] sm:$0xf] %v737
      %v739 = vld [vmem:[%s705 + $0x2c] sm:$0x1]
      %v740 = vsel %vm475, %v672, %v739
      %741 = vst [vmem:[%s705 + $0x2c] sm:$0x1] %v740
      %v742 = vld [vmem:[%s705 + $0x30] sm:$0xf]
      %v743 = vsel %vm593, %v679, %v742
      %744 = vst [vmem:[%s705 + $0x30] sm:$0xf] %v743
      %v745 = vld [vmem:[%s705 + $0x34] sm:$0x1]
      %v746 = vsel %vm475, %v680, %v745
      %747 = vst [vmem:[%s705 + $0x34] sm:$0x1] %v746
      %v748 = vld [vmem:[%s705 + $0x38] sm:$0xf]
      %v749 = vsel %vm593, %v687, %v748
      %750 = vst [vmem:[%s705 + $0x38] sm:$0xf] %v749
      %v751 = vld [vmem:[%s705 + $0x3c] sm:$0x1]
      %v752 = vsel %vm475, %v688, %v751
      %753 = vst [vmem:[%s705 + $0x3c] sm:$0x1] %v752
      %v754 = vld [vmem:[#allocation2] sm:$0xf]
      %v755 = vld [vmem:[#allocation2 + $0x8] sm:$0xf]
      %v756 = vld [vmem:[#allocation2 + $0x10] sm:$0xf]
      %v757 = vld [vmem:[#allocation2 + $0x18] sm:$0xf]
      %v758 = vld [vmem:[#allocation2 + $0x20] sm:$0xf]
      %v759 = vld [vmem:[#allocation2 + $0x28] sm:$0xf]
      %v760 = vld [vmem:[#allocation2 + $0x30] sm:$0xf]
      %v761 = vld [vmem:[#allocation2 + $0x38] sm:$0xf]
      %v762 = vld [vmem:[%s4] sm:$0xf]
      %v763 = vld [vmem:[%s4 + $0x4] sm:$0xf]
      %v764 = vld [vmem:[%s4 + $0x8] sm:$0xf]
      %v765 = vld [vmem:[%s4 + $0xc] sm:$0xf]
      %v766 = vld [vmem:[%s4 + $0x10] sm:$0xf]
      %v767 = vld [vmem:[%s4 + $0x14] sm:$0xf]
      %v768 = vld [vmem:[%s4 + $0x18] sm:$0xf]
      %v769 = vld [vmem:[%s4 + $0x1c] sm:$0xf]
      %v770 = vld [vmem:[%s4 + $0x20] sm:$0xf]
      %v771 = vld [vmem:[%s4 + $0x24] sm:$0xf]
      %v772 = vld [vmem:[%s4 + $0x28] sm:$0xf]
      %v773 = vld [vmem:[%s4 + $0x2c] sm:$0xf]
      %v774 = vld [vmem:[%s4 + $0x30] sm:$0xf]
      %v775 = vld [vmem:[%s4 + $0x34] sm:$0xf]
      %v776 = vld [vmem:[%s4 + $0x38] sm:$0xf]
      %v777 = vld [vmem:[%s4 + $0x3c] sm:$0xf]
      %v778 = vld [vmem:[#allocation2 + $0x4] sm:$0x1]
      %v779 = vld [vmem:[#allocation2 + $0xc] sm:$0x1]
      %v780 = vld [vmem:[#allocation2 + $0x14] sm:$0x1]
      %v781 = vld [vmem:[#allocation2 + $0x1c] sm:$0x1]
      %v782 = vld [vmem:[#allocation2 + $0x24] sm:$0x1]
      %v783 = vld [vmem:[#allocation2 + $0x2c] sm:$0x1]
      %v784 = vld [vmem:[#allocation2 + $0x34] sm:$0x1]
      %v785 = vld [vmem:[#allocation2 + $0x3c] sm:$0x1]
      %vm786 = vsmask.f32 3328
      %vm787 = vsmask.f32 7440
      %vm788 = vmor %vm786, %vm787
      %v790 = vshrl.u32 %v754, 16
      %v792 = vrot.slane %v790, 4
      %v793 = vshll.u32 %v754, 16
      %v795 = vrot.slane %v793, 5
      %v796 = vor.u32 %v792, %v795
      %v797 = vrot.slane %v796, 4
      %v799 = vshll.u32 %v778, 16
      %v801 = vrot.slane %v799, 5
      %v802 = vsel %vm788, %v797, %v801
      %v804 = vshrl.u32 %v755, 16
      %v806 = vrot.slane %v804, 4
      %v807 = vshll.u32 %v755, 16
      %v809 = vrot.slane %v807, 5
      %v810 = vor.u32 %v806, %v809
      %v811 = vrot.slane %v810, 4
      %v813 = vshll.u32 %v779, 16
      %v815 = vrot.slane %v813, 5
      %v816 = vsel %vm788, %v811, %v815
      %v818 = vshrl.u32 %v756, 16
      %v820 = vrot.slane %v818, 4
      %v821 = vshll.u32 %v756, 16
      %v823 = vrot.slane %v821, 5
      %v824 = vor.u32 %v820, %v823
      %v825 = vrot.slane %v824, 4
      %v827 = vshll.u32 %v780, 16
      %v829 = vrot.slane %v827, 5
      %v830 = vsel %vm788, %v825, %v829
      %v832 = vshrl.u32 %v757, 16
      %v834 = vrot.slane %v832, 4
      %v835 = vshll.u32 %v757, 16
      %v837 = vrot.slane %v835, 5
      %v838 = vor.u32 %v834, %v837
      %v839 = vrot.slane %v838, 4
      %v841 = vshll.u32 %v781, 16
      %v843 = vrot.slane %v841, 5
      %v844 = vsel %vm788, %v839, %v843
      %v846 = vshrl.u32 %v758, 16
      %v848 = vrot.slane %v846, 4
      %v849 = vshll.u32 %v758, 16
      %v851 = vrot.slane %v849, 5
      %v852 = vor.u32 %v848, %v851
      %v853 = vrot.slane %v852, 4
      %v855 = vshll.u32 %v782, 16
      %v857 = vrot.slane %v855, 5
      %v858 = vsel %vm788, %v853, %v857
      %v860 = vshrl.u32 %v759, 16
      %v862 = vrot.slane %v860, 4
      %v863 = vshll.u32 %v759, 16
      %v865 = vrot.slane %v863, 5
      %v866 = vor.u32 %v862, %v865
      %v867 = vrot.slane %v866, 4
      %v869 = vshll.u32 %v783, 16
      %v871 = vrot.slane %v869, 5
      %v872 = vsel %vm788, %v867, %v871
      %v874 = vshrl.u32 %v760, 16
      %v876 = vrot.slane %v874, 4
      %v877 = vshll.u32 %v760, 16
      %v879 = vrot.slane %v877, 5
      %v880 = vor.u32 %v876, %v879
      %v881 = vrot.slane %v880, 4
      %v883 = vshll.u32 %v784, 16
      %v885 = vrot.slane %v883, 5
      %v886 = vsel %vm788, %v881, %v885
      %v888 = vshrl.u32 %v761, 16
      %v890 = vrot.slane %v888, 4
      %v891 = vshll.u32 %v761, 16
      %v893 = vrot.slane %v891, 5
      %v894 = vor.u32 %v890, %v893
      %v895 = vrot.slane %v894, 4
      %v897 = vshll.u32 %v785, 16
      %v899 = vrot.slane %v897, 5
      %v900 = vsel %vm788, %v895, %v899
      %s901 = scalar_lea.vmem %s4, 64
      %v902 = vld [vmem:[%s901] sm:$0xf]
      %v903 = vld [vmem:[%s901 + $0x4] sm:$0xf]
      %v904 = vld [vmem:[%s901 + $0x8] sm:$0xf]
      %v905 = vld [vmem:[%s901 + $0xc] sm:$0xf]
      %v906 = vld [vmem:[%s901 + $0x10] sm:$0xf]
      %v907 = vld [vmem:[%s901 + $0x14] sm:$0xf]
      %v908 = vld [vmem:[%s901 + $0x18] sm:$0xf]
      %v909 = vld [vmem:[%s901 + $0x1c] sm:$0xf]
      %v910 = vld [vmem:[%s901 + $0x20] sm:$0xf]
      %v911 = vld [vmem:[%s901 + $0x24] sm:$0xf]
      %v912 = vld [vmem:[%s901 + $0x28] sm:$0xf]
      %v913 = vld [vmem:[%s901 + $0x2c] sm:$0xf]
      %v914 = vld [vmem:[%s901 + $0x30] sm:$0xf]
      %v915 = vld [vmem:[%s901 + $0x34] sm:$0xf]
      %v916 = vld [vmem:[%s901 + $0x38] sm:$0xf]
      %v917 = vld [vmem:[%s901 + $0x3c] sm:$0xf]
      %v918 = vunpack.c.l.b16 %v802
      %v919 = vunpack.c.l.b16 %v816
      %v920 = vunpack.c.l.b16 %v830
      %v921 = vunpack.c.l.b16 %v844
      %v922 = vunpack.c.l.b16 %v858
      %v923 = vunpack.c.l.b16 %v872
      %v924 = vunpack.c.l.b16 %v886
      %v925 = vunpack.c.l.b16 %v900
      %v926 = vpack.c.b16 %v919, %v918
      %v927 = vpack.c.b16 %v921, %v920
      %v928 = vpack.c.b16 %v923, %v922
      %v929 = vpack.c.b16 %v925, %v924
      %v950 = vunpack.c.l.b16 %v902
      %v951 = vunpack.c.l.b16 %v903
      %v952 = vunpack.c.l.b16 %v904
      %v953 = vunpack.c.l.b16 %v905
      %v954 = vunpack.c.l.b16 %v906
      %v955 = vunpack.c.l.b16 %v907
      %v956 = vunpack.c.l.b16 %v908
      %v957 = vunpack.c.l.b16 %v909
      %v958 = vunpack.c.l.b16 %v910
      %v959 = vunpack.c.l.b16 %v911
      %v960 = vunpack.c.l.b16 %v912
      %v961 = vunpack.c.l.b16 %v913
      %v962 = vunpack.c.l.b16 %v914
      %v963 = vunpack.c.l.b16 %v915
      %v964 = vunpack.c.l.b16 %v916
      %v965 = vunpack.c.l.b16 %v917
      %v966 = vpack.c.b16 %v951, %v950
      %v967 = vpack.c.b16 %v953, %v952
      %v968 = vpack.c.b16 %v955, %v954
      %v969 = vpack.c.b16 %v957, %v956
      %v970 = vpack.c.b16 %v959, %v958
      %v971 = vpack.c.b16 %v961, %v960
      %v972 = vpack.c.b16 %v963, %v962
      %v973 = vpack.c.b16 %v965, %v964
      %982 = vmatpush.bf16.msra.mxu0 %v973
      %983 = vmatpush.bf16.msra.mxu0 %v972
      %984 = vmatpush.bf16.msra.mxu0 %v971
      %985 = vmatpush.bf16.msra.mxu0 %v970
      %986 = vmatpush.bf16.msra.mxu0 %v969
      %987 = vmatpush.bf16.msra.mxu0 %v968
      %988 = vmatpush.bf16.msra.mxu0 %v967
      %989 = vmatpush.bf16.msra.mxu0 %v966
      %990 = vmatmul.bf16.gmra.mxu0 %v926
      %v991 = vpop.f32.mrf.mxu0
      %v992 = vadd.f32 0.0, %v991
      %v993 = vpop.f32.mrf.mxu0
      %v994 = vadd.f32 0.0, %v993
      %995 = vmatmul.bf16.gmra.mxu0 %v927
      %v996 = vpop.f32.mrf.mxu0
      %v997 = vadd.f32 0.0, %v996
      %v998 = vpop.f32.mrf.mxu0
      %v999 = vadd.f32 0.0, %v998
      %1000 = vmatmul.bf16.gmra.mxu0 %v928
      %v1001 = vpop.f32.mrf.mxu0
      %v1002 = vadd.f32 0.0, %v1001
      %v1003 = vpop.f32.mrf.mxu0
      %v1004 = vadd.f32 0.0, %v1003
      %1005 = vmatmul.bf16.gmra.mxu0 %v929
      %v1006 = vpop.f32.mrf.mxu0
      %v1007 = vadd.f32 0.0, %v1006
      %v1008 = vpop.f32.mrf.mxu0
      %v1009 = vadd.f32 0.0, %v1008
      %1010 = vdwg.mxu0
      %v1019 = vunpack.c.l.b16 %v754
      %v1020 = vunpack.c.l.b16 %v755
      %v1021 = vunpack.c.l.b16 %v756
      %v1022 = vunpack.c.l.b16 %v757
      %v1023 = vunpack.c.l.b16 %v758
      %v1024 = vunpack.c.l.b16 %v759
      %v1025 = vunpack.c.l.b16 %v760
      %v1026 = vunpack.c.l.b16 %v761
      %v1027 = vpack.c.b16 %v1020, %v1019
      %v1028 = vpack.c.b16 %v1022, %v1021
      %v1029 = vpack.c.b16 %v1024, %v1023
      %v1030 = vpack.c.b16 %v1026, %v1025
      %v1051 = vunpack.c.l.b16 %v762
      %v1052 = vunpack.c.l.b16 %v763
      %v1053 = vunpack.c.l.b16 %v764
      %v1054 = vunpack.c.l.b16 %v765
      %v1055 = vunpack.c.l.b16 %v766
      %v1056 = vunpack.c.l.b16 %v767
      %v1057 = vunpack.c.l.b16 %v768
      %v1058 = vunpack.c.l.b16 %v769
      %v1059 = vunpack.c.l.b16 %v770
      %v1060 = vunpack.c.l.b16 %v771
      %v1061 = vunpack.c.l.b16 %v772
      %v1062 = vunpack.c.l.b16 %v773
      %v1063 = vunpack.c.l.b16 %v774
      %v1064 = vunpack.c.l.b16 %v775
      %v1065 = vunpack.c.l.b16 %v776
      %v1066 = vunpack.c.l.b16 %v777
      %v1067 = vpack.c.b16 %v1052, %v1051
      %v1068 = vpack.c.b16 %v1054, %v1053
      %v1069 = vpack.c.b16 %v1056, %v1055
      %v1070 = vpack.c.b16 %v1058, %v1057
      %v1071 = vpack.c.b16 %v1060, %v1059
      %v1072 = vpack.c.b16 %v1062, %v1061
      %v1073 = vpack.c.b16 %v1064, %v1063
      %v1074 = vpack.c.b16 %v1066, %v1065
      %1083 = vmatpush.bf16.msra.mxu0 %v1074
      %1084 = vmatpush.bf16.msra.mxu0 %v1073
      %1085 = vmatpush.bf16.msra.mxu0 %v1072
      %1086 = vmatpush.bf16.msra.mxu0 %v1071
      %1087 = vmatpush.bf16.msra.mxu0 %v1070
      %1088 = vmatpush.bf16.msra.mxu0 %v1069
      %1089 = vmatpush.bf16.msra.mxu0 %v1068
      %1090 = vmatpush.bf16.msra.mxu0 %v1067
      %1091 = vmatmul.bf16.gmra.mxu0 %v1027
      %v1092 = vpop.f32.mrf.mxu0
      %v1093 = vadd.f32 %v992, %v1092
      %v1094 = vpop.f32.mrf.mxu0
      %v1095 = vadd.f32 %v994, %v1094
      %1096 = vmatmul.bf16.gmra.mxu0 %v1028
      %v1097 = vpop.f32.mrf.mxu0
      %v1098 = vadd.f32 %v997, %v1097
      %v1099 = vpop.f32.mrf.mxu0
      %v1100 = vadd.f32 %v999, %v1099
      %1101 = vmatmul.bf16.gmra.mxu0 %v1029
      %v1102 = vpop.f32.mrf.mxu0
      %v1103 = vadd.f32 %v1002, %v1102
      %v1104 = vpop.f32.mrf.mxu0
      %v1105 = vadd.f32 %v1004, %v1104
      %1106 = vmatmul.bf16.gmra.mxu0 %v1030
      %v1107 = vpop.f32.mrf.mxu0
      %v1108 = vadd.f32 %v1007, %v1107
      %v1109 = vpop.f32.mrf.mxu0
      %v1110 = vadd.f32 %v1009, %v1109
      %1111 = vdwg.mxu0
      %v1112 = vld [vmem:[#allocation2] sm:$0xe]
      %v1113 = vld [vmem:[#allocation2 + $0x8] sm:$0xe]
      %v1114 = vld [vmem:[#allocation2 + $0x10] sm:$0xe]
      %v1115 = vld [vmem:[#allocation2 + $0x18] sm:$0xe]
      %v1116 = vld [vmem:[#allocation2 + $0x20] sm:$0xe]
      %v1117 = vld [vmem:[#allocation2 + $0x28] sm:$0xe]
      %v1118 = vld [vmem:[#allocation2 + $0x30] sm:$0xe]
      %v1119 = vld [vmem:[#allocation2 + $0x38] sm:$0xe]
      %vm1136 = vcmask 1042432
      %vm1137 = vcmask 1046532
      %vm1138 = vmor %vm1136, %vm1137
      %v1139 = vrot.slane %v1112, 5
      %v1140 = vrot.slane %v1139, 4
      %v1141 = vrot.slane %v778, 5
      %v1142 = vsel %vm1138, %v1140, %v1141
      %v1143 = vrot.slane %v1113, 5
      %v1144 = vrot.slane %v1143, 4
      %v1145 = vrot.slane %v779, 5
      %v1146 = vsel %vm1138, %v1144, %v1145
      %v1147 = vrot.slane %v1114, 5
      %v1148 = vrot.slane %v1147, 4
      %v1149 = vrot.slane %v780, 5
      %v1150 = vsel %vm1138, %v1148, %v1149
      %v1151 = vrot.slane %v1115, 5
      %v1152 = vrot.slane %v1151, 4
      %v1153 = vrot.slane %v781, 5
      %v1154 = vsel %vm1138, %v1152, %v1153
      %v1155 = vrot.slane %v1116, 5
      %v1156 = vrot.slane %v1155, 4
      %v1157 = vrot.slane %v782, 5
      %v1158 = vsel %vm1138, %v1156, %v1157
      %v1159 = vrot.slane %v1117, 5
      %v1160 = vrot.slane %v1159, 4
      %v1161 = vrot.slane %v783, 5
      %v1162 = vsel %vm1138, %v1160, %v1161
      %v1163 = vrot.slane %v1118, 5
      %v1164 = vrot.slane %v1163, 4
      %v1165 = vrot.slane %v784, 5
      %v1166 = vsel %vm1138, %v1164, %v1165
      %v1167 = vrot.slane %v1119, 5
      %v1168 = vrot.slane %v1167, 4
      %v1169 = vrot.slane %v785, 5
      %v1170 = vsel %vm1138, %v1168, %v1169
      %s1171 = scalar_lea.vmem %s4, 128
      %v1172 = vld [vmem:[%s1171] sm:$0xf]
      %v1173 = vld [vmem:[%s1171 + $0x4] sm:$0xf]
      %v1174 = vld [vmem:[%s1171 + $0x8] sm:$0xf]
      %v1175 = vld [vmem:[%s1171 + $0xc] sm:$0xf]
      %v1176 = vld [vmem:[%s1171 + $0x10] sm:$0xf]
      %v1177 = vld [vmem:[%s1171 + $0x14] sm:$0xf]
      %v1178 = vld [vmem:[%s1171 + $0x18] sm:$0xf]
      %v1179 = vld [vmem:[%s1171 + $0x1c] sm:$0xf]
      %v1180 = vld [vmem:[%s1171 + $0x20] sm:$0xf]
      %v1181 = vld [vmem:[%s1171 + $0x24] sm:$0xf]
      %v1182 = vld [vmem:[%s1171 + $0x28] sm:$0xf]
      %v1183 = vld [vmem:[%s1171 + $0x2c] sm:$0xf]
      %v1184 = vld [vmem:[%s1171 + $0x30] sm:$0xf]
      %v1185 = vld [vmem:[%s1171 + $0x34] sm:$0xf]
      %v1186 = vld [vmem:[%s1171 + $0x38] sm:$0xf]
      %v1187 = vld [vmem:[%s1171 + $0x3c] sm:$0xf]
      %v1188 = vunpack.c.l.b16 %v1142
      %v1189 = vunpack.c.l.b16 %v1146
      %v1190 = vunpack.c.l.b16 %v1150
      %v1191 = vunpack.c.l.b16 %v1154
      %v1192 = vunpack.c.l.b16 %v1158
      %v1193 = vunpack.c.l.b16 %v1162
      %v1194 = vunpack.c.l.b16 %v1166
      %v1195 = vunpack.c.l.b16 %v1170
      %v1196 = vpack.c.b16 %v1189, %v1188
      %v1197 = vpack.c.b16 %v1191, %v1190
      %v1198 = vpack.c.b16 %v1193, %v1192
      %v1199 = vpack.c.b16 %v1195, %v1194
      %v1220 = vunpack.c.l.b16 %v1172
      %v1221 = vunpack.c.l.b16 %v1173
      %v1222 = vunpack.c.l.b16 %v1174
      %v1223 = vunpack.c.l.b16 %v1175
      %v1224 = vunpack.c.l.b16 %v1176
      %v1225 = vunpack.c.l.b16 %v1177
      %v1226 = vunpack.c.l.b16 %v1178
      %v1227 = vunpack.c.l.b16 %v1179
      %v1228 = vunpack.c.l.b16 %v1180
      %v1229 = vunpack.c.l.b16 %v1181
      %v1230 = vunpack.c.l.b16 %v1182
      %v1231 = vunpack.c.l.b16 %v1183
      %v1232 = vunpack.c.l.b16 %v1184
      %v1233 = vunpack.c.l.b16 %v1185
      %v1234 = vunpack.c.l.b16 %v1186
      %v1235 = vunpack.c.l.b16 %v1187
      %v1236 = vpack.c.b16 %v1221, %v1220
      %v1237 = vpack.c.b16 %v1223, %v1222
      %v1238 = vpack.c.b16 %v1225, %v1224
      %v1239 = vpack.c.b16 %v1227, %v1226
      %v1240 = vpack.c.b16 %v1229, %v1228
      %v1241 = vpack.c.b16 %v1231, %v1230
      %v1242 = vpack.c.b16 %v1233, %v1232
      %v1243 = vpack.c.b16 %v1235, %v1234
      %1252 = vmatpush.bf16.msra.mxu0 %v1243
      %1253 = vmatpush.bf16.msra.mxu0 %v1242
      %1254 = vmatpush.bf16.msra.mxu0 %v1241
      %1255 = vmatpush.bf16.msra.mxu0 %v1240
      %1256 = vmatpush.bf16.msra.mxu0 %v1239
      %1257 = vmatpush.bf16.msra.mxu0 %v1238
      %1258 = vmatpush.bf16.msra.mxu0 %v1237
      %1259 = vmatpush.bf16.msra.mxu0 %v1236
      %1260 = vmatmul.bf16.gmra.mxu0 %v1196
      %v1261 = vpop.f32.mrf.mxu0
      %v1262 = vadd.f32 0.0, %v1261
      %v1263 = vpop.f32.mrf.mxu0
      %v1264 = vadd.f32 0.0, %v1263
      %1265 = vmatmul.bf16.gmra.mxu0 %v1197
      %v1266 = vpop.f32.mrf.mxu0
      %v1267 = vadd.f32 0.0, %v1266
      %v1268 = vpop.f32.mrf.mxu0
      %v1269 = vadd.f32 0.0, %v1268
      %1270 = vmatmul.bf16.gmra.mxu0 %v1198
      %v1271 = vpop.f32.mrf.mxu0
      %v1272 = vadd.f32 0.0, %v1271
      %v1273 = vpop.f32.mrf.mxu0
      %v1274 = vadd.f32 0.0, %v1273
      %1275 = vmatmul.bf16.gmra.mxu0 %v1199
      %v1276 = vpop.f32.mrf.mxu0
      %v1277 = vadd.f32 0.0, %v1276
      %v1278 = vpop.f32.mrf.mxu0
      %v1279 = vadd.f32 0.0, %v1278
      %1280 = vdwg.mxu0
      %v1281 = vadd.f32 %v1093, %v1262
      %v1282 = vadd.f32 %v1095, %v1264
      %v1283 = vadd.f32 %v1098, %v1267
      %v1284 = vadd.f32 %v1100, %v1269
      %v1285 = vadd.f32 %v1103, %v1272
      %v1286 = vadd.f32 %v1105, %v1274
      %v1287 = vadd.f32 %v1108, %v1277
      %v1288 = vadd.f32 %v1110, %v1279
      %v1289 = vld [vmem:[%s705] sm:$0xf]
      %v1290 = vld [vmem:[%s705 + $0x8] sm:$0xf]
      %v1291 = vld [vmem:[%s705 + $0x10] sm:$0xf]
      %v1292 = vld [vmem:[%s705 + $0x18] sm:$0xf]
      %v1293 = vld [vmem:[%s705 + $0x20] sm:$0xf]
      %v1294 = vld [vmem:[%s705 + $0x28] sm:$0xf]
      %v1295 = vld [vmem:[%s705 + $0x30] sm:$0xf]
      %v1296 = vld [vmem:[%s705 + $0x38] sm:$0xf]
      %s1297 = scalar_lea.vmem %s4, 192
      %v1298 = vld [vmem:[%s1297] sm:$0xf]
      %v1299 = vld [vmem:[%s1297 + $0x4] sm:$0xf]
      %v1300 = vld [vmem:[%s1297 + $0x8] sm:$0xf]
      %v1301 = vld [vmem:[%s1297 + $0xc] sm:$0xf]
      %v1302 = vld [vmem:[%s1297 + $0x10] sm:$0xf]
      %v1303 = vld [vmem:[%s1297 + $0x14] sm:$0xf]
      %v1304 = vld [vmem:[%s1297 + $0x18] sm:$0xf]
      %v1305 = vld [vmem:[%s1297 + $0x1c] sm:$0xf]
      %v1306 = vld [vmem:[%s1297 + $0x20] sm:$0xf]
      %v1307 = vld [vmem:[%s1297 + $0x24] sm:$0xf]
      %v1308 = vld [vmem:[%s1297 + $0x28] sm:$0xf]
      %v1309 = vld [vmem:[%s1297 + $0x2c] sm:$0xf]
      %v1310 = vld [vmem:[%s1297 + $0x30] sm:$0xf]
      %v1311 = vld [vmem:[%s1297 + $0x34] sm:$0xf]
      %v1312 = vld [vmem:[%s1297 + $0x38] sm:$0xf]
      %v1313 = vld [vmem:[%s1297 + $0x3c] sm:$0xf]
      %v1322 = vunpack.c.l.b16 %v1289
      %v1323 = vunpack.c.l.b16 %v1290
      %v1324 = vunpack.c.l.b16 %v1291
      %v1325 = vunpack.c.l.b16 %v1292
      %v1326 = vunpack.c.l.b16 %v1293
      %v1327 = vunpack.c.l.b16 %v1294
      %v1328 = vunpack.c.l.b16 %v1295
      %v1329 = vunpack.c.l.b16 %v1296
      %v1330 = vpack.c.b16 %v1323, %v1322
      %v1331 = vpack.c.b16 %v1325, %v1324
      %v1332 = vpack.c.b16 %v1327, %v1326
      %v1333 = vpack.c.b16 %v1329, %v1328
      %v1354 = vunpack.c.l.b16 %v1298
      %v1355 = vunpack.c.l.b16 %v1299
      %v1356 = vunpack.c.l.b16 %v1300
      %v1357 = vunpack.c.l.b16 %v1301
      %v1358 = vunpack.c.l.b16 %v1302
      %v1359 = vunpack.c.l.b16 %v1303
      %v1360 = vunpack.c.l.b16 %v1304
      %v1361 = vunpack.c.l.b16 %v1305
      %v1362 = vunpack.c.l.b16 %v1306
      %v1363 = vunpack.c.l.b16 %v1307
      %v1364 = vunpack.c.l.b16 %v1308
      %v1365 = vunpack.c.l.b16 %v1309
      %v1366 = vunpack.c.l.b16 %v1310
      %v1367 = vunpack.c.l.b16 %v1311
      %v1368 = vunpack.c.l.b16 %v1312
      %v1369 = vunpack.c.l.b16 %v1313
      %v1370 = vpack.c.b16 %v1355, %v1354
      %v1371 = vpack.c.b16 %v1357, %v1356
      %v1372 = vpack.c.b16 %v1359, %v1358
      %v1373 = vpack.c.b16 %v1361, %v1360
      %v1374 = vpack.c.b16 %v1363, %v1362
      %v1375 = vpack.c.b16 %v1365, %v1364
      %v1376 = vpack.c.b16 %v1367, %v1366
      %v1377 = vpack.c.b16 %v1369, %v1368
      %1386 = vmatpush.bf16.msra.mxu0 %v1377
      %1387 = vmatpush.bf16.msra.mxu0 %v1376
      %1388 = vmatpush.bf16.msra.mxu0 %v1375
      %1389 = vmatpush.bf16.msra.mxu0 %v1374
      %1390 = vmatpush.bf16.msra.mxu0 %v1373
      %1391 = vmatpush.bf16.msra.mxu0 %v1372
      %1392 = vmatpush.bf16.msra.mxu0 %v1371
      %1393 = vmatpush.bf16.msra.mxu0 %v1370
      %1394 = vmatmul.bf16.gmra.mxu0 %v1330
      %v1395 = vpop.f32.mrf.mxu0
      %v1396 = vadd.f32 0.0, %v1395
      %v1397 = vpop.f32.mrf.mxu0
      %v1398 = vadd.f32 0.0, %v1397
      %1399 = vmatmul.bf16.gmra.mxu0 %v1331
      %v1400 = vpop.f32.mrf.mxu0
      %v1401 = vadd.f32 0.0, %v1400
      %v1402 = vpop.f32.mrf.mxu0
      %v1403 = vadd.f32 0.0, %v1402
      %1404 = vmatmul.bf16.gmra.mxu0 %v1332
      %v1405 = vpop.f32.mrf.mxu0
      %v1406 = vadd.f32 0.0, %v1405
      %v1407 = vpop.f32.mrf.mxu0
      %v1408 = vadd.f32 0.0, %v1407
      %1409 = vmatmul.bf16.gmra.mxu0 %v1333
      %v1410 = vpop.f32.mrf.mxu0
      %v1411 = vadd.f32 0.0, %v1410
      %v1412 = vpop.f32.mrf.mxu0
      %v1413 = vadd.f32 0.0, %v1412
      %1414 = vdwg.mxu0
      %v1415 = vadd.f32 %v1281, %v1396
      %v1416 = vadd.f32 %v1282, %v1398
      %v1417 = vadd.f32 %v1283, %v1401
      %v1418 = vadd.f32 %v1284, %v1403
      %v1419 = vadd.f32 %v1285, %v1406
      %v1420 = vadd.f32 %v1286, %v1408
      %v1421 = vadd.f32 %v1287, %v1411
      %v1422 = vadd.f32 %v1288, %v1413
      %v1423 = vld [vmem:[%s705] sm:$0xf]
      %v1424 = vld [vmem:[%s705 + $0x4] sm:$0x1]
      %v1425 = vld [vmem:[%s705 + $0x8] sm:$0xf]
      %v1426 = vld [vmem:[%s705 + $0xc] sm:$0x1]
      %v1427 = vld [vmem:[%s705 + $0x10] sm:$0xf]
      %v1428 = vld [vmem:[%s705 + $0x14] sm:$0x1]
      %v1429 = vld [vmem:[%s705 + $0x18] sm:$0xf]
      %v1430 = vld [vmem:[%s705 + $0x1c] sm:$0x1]
      %v1431 = vld [vmem:[%s705 + $0x20] sm:$0xf]
      %v1432 = vld [vmem:[%s705 + $0x24] sm:$0x1]
      %v1433 = vld [vmem:[%s705 + $0x28] sm:$0xf]
      %v1434 = vld [vmem:[%s705 + $0x2c] sm:$0x1]
      %v1435 = vld [vmem:[%s705 + $0x30] sm:$0xf]
      %v1436 = vld [vmem:[%s705 + $0x34] sm:$0x1]
      %v1437 = vld [vmem:[%s705 + $0x38] sm:$0xf]
      %v1438 = vld [vmem:[%s705 + $0x3c] sm:$0x1]
      %v1440 = vshrl.u32 %v1423, 16
      %v1442 = vrot.slane %v1440, 4
      %v1443 = vshll.u32 %v1423, 16
      %v1445 = vrot.slane %v1443, 5
      %v1446 = vor.u32 %v1442, %v1445
      %v1447 = vrot.slane %v1446, 4
      %v1449 = vshll.u32 %v1424, 16
      %v1451 = vrot.slane %v1449, 5
      %v1452 = vsel %vm788, %v1447, %v1451
      %v1454 = vshrl.u32 %v1425, 16
      %v1456 = vrot.slane %v1454, 4
      %v1457 = vshll.u32 %v1425, 16
      %v1459 = vrot.slane %v1457, 5
      %v1460 = vor.u32 %v1456, %v1459
      %v1461 = vrot.slane %v1460, 4
      %v1463 = vshll.u32 %v1426, 16
      %v1465 = vrot.slane %v1463, 5
      %v1466 = vsel %vm788, %v1461, %v1465
      %v1468 = vshrl.u32 %v1427, 16
      %v1470 = vrot.slane %v1468, 4
      %v1471 = vshll.u32 %v1427, 16
      %v1473 = vrot.slane %v1471, 5
      %v1474 = vor.u32 %v1470, %v1473
      %v1475 = vrot.slane %v1474, 4
      %v1477 = vshll.u32 %v1428, 16
      %v1479 = vrot.slane %v1477, 5
      %v1480 = vsel %vm788, %v1475, %v1479
      %v1482 = vshrl.u32 %v1429, 16
      %v1484 = vrot.slane %v1482, 4
      %v1485 = vshll.u32 %v1429, 16
      %v1487 = vrot.slane %v1485, 5
      %v1488 = vor.u32 %v1484, %v1487
      %v1489 = vrot.slane %v1488, 4
      %v1491 = vshll.u32 %v1430, 16
      %v1493 = vrot.slane %v1491, 5
      %v1494 = vsel %vm788, %v1489, %v1493
      %v1496 = vshrl.u32 %v1431, 16
      %v1498 = vrot.slane %v1496, 4
      %v1499 = vshll.u32 %v1431, 16
      %v1501 = vrot.slane %v1499, 5
      %v1502 = vor.u32 %v1498, %v1501
      %v1503 = vrot.slane %v1502, 4
      %v1505 = vshll.u32 %v1432, 16
      %v1507 = vrot.slane %v1505, 5
      %v1508 = vsel %vm788, %v1503, %v1507
      %v1510 = vshrl.u32 %v1433, 16
      %v1512 = vrot.slane %v1510, 4
      %v1513 = vshll.u32 %v1433, 16
      %v1515 = vrot.slane %v1513, 5
      %v1516 = vor.u32 %v1512, %v1515
      %v1517 = vrot.slane %v1516, 4
      %v1519 = vshll.u32 %v1434, 16
      %v1521 = vrot.slane %v1519, 5
      %v1522 = vsel %vm788, %v1517, %v1521
      %v1524 = vshrl.u32 %v1435, 16
      %v1526 = vrot.slane %v1524, 4
      %v1527 = vshll.u32 %v1435, 16
      %v1529 = vrot.slane %v1527, 5
      %v1530 = vor.u32 %v1526, %v1529
      %v1531 = vrot.slane %v1530, 4
      %v1533 = vshll.u32 %v1436, 16
      %v1535 = vrot.slane %v1533, 5
      %v1536 = vsel %vm788, %v1531, %v1535
      %v1538 = vshrl.u32 %v1437, 16
      %v1540 = vrot.slane %v1538, 4
      %v1541 = vshll.u32 %v1437, 16
      %v1543 = vrot.slane %v1541, 5
      %v1544 = vor.u32 %v1540, %v1543
      %v1545 = vrot.slane %v1544, 4
      %v1547 = vshll.u32 %v1438, 16
      %v1549 = vrot.slane %v1547, 5
      %v1550 = vsel %vm788, %v1545, %v1549
      %s1551 = scalar_lea.vmem %s4, 256
      %v1552 = vld [vmem:[%s1551] sm:$0xf]
      %v1553 = vld [vmem:[%s1551 + $0x4] sm:$0xf]
      %v1554 = vld [vmem:[%s1551 + $0x8] sm:$0xf]
      %v1555 = vld [vmem:[%s1551 + $0xc] sm:$0xf]
      %v1556 = vld [vmem:[%s1551 + $0x10] sm:$0xf]
      %v1557 = vld [vmem:[%s1551 + $0x14] sm:$0xf]
      %v1558 = vld [vmem:[%s1551 + $0x18] sm:$0xf]
      %v1559 = vld [vmem:[%s1551 + $0x1c] sm:$0xf]
      %v1560 = vld [vmem:[%s1551 + $0x20] sm:$0xf]
      %v1561 = vld [vmem:[%s1551 + $0x24] sm:$0xf]
      %v1562 = vld [vmem:[%s1551 + $0x28] sm:$0xf]
      %v1563 = vld [vmem:[%s1551 + $0x2c] sm:$0xf]
      %v1564 = vld [vmem:[%s1551 + $0x30] sm:$0xf]
      %v1565 = vld [vmem:[%s1551 + $0x34] sm:$0xf]
      %v1566 = vld [vmem:[%s1551 + $0x38] sm:$0xf]
      %v1567 = vld [vmem:[%s1551 + $0x3c] sm:$0xf]
      %v1568 = vunpack.c.l.b16 %v1452
      %v1569 = vunpack.c.l.b16 %v1466
      %v1570 = vunpack.c.l.b16 %v1480
      %v1571 = vunpack.c.l.b16 %v1494
      %v1572 = vunpack.c.l.b16 %v1508
      %v1573 = vunpack.c.l.b16 %v1522
      %v1574 = vunpack.c.l.b16 %v1536
      %v1575 = vunpack.c.l.b16 %v1550
      %v1576 = vpack.c.b16 %v1569, %v1568
      %v1577 = vpack.c.b16 %v1571, %v1570
      %v1578 = vpack.c.b16 %v1573, %v1572
      %v1579 = vpack.c.b16 %v1575, %v1574
      %v1600 = vunpack.c.l.b16 %v1552
      %v1601 = vunpack.c.l.b16 %v1553
      %v1602 = vunpack.c.l.b16 %v1554
      %v1603 = vunpack.c.l.b16 %v1555
      %v1604 = vunpack.c.l.b16 %v1556
      %v1605 = vunpack.c.l.b16 %v1557
      %v1606 = vunpack.c.l.b16 %v1558
      %v1607 = vunpack.c.l.b16 %v1559
      %v1608 = vunpack.c.l.b16 %v1560
      %v1609 = vunpack.c.l.b16 %v1561
      %v1610 = vunpack.c.l.b16 %v1562
      %v1611 = vunpack.c.l.b16 %v1563
      %v1612 = vunpack.c.l.b16 %v1564
      %v1613 = vunpack.c.l.b16 %v1565
      %v1614 = vunpack.c.l.b16 %v1566
      %v1615 = vunpack.c.l.b16 %v1567
      %v1616 = vpack.c.b16 %v1601, %v1600
      %v1617 = vpack.c.b16 %v1603, %v1602
      %v1618 = vpack.c.b16 %v1605, %v1604
      %v1619 = vpack.c.b16 %v1607, %v1606
      %v1620 = vpack.c.b16 %v1609, %v1608
      %v1621 = vpack.c.b16 %v1611, %v1610
      %v1622 = vpack.c.b16 %v1613, %v1612
      %v1623 = vpack.c.b16 %v1615, %v1614
      %1632 = vmatpush.bf16.msra.mxu0 %v1623
      %1633 = vmatpush.bf16.msra.mxu0 %v1622
      %1634 = vmatpush.bf16.msra.mxu0 %v1621
      %1635 = vmatpush.bf16.msra.mxu0 %v1620
      %1636 = vmatpush.bf16.msra.mxu0 %v1619
      %1637 = vmatpush.bf16.msra.mxu0 %v1618
      %1638 = vmatpush.bf16.msra.mxu0 %v1617
      %1639 = vmatpush.bf16.msra.mxu0 %v1616
      %1640 = vmatmul.bf16.gmra.mxu0 %v1576
      %v1641 = vpop.f32.mrf.mxu0
      %v1642 = vadd.f32 0.0, %v1641
      %v1643 = vpop.f32.mrf.mxu0
      %v1644 = vadd.f32 0.0, %v1643
      %1645 = vmatmul.bf16.gmra.mxu0 %v1577
      %v1646 = vpop.f32.mrf.mxu0
      %v1647 = vadd.f32 0.0, %v1646
      %v1648 = vpop.f32.mrf.mxu0
      %v1649 = vadd.f32 0.0, %v1648
      %1650 = vmatmul.bf16.gmra.mxu0 %v1578
      %v1651 = vpop.f32.mrf.mxu0
      %v1652 = vadd.f32 0.0, %v1651
      %v1653 = vpop.f32.mrf.mxu0
      %v1654 = vadd.f32 0.0, %v1653
      %1655 = vmatmul.bf16.gmra.mxu0 %v1579
      %v1656 = vpop.f32.mrf.mxu0
      %v1657 = vadd.f32 0.0, %v1656
      %v1658 = vpop.f32.mrf.mxu0
      %v1659 = vadd.f32 0.0, %v1658
      %1660 = vdwg.mxu0
      %v1661 = vadd.f32 %v1415, %v1642
      %v1662 = vadd.f32 %v1416, %v1644
      %v1663 = vadd.f32 %v1417, %v1647
      %v1664 = vadd.f32 %v1418, %v1649
      %v1665 = vadd.f32 %v1419, %v1652
      %v1666 = vadd.f32 %v1420, %v1654
      %v1667 = vadd.f32 %v1421, %v1657
      %v1668 = vadd.f32 %v1422, %v1659
      %v1669 = vld [vmem:[%s705] sm:$0xe]
      %v1670 = vld [vmem:[%s705 + $0x8] sm:$0xe]
      %v1671 = vld [vmem:[%s705 + $0x10] sm:$0xe]
      %v1672 = vld [vmem:[%s705 + $0x18] sm:$0xe]
      %v1673 = vld [vmem:[%s705 + $0x20] sm:$0xe]
      %v1674 = vld [vmem:[%s705 + $0x28] sm:$0xe]
      %v1675 = vld [vmem:[%s705 + $0x30] sm:$0xe]
      %v1676 = vld [vmem:[%s705 + $0x38] sm:$0xe]
      %v1693 = vrot.slane %v1669, 5
      %v1694 = vrot.slane %v1693, 4
      %v1695 = vrot.slane %v1424, 5
      %v1696 = vsel %vm1138, %v1694, %v1695
      %v1697 = vrot.slane %v1670, 5
      %v1698 = vrot.slane %v1697, 4
      %v1699 = vrot.slane %v1426, 5
      %v1700 = vsel %vm1138, %v1698, %v1699
      %v1701 = vrot.slane %v1671, 5
      %v1702 = vrot.slane %v1701, 4
      %v1703 = vrot.slane %v1428, 5
      %v1704 = vsel %vm1138, %v1702, %v1703
      %v1705 = vrot.slane %v1672, 5
      %v1706 = vrot.slane %v1705, 4
      %v1707 = vrot.slane %v1430, 5
      %v1708 = vsel %vm1138, %v1706, %v1707
      %v1709 = vrot.slane %v1673, 5
      %v1710 = vrot.slane %v1709, 4
      %v1711 = vrot.slane %v1432, 5
      %v1712 = vsel %vm1138, %v1710, %v1711
      %v1713 = vrot.slane %v1674, 5
      %v1714 = vrot.slane %v1713, 4
      %v1715 = vrot.slane %v1434, 5
      %v1716 = vsel %vm1138, %v1714, %v1715
      %v1717 = vrot.slane %v1675, 5
      %v1718 = vrot.slane %v1717, 4
      %v1719 = vrot.slane %v1436, 5
      %v1720 = vsel %vm1138, %v1718, %v1719
      %v1721 = vrot.slane %v1676, 5
      %v1722 = vrot.slane %v1721, 4
      %v1723 = vrot.slane %v1438, 5
      %v1724 = vsel %vm1138, %v1722, %v1723
      %s1725 = scalar_lea.vmem %s4, 320
      %v1726 = vld [vmem:[%s1725] sm:$0xf]
      %v1727 = vld [vmem:[%s1725 + $0x4] sm:$0xf]
      %v1728 = vld [vmem:[%s1725 + $0x8] sm:$0xf]
      %v1729 = vld [vmem:[%s1725 + $0xc] sm:$0xf]
      %v1730 = vld [vmem:[%s1725 + $0x10] sm:$0xf]
      %v1731 = vld [vmem:[%s1725 + $0x14] sm:$0xf]
      %v1732 = vld [vmem:[%s1725 + $0x18] sm:$0xf]
      %v1733 = vld [vmem:[%s1725 + $0x1c] sm:$0xf]
      %v1734 = vld [vmem:[%s1725 + $0x20] sm:$0xf]
      %v1735 = vld [vmem:[%s1725 + $0x24] sm:$0xf]
      %v1736 = vld [vmem:[%s1725 + $0x28] sm:$0xf]
      %v1737 = vld [vmem:[%s1725 + $0x2c] sm:$0xf]
      %v1738 = vld [vmem:[%s1725 + $0x30] sm:$0xf]
      %v1739 = vld [vmem:[%s1725 + $0x34] sm:$0xf]
      %v1740 = vld [vmem:[%s1725 + $0x38] sm:$0xf]
      %v1741 = vld [vmem:[%s1725 + $0x3c] sm:$0xf]
      %v1742 = vunpack.c.l.b16 %v1696
      %v1743 = vunpack.c.l.b16 %v1700
      %v1744 = vunpack.c.l.b16 %v1704
      %v1745 = vunpack.c.l.b16 %v1708
      %v1746 = vunpack.c.l.b16 %v1712
      %v1747 = vunpack.c.l.b16 %v1716
      %v1748 = vunpack.c.l.b16 %v1720
      %v1749 = vunpack.c.l.b16 %v1724
      %v1750 = vpack.c.b16 %v1743, %v1742
      %v1751 = vpack.c.b16 %v1745, %v1744
      %v1752 = vpack.c.b16 %v1747, %v1746
      %v1753 = vpack.c.b16 %v1749, %v1748
      %v1774 = vunpack.c.l.b16 %v1726
      %v1775 = vunpack.c.l.b16 %v1727
      %v1776 = vunpack.c.l.b16 %v1728
      %v1777 = vunpack.c.l.b16 %v1729
      %v1778 = vunpack.c.l.b16 %v1730
      %v1779 = vunpack.c.l.b16 %v1731
      %v1780 = vunpack.c.l.b16 %v1732
      %v1781 = vunpack.c.l.b16 %v1733
      %v1782 = vunpack.c.l.b16 %v1734
      %v1783 = vunpack.c.l.b16 %v1735
      %v1784 = vunpack.c.l.b16 %v1736
      %v1785 = vunpack.c.l.b16 %v1737
      %v1786 = vunpack.c.l.b16 %v1738
      %v1787 = vunpack.c.l.b16 %v1739
      %v1788 = vunpack.c.l.b16 %v1740
      %v1789 = vunpack.c.l.b16 %v1741
      %v1790 = vpack.c.b16 %v1775, %v1774
      %v1791 = vpack.c.b16 %v1777, %v1776
      %v1792 = vpack.c.b16 %v1779, %v1778
      %v1793 = vpack.c.b16 %v1781, %v1780
      %v1794 = vpack.c.b16 %v1783, %v1782
      %v1795 = vpack.c.b16 %v1785, %v1784
      %v1796 = vpack.c.b16 %v1787, %v1786
      %v1797 = vpack.c.b16 %v1789, %v1788
      %1806 = vmatpush.bf16.msra.mxu0 %v1797
      %1807 = vmatpush.bf16.msra.mxu0 %v1796
      %1808 = vmatpush.bf16.msra.mxu0 %v1795
      %1809 = vmatpush.bf16.msra.mxu0 %v1794
      %1810 = vmatpush.bf16.msra.mxu0 %v1793
      %1811 = vmatpush.bf16.msra.mxu0 %v1792
      %1812 = vmatpush.bf16.msra.mxu0 %v1791
      %1813 = vmatpush.bf16.msra.mxu0 %v1790
      %1814 = vmatmul.bf16.gmra.mxu0 %v1750
      %v1815 = vpop.f32.mrf.mxu0
      %v1816 = vadd.f32 0.0, %v1815
      %v1817 = vpop.f32.mrf.mxu0
      %v1818 = vadd.f32 0.0, %v1817
      %1819 = vmatmul.bf16.gmra.mxu0 %v1751
      %v1820 = vpop.f32.mrf.mxu0
      %v1821 = vadd.f32 0.0, %v1820
      %v1822 = vpop.f32.mrf.mxu0
      %v1823 = vadd.f32 0.0, %v1822
      %1824 = vmatmul.bf16.gmra.mxu0 %v1752
      %v1825 = vpop.f32.mrf.mxu0
      %v1826 = vadd.f32 0.0, %v1825
      %v1827 = vpop.f32.mrf.mxu0
      %v1828 = vadd.f32 0.0, %v1827
      %1829 = vmatmul.bf16.gmra.mxu0 %v1753
      %v1830 = vpop.f32.mrf.mxu0
      %v1831 = vadd.f32 0.0, %v1830
      %v1832 = vpop.f32.mrf.mxu0
      %v1833 = vadd.f32 0.0, %v1832
      %1834 = vdwg.mxu0
      %v1835 = vadd.f32 %v1661, %v1816
      %v1836 = vadd.f32 %v1662, %v1818
      %v1837 = vadd.f32 %v1663, %v1821
      %v1838 = vadd.f32 %v1664, %v1823
      %v1839 = vadd.f32 %v1665, %v1826
      %v1840 = vadd.f32 %v1666, %v1828
      %v1841 = vadd.f32 %v1667, %v1831
      %v1842 = vadd.f32 %v1668, %v1833
      %s1843 = scalar_lea.vmem [#allocation2], 16
      %v1844 = vld [vmem:[%s1843] sm:$0xf]
      %v1845 = vld [vmem:[%s1843 + $0x8] sm:$0xf]
      %v1846 = vld [vmem:[%s1843 + $0x10] sm:$0xf]
      %v1847 = vld [vmem:[%s1843 + $0x18] sm:$0xf]
      %v1848 = vld [vmem:[%s1843 + $0x20] sm:$0xf]
      %v1849 = vld [vmem:[%s1843 + $0x28] sm:$0xf]
      %v1850 = vld [vmem:[%s1843 + $0x30] sm:$0xf]
      %v1851 = vld [vmem:[%s1843 + $0x38] sm:$0xf]
      %s1852 = scalar_lea.vmem %s4, 384
      %v1853 = vld [vmem:[%s1852] sm:$0xf]
      %v1854 = vld [vmem:[%s1852 + $0x4] sm:$0xf]
      %v1855 = vld [vmem:[%s1852 + $0x8] sm:$0xf]
      %v1856 = vld [vmem:[%s1852 + $0xc] sm:$0xf]
      %v1857 = vld [vmem:[%s1852 + $0x10] sm:$0xf]
      %v1858 = vld [vmem:[%s1852 + $0x14] sm:$0xf]
      %v1859 = vld [vmem:[%s1852 + $0x18] sm:$0xf]
      %v1860 = vld [vmem:[%s1852 + $0x1c] sm:$0xf]
      %v1861 = vld [vmem:[%s1852 + $0x20] sm:$0xf]
      %v1862 = vld [vmem:[%s1852 + $0x24] sm:$0xf]
      %v1863 = vld [vmem:[%s1852 + $0x28] sm:$0xf]
      %v1864 = vld [vmem:[%s1852 + $0x2c] sm:$0xf]
      %v1865 = vld [vmem:[%s1852 + $0x30] sm:$0xf]
      %v1866 = vld [vmem:[%s1852 + $0x34] sm:$0xf]
      %v1867 = vld [vmem:[%s1852 + $0x38] sm:$0xf]
      %v1868 = vld [vmem:[%s1852 + $0x3c] sm:$0xf]
      %v1877 = vunpack.c.l.b16 %v1844
      %v1878 = vunpack.c.l.b16 %v1845
      %v1879 = vunpack.c.l.b16 %v1846
      %v1880 = vunpack.c.l.b16 %v1847
      %v1881 = vunpack.c.l.b16 %v1848
      %v1882 = vunpack.c.l.b16 %v1849
      %v1883 = vunpack.c.l.b16 %v1850
      %v1884 = vunpack.c.l.b16 %v1851
      %v1885 = vpack.c.b16 %v1878, %v1877
      %v1886 = vpack.c.b16 %v1880, %v1879
      %v1887 = vpack.c.b16 %v1882, %v1881
      %v1888 = vpack.c.b16 %v1884, %v1883
      %v1909 = vunpack.c.l.b16 %v1853
      %v1910 = vunpack.c.l.b16 %v1854
      %v1911 = vunpack.c.l.b16 %v1855
      %v1912 = vunpack.c.l.b16 %v1856
      %v1913 = vunpack.c.l.b16 %v1857
      %v1914 = vunpack.c.l.b16 %v1858
      %v1915 = vunpack.c.l.b16 %v1859
      %v1916 = vunpack.c.l.b16 %v1860
      %v1917 = vunpack.c.l.b16 %v1861
      %v1918 = vunpack.c.l.b16 %v1862
      %v1919 = vunpack.c.l.b16 %v1863
      %v1920 = vunpack.c.l.b16 %v1864
      %v1921 = vunpack.c.l.b16 %v1865
      %v1922 = vunpack.c.l.b16 %v1866
      %v1923 = vunpack.c.l.b16 %v1867
      %v1924 = vunpack.c.l.b16 %v1868
      %v1925 = vpack.c.b16 %v1910, %v1909
      %v1926 = vpack.c.b16 %v1912, %v1911
      %v1927 = vpack.c.b16 %v1914, %v1913
      %v1928 = vpack.c.b16 %v1916, %v1915
      %v1929 = vpack.c.b16 %v1918, %v1917
      %v1930 = vpack.c.b16 %v1920, %v1919
      %v1931 = vpack.c.b16 %v1922, %v1921
      %v1932 = vpack.c.b16 %v1924, %v1923
      %1941 = vmatpush.bf16.msra.mxu0 %v1932
      %1942 = vmatpush.bf16.msra.mxu0 %v1931
      %1943 = vmatpush.bf16.msra.mxu0 %v1930
      %1944 = vmatpush.bf16.msra.mxu0 %v1929
      %1945 = vmatpush.bf16.msra.mxu0 %v1928
      %1946 = vmatpush.bf16.msra.mxu0 %v1927
      %1947 = vmatpush.bf16.msra.mxu0 %v1926
      %1948 = vmatpush.bf16.msra.mxu0 %v1925
      %1949 = vmatmul.bf16.gmra.mxu0 %v1885
      %v1950 = vpop.f32.mrf.mxu0
      %v1951 = vadd.f32 0.0, %v1950
      %v1952 = vpop.f32.mrf.mxu0
      %v1953 = vadd.f32 0.0, %v1952
      %1954 = vmatmul.bf16.gmra.mxu0 %v1886
      %v1955 = vpop.f32.mrf.mxu0
      %v1956 = vadd.f32 0.0, %v1955
      %v1957 = vpop.f32.mrf.mxu0
      %v1958 = vadd.f32 0.0, %v1957
      %1959 = vmatmul.bf16.gmra.mxu0 %v1887
      %v1960 = vpop.f32.mrf.mxu0
      %v1961 = vadd.f32 0.0, %v1960
      %v1962 = vpop.f32.mrf.mxu0
      %v1963 = vadd.f32 0.0, %v1962
      %1964 = vmatmul.bf16.gmra.mxu0 %v1888
      %v1965 = vpop.f32.mrf.mxu0
      %v1966 = vadd.f32 0.0, %v1965
      %v1967 = vpop.f32.mrf.mxu0
      %v1968 = vadd.f32 0.0, %v1967
      %1969 = vdwg.mxu0
      %v1970 = vadd.f32 %v1835, %v1951
      %v1971 = vadd.f32 %v1836, %v1953
      %v1972 = vadd.f32 %v1837, %v1956
      %v1973 = vadd.f32 %v1838, %v1958
      %v1974 = vadd.f32 %v1839, %v1961
      %v1975 = vadd.f32 %v1840, %v1963
      %v1976 = vadd.f32 %v1841, %v1966
      %v1977 = vadd.f32 %v1842, %v1968
      %v1978 = vld [vmem:[%s1843] sm:$0xf]
      %v1979 = vld [vmem:[%s1843 + $0x4] sm:$0x1]
      %v1980 = vld [vmem:[%s1843 + $0x8] sm:$0xf]
      %v1981 = vld [vmem:[%s1843 + $0xc] sm:$0x1]
      %v1982 = vld [vmem:[%s1843 + $0x10] sm:$0xf]
      %v1983 = vld [vmem:[%s1843 + $0x14] sm:$0x1]
      %v1984 = vld [vmem:[%s1843 + $0x18] sm:$0xf]
      %v1985 = vld [vmem:[%s1843 + $0x1c] sm:$0x1]
      %v1986 = vld [vmem:[%s1843 + $0x20] sm:$0xf]
      %v1987 = vld [vmem:[%s1843 + $0x24] sm:$0x1]
      %v1988 = vld [vmem:[%s1843 + $0x28] sm:$0xf]
      %v1989 = vld [vmem:[%s1843 + $0x2c] sm:$0x1]
      %v1990 = vld [vmem:[%s1843 + $0x30] sm:$0xf]
      %v1991 = vld [vmem:[%s1843 + $0x34] sm:$0x1]
      %v1992 = vld [vmem:[%s1843 + $0x38] sm:$0xf]
      %v1993 = vld [vmem:[%s1843 + $0x3c] sm:$0x1]
      %v1995 = vshrl.u32 %v1978, 16
      %v1997 = vrot.slane %v1995, 4
      %v1998 = vshll.u32 %v1978, 16
      %v2000 = vrot.slane %v1998, 5
      %v2001 = vor.u32 %v1997, %v2000
      %v2002 = vrot.slane %v2001, 4
      %v2004 = vshll.u32 %v1979, 16
      %v2006 = vrot.slane %v2004, 5
      %v2007 = vsel %vm788, %v2002, %v2006
      %v2009 = vshrl.u32 %v1980, 16
      %v2011 = vrot.slane %v2009, 4
      %v2012 = vshll.u32 %v1980, 16
      %v2014 = vrot.slane %v2012, 5
      %v2015 = vor.u32 %v2011, %v2014
      %v2016 = vrot.slane %v2015, 4
      %v2018 = vshll.u32 %v1981, 16
      %v2020 = vrot.slane %v2018, 5
      %v2021 = vsel %vm788, %v2016, %v2020
      %v2023 = vshrl.u32 %v1982, 16
      %v2025 = vrot.slane %v2023, 4
      %v2026 = vshll.u32 %v1982, 16
      %v2028 = vrot.slane %v2026, 5
      %v2029 = vor.u32 %v2025, %v2028
      %v2030 = vrot.slane %v2029, 4
      %v2032 = vshll.u32 %v1983, 16
      %v2034 = vrot.slane %v2032, 5
      %v2035 = vsel %vm788, %v2030, %v2034
      %v2037 = vshrl.u32 %v1984, 16
      %v2039 = vrot.slane %v2037, 4
      %v2040 = vshll.u32 %v1984, 16
      %v2042 = vrot.slane %v2040, 5
      %v2043 = vor.u32 %v2039, %v2042
      %v2044 = vrot.slane %v2043, 4
      %v2046 = vshll.u32 %v1985, 16
      %v2048 = vrot.slane %v2046, 5
      %v2049 = vsel %vm788, %v2044, %v2048
      %v2051 = vshrl.u32 %v1986, 16
      %v2053 = vrot.slane %v2051, 4
      %v2054 = vshll.u32 %v1986, 16
      %v2056 = vrot.slane %v2054, 5
      %v2057 = vor.u32 %v2053, %v2056
      %v2058 = vrot.slane %v2057, 4
      %v2060 = vshll.u32 %v1987, 16
      %v2062 = vrot.slane %v2060, 5
      %v2063 = vsel %vm788, %v2058, %v2062
      %v2065 = vshrl.u32 %v1988, 16
      %v2067 = vrot.slane %v2065, 4
      %v2068 = vshll.u32 %v1988, 16
      %v2070 = vrot.slane %v2068, 5
      %v2071 = vor.u32 %v2067, %v2070
      %v2072 = vrot.slane %v2071, 4
      %v2074 = vshll.u32 %v1989, 16
      %v2076 = vrot.slane %v2074, 5
      %v2077 = vsel %vm788, %v2072, %v2076
      %v2079 = vshrl.u32 %v1990, 16
      %v2081 = vrot.slane %v2079, 4
      %v2082 = vshll.u32 %v1990, 16
      %v2084 = vrot.slane %v2082, 5
      %v2085 = vor.u32 %v2081, %v2084
      %v2086 = vrot.slane %v2085, 4
      %v2088 = vshll.u32 %v1991, 16
      %v2090 = vrot.slane %v2088, 5
      %v2091 = vsel %vm788, %v2086, %v2090
      %v2093 = vshrl.u32 %v1992, 16
      %v2095 = vrot.slane %v2093, 4
      %v2096 = vshll.u32 %v1992, 16
      %v2098 = vrot.slane %v2096, 5
      %v2099 = vor.u32 %v2095, %v2098
      %v2100 = vrot.slane %v2099, 4
      %v2102 = vshll.u32 %v1993, 16
      %v2104 = vrot.slane %v2102, 5
      %v2105 = vsel %vm788, %v2100, %v2104
      %s2106 = scalar_lea.vmem %s4, 448
      %v2107 = vld [vmem:[%s2106] sm:$0xf]
      %v2108 = vld [vmem:[%s2106 + $0x4] sm:$0xf]
      %v2109 = vld [vmem:[%s2106 + $0x8] sm:$0xf]
      %v2110 = vld [vmem:[%s2106 + $0xc] sm:$0xf]
      %v2111 = vld [vmem:[%s2106 + $0x10] sm:$0xf]
      %v2112 = vld [vmem:[%s2106 + $0x14] sm:$0xf]
      %v2113 = vld [vmem:[%s2106 + $0x18] sm:$0xf]
      %v2114 = vld [vmem:[%s2106 + $0x1c] sm:$0xf]
      %v2115 = vld [vmem:[%s2106 + $0x20] sm:$0xf]
      %v2116 = vld [vmem:[%s2106 + $0x24] sm:$0xf]
      %v2117 = vld [vmem:[%s2106 + $0x28] sm:$0xf]
      %v2118 = vld [vmem:[%s2106 + $0x2c] sm:$0xf]
      %v2119 = vld [vmem:[%s2106 + $0x30] sm:$0xf]
      %v2120 = vld [vmem:[%s2106 + $0x34] sm:$0xf]
      %v2121 = vld [vmem:[%s2106 + $0x38] sm:$0xf]
      %v2122 = vld [vmem:[%s2106 + $0x3c] sm:$0xf]
      %v2123 = vunpack.c.l.b16 %v2007
      %v2124 = vunpack.c.l.b16 %v2021
      %v2125 = vunpack.c.l.b16 %v2035
      %v2126 = vunpack.c.l.b16 %v2049
      %v2127 = vunpack.c.l.b16 %v2063
      %v2128 = vunpack.c.l.b16 %v2077
      %v2129 = vunpack.c.l.b16 %v2091
      %v2130 = vunpack.c.l.b16 %v2105
      %v2131 = vpack.c.b16 %v2124, %v2123
      %v2132 = vpack.c.b16 %v2126, %v2125
      %v2133 = vpack.c.b16 %v2128, %v2127
      %v2134 = vpack.c.b16 %v2130, %v2129
      %v2155 = vunpack.c.l.b16 %v2107
      %v2156 = vunpack.c.l.b16 %v2108
      %v2157 = vunpack.c.l.b16 %v2109
      %v2158 = vunpack.c.l.b16 %v2110
      %v2159 = vunpack.c.l.b16 %v2111
      %v2160 = vunpack.c.l.b16 %v2112
      %v2161 = vunpack.c.l.b16 %v2113
      %v2162 = vunpack.c.l.b16 %v2114
      %v2163 = vunpack.c.l.b16 %v2115
      %v2164 = vunpack.c.l.b16 %v2116
      %v2165 = vunpack.c.l.b16 %v2117
      %v2166 = vunpack.c.l.b16 %v2118
      %v2167 = vunpack.c.l.b16 %v2119
      %v2168 = vunpack.c.l.b16 %v2120
      %v2169 = vunpack.c.l.b16 %v2121
      %v2170 = vunpack.c.l.b16 %v2122
      %v2171 = vpack.c.b16 %v2156, %v2155
      %v2172 = vpack.c.b16 %v2158, %v2157
      %v2173 = vpack.c.b16 %v2160, %v2159
      %v2174 = vpack.c.b16 %v2162, %v2161
      %v2175 = vpack.c.b16 %v2164, %v2163
      %v2176 = vpack.c.b16 %v2166, %v2165
      %v2177 = vpack.c.b16 %v2168, %v2167
      %v2178 = vpack.c.b16 %v2170, %v2169
      %2187 = vmatpush.bf16.msra.mxu0 %v2178
      %2188 = vmatpush.bf16.msra.mxu0 %v2177
      %2189 = vmatpush.bf16.msra.mxu0 %v2176
      %2190 = vmatpush.bf16.msra.mxu0 %v2175
      %2191 = vmatpush.bf16.msra.mxu0 %v2174
      %2192 = vmatpush.bf16.msra.mxu0 %v2173
      %2193 = vmatpush.bf16.msra.mxu0 %v2172
      %2194 = vmatpush.bf16.msra.mxu0 %v2171
      %2195 = vmatmul.bf16.gmra.mxu0 %v2131
      %v2196 = vpop.f32.mrf.mxu0
      %v2197 = vadd.f32 0.0, %v2196
      %v2198 = vpop.f32.mrf.mxu0
      %v2199 = vadd.f32 0.0, %v2198
      %2200 = vmatmul.bf16.gmra.mxu0 %v2132
      %v2201 = vpop.f32.mrf.mxu0
      %v2202 = vadd.f32 0.0, %v2201
      %v2203 = vpop.f32.mrf.mxu0
      %v2204 = vadd.f32 0.0, %v2203
      %2205 = vmatmul.bf16.gmra.mxu0 %v2133
      %v2206 = vpop.f32.mrf.mxu0
      %v2207 = vadd.f32 0.0, %v2206
      %v2208 = vpop.f32.mrf.mxu0
      %v2209 = vadd.f32 0.0, %v2208
      %2210 = vmatmul.bf16.gmra.mxu0 %v2134
      %v2211 = vpop.f32.mrf.mxu0
      %v2212 = vadd.f32 0.0, %v2211
      %v2213 = vpop.f32.mrf.mxu0
      %v2214 = vadd.f32 0.0, %v2213
      %2215 = vdwg.mxu0
      %v2216 = vadd.f32 %v1970, %v2197
      %v2217 = vadd.f32 %v1971, %v2199
      %v2218 = vadd.f32 %v1972, %v2202
      %v2219 = vadd.f32 %v1973, %v2204
      %v2220 = vadd.f32 %v1974, %v2207
      %v2221 = vadd.f32 %v1975, %v2209
      %v2222 = vadd.f32 %v1976, %v2212
      %v2223 = vadd.f32 %v1977, %v2214
      %v2224 = vld [vmem:[%s1843] sm:$0xe]
      %v2225 = vld [vmem:[%s1843 + $0x8] sm:$0xe]
      %v2226 = vld [vmem:[%s1843 + $0x10] sm:$0xe]
      %v2227 = vld [vmem:[%s1843 + $0x18] sm:$0xe]
      %v2228 = vld [vmem:[%s1843 + $0x20] sm:$0xe]
      %v2229 = vld [vmem:[%s1843 + $0x28] sm:$0xe]
      %v2230 = vld [vmem:[%s1843 + $0x30] sm:$0xe]
      %v2231 = vld [vmem:[%s1843 + $0x38] sm:$0xe]
      %v2248 = vrot.slane %v2224, 5
      %v2249 = vrot.slane %v2248, 4
      %v2250 = vrot.slane %v1979, 5
      %v2251 = vsel %vm1138, %v2249, %v2250
      %v2252 = vrot.slane %v2225, 5
      %v2253 = vrot.slane %v2252, 4
      %v2254 = vrot.slane %v1981, 5
      %v2255 = vsel %vm1138, %v2253, %v2254
      %v2256 = vrot.slane %v2226, 5
      %v2257 = vrot.slane %v2256, 4
      %v2258 = vrot.slane %v1983, 5
      %v2259 = vsel %vm1138, %v2257, %v2258
      %v2260 = vrot.slane %v2227, 5
      %v2261 = vrot.slane %v2260, 4
      %v2262 = vrot.slane %v1985, 5
      %v2263 = vsel %vm1138, %v2261, %v2262
      %v2264 = vrot.slane %v2228, 5
      %v2265 = vrot.slane %v2264, 4
      %v2266 = vrot.slane %v1987, 5
      %v2267 = vsel %vm1138, %v2265, %v2266
      %v2268 = vrot.slane %v2229, 5
      %v2269 = vrot.slane %v2268, 4
      %v2270 = vrot.slane %v1989, 5
      %v2271 = vsel %vm1138, %v2269, %v2270
      %v2272 = vrot.slane %v2230, 5
      %v2273 = vrot.slane %v2272, 4
      %v2274 = vrot.slane %v1991, 5
      %v2275 = vsel %vm1138, %v2273, %v2274
      %v2276 = vrot.slane %v2231, 5
      %v2277 = vrot.slane %v2276, 4
      %v2278 = vrot.slane %v1993, 5
      %v2279 = vsel %vm1138, %v2277, %v2278
      %s2280 = scalar_lea.vmem %s4, 512
      %v2281 = vld [vmem:[%s2280] sm:$0xf]
      %v2282 = vld [vmem:[%s2280 + $0x4] sm:$0xf]
      %v2283 = vld [vmem:[%s2280 + $0x8] sm:$0xf]
      %v2284 = vld [vmem:[%s2280 + $0xc] sm:$0xf]
      %v2285 = vld [vmem:[%s2280 + $0x10] sm:$0xf]
      %v2286 = vld [vmem:[%s2280 + $0x14] sm:$0xf]
      %v2287 = vld [vmem:[%s2280 + $0x18] sm:$0xf]
      %v2288 = vld [vmem:[%s2280 + $0x1c] sm:$0xf]
      %v2289 = vld [vmem:[%s2280 + $0x20] sm:$0xf]
      %v2290 = vld [vmem:[%s2280 + $0x24] sm:$0xf]
      %v2291 = vld [vmem:[%s2280 + $0x28] sm:$0xf]
      %v2292 = vld [vmem:[%s2280 + $0x2c] sm:$0xf]
      %v2293 = vld [vmem:[%s2280 + $0x30] sm:$0xf]
      %v2294 = vld [vmem:[%s2280 + $0x34] sm:$0xf]
      %v2295 = vld [vmem:[%s2280 + $0x38] sm:$0xf]
      %v2296 = vld [vmem:[%s2280 + $0x3c] sm:$0xf]
      %v2297 = vunpack.c.l.b16 %v2251
      %v2298 = vunpack.c.l.b16 %v2255
      %v2299 = vunpack.c.l.b16 %v2259
      %v2300 = vunpack.c.l.b16 %v2263
      %v2301 = vunpack.c.l.b16 %v2267
      %v2302 = vunpack.c.l.b16 %v2271
      %v2303 = vunpack.c.l.b16 %v2275
      %v2304 = vunpack.c.l.b16 %v2279
      %v2305 = vpack.c.b16 %v2298, %v2297
      %v2306 = vpack.c.b16 %v2300, %v2299
      %v2307 = vpack.c.b16 %v2302, %v2301
      %v2308 = vpack.c.b16 %v2304, %v2303
      %v2329 = vunpack.c.l.b16 %v2281
      %v2330 = vunpack.c.l.b16 %v2282
      %v2331 = vunpack.c.l.b16 %v2283
      %v2332 = vunpack.c.l.b16 %v2284
      %v2333 = vunpack.c.l.b16 %v2285
      %v2334 = vunpack.c.l.b16 %v2286
      %v2335 = vunpack.c.l.b16 %v2287
      %v2336 = vunpack.c.l.b16 %v2288
      %v2337 = vunpack.c.l.b16 %v2289
      %v2338 = vunpack.c.l.b16 %v2290
      %v2339 = vunpack.c.l.b16 %v2291
      %v2340 = vunpack.c.l.b16 %v2292
      %v2341 = vunpack.c.l.b16 %v2293
      %v2342 = vunpack.c.l.b16 %v2294
      %v2343 = vunpack.c.l.b16 %v2295
      %v2344 = vunpack.c.l.b16 %v2296
      %v2345 = vpack.c.b16 %v2330, %v2329
      %v2346 = vpack.c.b16 %v2332, %v2331
      %v2347 = vpack.c.b16 %v2334, %v2333
      %v2348 = vpack.c.b16 %v2336, %v2335
      %v2349 = vpack.c.b16 %v2338, %v2337
      %v2350 = vpack.c.b16 %v2340, %v2339
      %v2351 = vpack.c.b16 %v2342, %v2341
      %v2352 = vpack.c.b16 %v2344, %v2343
      %2361 = vmatpush.bf16.msra.mxu0 %v2352
      %2362 = vmatpush.bf16.msra.mxu0 %v2351
      %2363 = vmatpush.bf16.msra.mxu0 %v2350
      %2364 = vmatpush.bf16.msra.mxu0 %v2349
      %2365 = vmatpush.bf16.msra.mxu0 %v2348
      %2366 = vmatpush.bf16.msra.mxu0 %v2347
      %2367 = vmatpush.bf16.msra.mxu0 %v2346
      %2368 = vmatpush.bf16.msra.mxu0 %v2345
      %2369 = vmatmul.bf16.gmra.mxu0 %v2305
      %v2370 = vpop.f32.mrf.mxu0
      %v2371 = vadd.f32 0.0, %v2370
      %v2372 = vpop.f32.mrf.mxu0
      %v2373 = vadd.f32 0.0, %v2372
      %2374 = vmatmul.bf16.gmra.mxu0 %v2306
      %v2375 = vpop.f32.mrf.mxu0
      %v2376 = vadd.f32 0.0, %v2375
      %v2377 = vpop.f32.mrf.mxu0
      %v2378 = vadd.f32 0.0, %v2377
      %2379 = vmatmul.bf16.gmra.mxu0 %v2307
      %v2380 = vpop.f32.mrf.mxu0
      %v2381 = vadd.f32 0.0, %v2380
      %v2382 = vpop.f32.mrf.mxu0
      %v2383 = vadd.f32 0.0, %v2382
      %2384 = vmatmul.bf16.gmra.mxu0 %v2308
      %v2385 = vpop.f32.mrf.mxu0
      %v2386 = vadd.f32 0.0, %v2385
      %v2387 = vpop.f32.mrf.mxu0
      %v2388 = vadd.f32 0.0, %v2387
      %2389 = vdwg.mxu0
      %v2390 = vadd.f32 %v2216, %v2371
      %v2391 = vadd.f32 %v2217, %v2373
      %v2392 = vadd.f32 %v2218, %v2376
      %v2393 = vadd.f32 %v2219, %v2378
      %v2394 = vadd.f32 %v2220, %v2381
      %v2395 = vadd.f32 %v2221, %v2383
      %v2396 = vadd.f32 %v2222, %v2386
      %v2397 = vadd.f32 %v2223, %v2388
      %v2398 = vld [vmem:[%s6] sm:$0x1]
      %v2399 = vld [vmem:[%s6 + $0x1] sm:$0x1]
      %v2400 = vld [vmem:[%s6 + $0x2] sm:$0x1]
      %v2401 = vperm.slane %v2398, 0
      %v2402 = vadd.f32 %v2390, %v2401
      %v2403 = vadd.f32 %v2391, %v2401
      %v2404 = vadd.f32 %v2392, %v2401
      %v2405 = vadd.f32 %v2393, %v2401
      %v2406 = vadd.f32 %v2394, %v2401
      %v2407 = vadd.f32 %v2395, %v2401
      %v2408 = vadd.f32 %v2396, %v2401
      %v2409 = vadd.f32 %v2397, %v2401
      %v2410 = vmul.f32 %v2402, %v2402
      %v2411 = vmul.f32 %v2403, %v2403
      %v2412 = vmul.f32 %v2404, %v2404
      %v2413 = vmul.f32 %v2405, %v2405
      %v2414 = vmul.f32 %v2406, %v2406
      %v2415 = vmul.f32 %v2407, %v2407
      %v2416 = vmul.f32 %v2408, %v2408
      %v2417 = vmul.f32 %v2409, %v2409
      %v2418 = vpack.c.bf16 %v2411, %v2410
      %v2419 = vpack.c.bf16 %v2413, %v2412
      %v2420 = vpack.c.bf16 %v2415, %v2414
      %v2421 = vpack.c.bf16 %v2417, %v2416
      %v2422 = vld [vmem:[%s5] sm:$0xf]
      %v2423 = vld [vmem:[%s5 + $0x4] sm:$0xf]
      %v2424 = vld [vmem:[%s5 + $0x8] sm:$0xf]
      %v2425 = vld [vmem:[%s5 + $0xc] sm:$0xf]
      %v2426 = vld [vmem:[%s5 + $0x10] sm:$0xf]
      %v2427 = vld [vmem:[%s5 + $0x14] sm:$0xf]
      %v2428 = vld [vmem:[%s5 + $0x18] sm:$0xf]
      %v2429 = vld [vmem:[%s5 + $0x1c] sm:$0xf]
      %v2430 = vld [vmem:[%s5 + $0x20] sm:$0xf]
      %v2431 = vld [vmem:[%s5 + $0x24] sm:$0xf]
      %v2432 = vld [vmem:[%s5 + $0x28] sm:$0xf]
      %v2433 = vld [vmem:[%s5 + $0x2c] sm:$0xf]
      %v2434 = vld [vmem:[%s5 + $0x30] sm:$0xf]
      %v2435 = vld [vmem:[%s5 + $0x34] sm:$0xf]
      %v2436 = vld [vmem:[%s5 + $0x38] sm:$0xf]
      %v2437 = vld [vmem:[%s5 + $0x3c] sm:$0xf]
      %v2438 = vperm.slane %v2399, 0
      %v2455 = vunpack.c.l.b16 %v2422
      %v2456 = vunpack.c.l.b16 %v2423
      %v2457 = vunpack.c.l.b16 %v2424
      %v2458 = vunpack.c.l.b16 %v2425
      %v2459 = vunpack.c.l.b16 %v2426
      %v2460 = vunpack.c.l.b16 %v2427
      %v2461 = vunpack.c.l.b16 %v2428
      %v2462 = vunpack.c.l.b16 %v2429
      %v2463 = vunpack.c.l.b16 %v2430
      %v2464 = vunpack.c.l.b16 %v2431
      %v2465 = vunpack.c.l.b16 %v2432
      %v2466 = vunpack.c.l.b16 %v2433
      %v2467 = vunpack.c.l.b16 %v2434
      %v2468 = vunpack.c.l.b16 %v2435
      %v2469 = vunpack.c.l.b16 %v2436
      %v2470 = vunpack.c.l.b16 %v2437
      %v2471 = vpack.c.b16 %v2456, %v2455
      %v2472 = vpack.c.b16 %v2458, %v2457
      %v2473 = vpack.c.b16 %v2460, %v2459
      %v2474 = vpack.c.b16 %v2462, %v2461
      %v2475 = vpack.c.b16 %v2464, %v2463
      %v2476 = vpack.c.b16 %v2466, %v2465
      %v2477 = vpack.c.b16 %v2468, %v2467
      %v2478 = vpack.c.b16 %v2470, %v2469
      %2487 = vmatpush.bf16.msra.mxu0 %v2478
      %2488 = vmatpush.bf16.msra.mxu0 %v2477
      %2489 = vmatpush.bf16.msra.mxu0 %v2476
      %2490 = vmatpush.bf16.msra.mxu0 %v2475
      %2491 = vmatpush.bf16.msra.mxu0 %v2474
      %2492 = vmatpush.bf16.msra.mxu0 %v2473
      %2493 = vmatpush.bf16.msra.mxu0 %v2472
      %2494 = vmatpush.bf16.msra.mxu0 %v2471
      %2495 = vmatmul.bf16.gmra.mxu0 %v2418
      %v2496 = vpop.f32.mrf.mxu0
      %v2497 = vadd.f32 %v2438, %v2496
      %v2498 = vpop.f32.mrf.mxu0
      %v2499 = vadd.f32 %v2438, %v2498
      %2500 = vmatmul.bf16.gmra.mxu0 %v2419
      %v2501 = vpop.f32.mrf.mxu0
      %v2502 = vadd.f32 %v2438, %v2501
      %v2503 = vpop.f32.mrf.mxu0
      %v2504 = vadd.f32 %v2438, %v2503
      %2505 = vmatmul.bf16.gmra.mxu0 %v2420
      %v2506 = vpop.f32.mrf.mxu0
      %v2507 = vadd.f32 %v2438, %v2506
      %v2508 = vpop.f32.mrf.mxu0
      %v2509 = vadd.f32 %v2438, %v2508
      %2510 = vmatmul.bf16.gmra.mxu0 %v2421
      %v2511 = vpop.f32.mrf.mxu0
      %v2512 = vadd.f32 %v2438, %v2511
      %v2513 = vpop.f32.mrf.mxu0
      %v2514 = vadd.f32 %v2438, %v2513
      %2515 = vdwg.mxu0
      %v2516 = vrsqrt.pop %v2497
      %v2517 = vmul.f32 %v2516, %v2497
      %v2518 = vmul.f32 %v2517, %v2516
      %v2519 = vmul.f32 0.5, %v2518
      %v2520 = vsub.f32 1.5, %v2519
      %v2521 = vmul.f32 %v2516, %v2520
      %vm2522 = vweird.f32 %v2497
      %vm2523 = vweird.f32 %v2516
      %vm2524 = vmor %vm2522, %vm2523
      %v2525 = vsel %vm2524, %v2516, %v2521
      %v2526 = vrsqrt.pop %v2499
      %v2527 = vmul.f32 %v2526, %v2499
      %v2528 = vmul.f32 %v2527, %v2526
      %v2529 = vmul.f32 0.5, %v2528
      %v2530 = vsub.f32 1.5, %v2529
      %v2531 = vmul.f32 %v2526, %v2530
      %vm2532 = vweird.f32 %v2499
      %vm2533 = vweird.f32 %v2526
      %vm2534 = vmor %vm2532, %vm2533
      %v2535 = vsel %vm2534, %v2526, %v2531
      %v2536 = vrsqrt.pop %v2502
      %v2537 = vmul.f32 %v2536, %v2502
      %v2538 = vmul.f32 %v2537, %v2536
      %v2539 = vmul.f32 0.5, %v2538
      %v2540 = vsub.f32 1.5, %v2539
      %v2541 = vmul.f32 %v2536, %v2540
      %vm2542 = vweird.f32 %v2502
      %vm2543 = vweird.f32 %v2536
      %vm2544 = vmor %vm2542, %vm2543
      %v2545 = vsel %vm2544, %v2536, %v2541
      %v2546 = vrsqrt.pop %v2504
      %v2547 = vmul.f32 %v2546, %v2504
      %v2548 = vmul.f32 %v2547, %v2546
      %v2549 = vmul.f32 0.5, %v2548
      %v2550 = vsub.f32 1.5, %v2549
      %v2551 = vmul.f32 %v2546, %v2550
      %vm2552 = vweird.f32 %v2504
      %vm2553 = vweird.f32 %v2546
      %vm2554 = vmor %vm2552, %vm2553
      %v2555 = vsel %vm2554, %v2546, %v2551
      %v2556 = vrsqrt.pop %v2507
      %v2557 = vmul.f32 %v2556, %v2507
      %v2558 = vmul.f32 %v2557, %v2556
      %v2559 = vmul.f32 0.5, %v2558
      %v2560 = vsub.f32 1.5, %v2559
      %v2561 = vmul.f32 %v2556, %v2560
      %vm2562 = vweird.f32 %v2507
      %vm2563 = vweird.f32 %v2556
      %vm2564 = vmor %vm2562, %vm2563
      %v2565 = vsel %vm2564, %v2556, %v2561
      %v2566 = vrsqrt.pop %v2509
      %v2567 = vmul.f32 %v2566, %v2509
      %v2568 = vmul.f32 %v2567, %v2566
      %v2569 = vmul.f32 0.5, %v2568
      %v2570 = vsub.f32 1.5, %v2569
      %v2571 = vmul.f32 %v2566, %v2570
      %vm2572 = vweird.f32 %v2509
      %vm2573 = vweird.f32 %v2566
      %vm2574 = vmor %vm2572, %vm2573
      %v2575 = vsel %vm2574, %v2566, %v2571
      %v2576 = vrsqrt.pop %v2512
      %v2577 = vmul.f32 %v2576, %v2512
      %v2578 = vmul.f32 %v2577, %v2576
      %v2579 = vmul.f32 0.5, %v2578
      %v2580 = vsub.f32 1.5, %v2579
      %v2581 = vmul.f32 %v2576, %v2580
      %vm2582 = vweird.f32 %v2512
      %vm2583 = vweird.f32 %v2576
      %vm2584 = vmor %vm2582, %vm2583
      %v2585 = vsel %vm2584, %v2576, %v2581
      %v2586 = vrsqrt.pop %v2514
      %v2587 = vmul.f32 %v2586, %v2514
      %v2588 = vmul.f32 %v2587, %v2586
      %v2589 = vmul.f32 0.5, %v2588
      %v2590 = vsub.f32 1.5, %v2589
      %v2591 = vmul.f32 %v2586, %v2590
      %vm2592 = vweird.f32 %v2514
      %vm2593 = vweird.f32 %v2586
      %vm2594 = vmor %vm2592, %vm2593
      %v2595 = vsel %vm2594, %v2586, %v2591
      %v2596 = vmul.f32 %v2402, %v2525
      %v2597 = vmul.f32 %v2403, %v2535
      %v2598 = vmul.f32 %v2404, %v2545
      %v2599 = vmul.f32 %v2405, %v2555
      %v2600 = vmul.f32 %v2406, %v2565
      %v2601 = vmul.f32 %v2407, %v2575
      %v2602 = vmul.f32 %v2408, %v2585
      %v2603 = vmul.f32 %v2409, %v2595
      %v2604 = vld [vmem:[%s460] sm:$0xf]
      %v2605 = vld [vmem:[%s460 + $0x4] sm:$0xf]
      %v2606 = vld [vmem:[%s460 + $0x8] sm:$0xf]
      %v2607 = vld [vmem:[%s460 + $0xc] sm:$0xf]
      %v2608 = vld [vmem:[%s460 + $0x10] sm:$0xf]
      %v2609 = vld [vmem:[%s460 + $0x14] sm:$0xf]
      %v2610 = vld [vmem:[%s460 + $0x18] sm:$0xf]
      %v2611 = vld [vmem:[%s460 + $0x1c] sm:$0xf]
      %v2612 = vunpack.c.l.bf16 %v2604
      %v2613 = vunpack.c.l.bf16 %v2605
      %v2614 = vunpack.c.l.bf16 %v2606
      %v2615 = vunpack.c.l.bf16 %v2607
      %v2616 = vunpack.c.l.bf16 %v2608
      %v2617 = vunpack.c.l.bf16 %v2609
      %v2618 = vunpack.c.l.bf16 %v2610
      %v2619 = vunpack.c.l.bf16 %v2611
      %v2620 = vadd.f32 %v2596, %v2612
      %v2621 = vadd.f32 %v2597, %v2613
      %v2622 = vadd.f32 %v2598, %v2614
      %v2623 = vadd.f32 %v2599, %v2615
      %v2624 = vadd.f32 %v2600, %v2616
      %v2625 = vadd.f32 %v2601, %v2617
      %v2626 = vadd.f32 %v2602, %v2618
      %v2627 = vadd.f32 %v2603, %v2619
      %vm2628 = vcmp.ge.f32.partialorder %v2620, 0.0
      %vm2629 = vcmp.ge.f32.partialorder %v2621, 0.0
      %vm2630 = vcmp.ge.f32.partialorder %v2622, 0.0
      %vm2631 = vcmp.ge.f32.partialorder %v2623, 0.0
      %vm2632 = vcmp.ge.f32.partialorder %v2624, 0.0
      %vm2633 = vcmp.ge.f32.partialorder %v2625, 0.0
      %vm2634 = vcmp.ge.f32.partialorder %v2626, 0.0
      %vm2635 = vcmp.ge.f32.partialorder %v2627, 0.0
      %v2636 = vperm.slane %v2400, 0
      %v2637 = vmul.f32 %v2636, %v2620
      %v2638 = vmul.f32 %v2636, %v2621
      %v2639 = vmul.f32 %v2636, %v2622
      %v2640 = vmul.f32 %v2636, %v2623
      %v2641 = vmul.f32 %v2636, %v2624
      %v2642 = vmul.f32 %v2636, %v2625
      %v2643 = vmul.f32 %v2636, %v2626
      %v2644 = vmul.f32 %v2636, %v2627
      %v2645 = vsel %vm2628, %v2620, %v2637
      %v2646 = vsel %vm2629, %v2621, %v2638
      %v2647 = vsel %vm2630, %v2622, %v2639
      %v2648 = vsel %vm2631, %v2623, %v2640
      %v2649 = vsel %vm2632, %v2624, %v2641
      %v2650 = vsel %vm2633, %v2625, %v2642
      %v2651 = vsel %vm2634, %v2626, %v2643
      %v2652 = vsel %vm2635, %v2627, %v2644
      %2653 = vst [vmem:[%s470] sm:$0xff] %v2645
      %2654 = vst [vmem:[%s470 + $0x8] sm:$0xff] %v2646
      %2655 = vst [vmem:[%s470 + $0x10] sm:$0xff] %v2647
      %2656 = vst [vmem:[%s470 + $0x18] sm:$0xff] %v2648
      %2657 = vst [vmem:[%s470 + $0x20] sm:$0xff] %v2649
      %2658 = vst [vmem:[%s470 + $0x28] sm:$0xff] %v2650
      %2659 = vst [vmem:[%s470 + $0x30] sm:$0xff] %v2651
      %2660 = vst [vmem:[%s470 + $0x38] sm:$0xff] %v2652
      %s2661 = smul.u32 8, %s23
      %p2662 = scmp.lt.s32.totalorder %s22, 1
      %s2663 = scalar_select %p2662, %s22, 1
      %p2664 = scmp.lt.s32.totalorder %s2661, 7
      %s2665 = scalar_select %p2664, %s2661, 7
      %s2666 = smul.addr %s2663, 8
      %s2667 = sadd.s32 %s2665, %s2666
      %s2668 = smul.addr %s2667, 8
      %s2669 = scalar_lea.vmem %s7, %s2668
      // Predicated region
      $region49: #{rcb_forward.3} parent=47 // pred_check
        %p2670 = pneg %p241
      $region50: #{rcb_forward.3} parent=47 // pred_check_branch
        %2672 = sbr.rel (%p2670) target = $region52
      $region51: #{rcb_forward.3} parent=47 // pred_region
        %s2673 = smul.u32 8, %s23
      $region52: #{rcb_forward.3} parent=47 // pred_fallthru
        _
    $region48: #{rcb_forward.3} parent=5 // pred_fallthru
      _
    %p2674 = scmp.le.s32.totalorder 2, %s13
    // Predicated region
    $region53: #{rcb_forward.3} parent=5 // pred_check
      %p2675 = pneg %p2674
    $region54: #{rcb_forward.3} parent=5 // pred_check_branch
      %2677 = sbr.rel (%p2675) target = $region56
    $region55: #{rcb_forward.3} parent=5 // pred_region
      %s2678 = ssub.s32 %s13, 2
      // Predicated region
      $region57: #{rcb_forward.3} parent=55 // pred_check
        %p2679 = pneg %p247
      $region58: #{rcb_forward.3} parent=55 // pred_check_branch
        %2681 = sbr.rel (%p2679) target = $region60
      $region59: #{rcb_forward.3} parent=55 // pred_region
        %s2682 = smul.u32 8, %s25
        %p2683 = scmp.lt.s32.totalorder %s24, 1
        %s2684 = scalar_select %p2683, %s24, 1
        %p2685 = scmp.lt.s32.totalorder %s2682, 7
        %s2686 = scalar_select %p2685, %s2682, 7
        %s2687 = smul.addr %s2684, 8
        %s2688 = sadd.s32 %s2686, %s2687
        %s2689 = smul.addr %s2688, 8
        %s2690 = scalar_lea.vmem %s7, %s2689
      $region60: #{rcb_forward.3} parent=55 // pred_fallthru
        _
    $region56: #{rcb_forward.3} parent=5 // pred_fallthru
      _
  $region6: #{rcb_forward.3} parent=0 // loop_footer
    %s17 = sadd.s32 1, %s13
  $region7: #{rcb_forward.3} parent=0 // loop_footer_branch
    %12 = sbr.rel target = $region3
  $region8: #{rcb_forward.3} parent=0 // loop_exit
    _

</llo_original>
